<compile_context>
chip_gen: v7x
topology: tpu7x:2x2x1
jax: 0.10.0
libtpu: 0.0.40
codegen_flags: <defaults>
</compile_context>

<pallas_src>
import jax
import jax.numpy as jnp
from jax.experimental import pallas as pl
from jax.experimental.pallas import tpu as pltpu


# ---------------------------------------------------------------------------
# Pallas kernels
# ---------------------------------------------------------------------------
def _conv_lrelu_kernel(cols_ref, w_ref, b_ref, o_ref):
    # im2col matmul (bf16 operands -> f32 acc) + bias + LeakyReLU(0.2)
    y = jnp.dot(cols_ref[...], w_ref[...], preferred_element_type=jnp.float32)
    y = y + b_ref[...]                              # (1, C) broadcast
    o_ref[...] = jnp.maximum(y, 0.2 * y).astype(o_ref.dtype)


def _conv_stats_kernel(cols_ref, w_ref, b_ref, y_ref, s_ref, ss_ref):
    # conv2 matmul + bias; also emit per-tile partial BN statistics.
    y = jnp.dot(cols_ref[...], w_ref[...], preferred_element_type=jnp.float32)
    y = y + b_ref[...]                              # (tm, 256) f32
    y_ref[...] = y
    s_ref[...] = jnp.sum(y, axis=0, keepdims=True)          # (1, 256)
    ss_ref[...] = jnp.sum(y * y, axis=0, keepdims=True)     # (1, 256)


def _bn_lrelu_conv3_sigmoid_kernel(y_ref, scale_ref, shift_ref, w3_ref,
                                   b3_ref, o_ref):
    # Per-sample block: BN affine + LeakyReLU + conv3 (multiply-reduce) + sigmoid.
    z = y_ref[...] * scale_ref[...] + shift_ref[...]         # (49, 256)
    a = jnp.maximum(z, 0.2 * z)                              # LeakyReLU(0.2)
    prod = a * w3_ref[...]                                   # (49, 256)
    s = jnp.sum(prod, axis=0, keepdims=True)                 # (1, 256)
    logit = jnp.sum(s, axis=1, keepdims=True) + b3_ref[...]  # (1, 1)
    o_ref[...] = 1.0 / (1.0 + jnp.exp(-logit))               # Sigmoid


# ---------------------------------------------------------------------------
# Pallas wrappers
# ---------------------------------------------------------------------------
def _pick_row_tile(m, target):
    """Largest multiple-of-8 divisor of m that is <= target and < m (so the
    grid gets >= 2 blocks when possible, for v7x megacore); fallback: m."""
    best = m
    for d in range(8, min(target, m - 1) + 1, 8):
        if m % d == 0:
            best = d
    return best


def conv_lrelu(cols, w, b, *, target_tm=4096):
    """(M,K) @ (K,C) + b -> LeakyReLU(0.2); M-tiled parallel grid, bf16 out."""
    M, K = cols.shape
    C = w.shape[1]
    tm = _pick_row_tile(M, target_tm)
    cost = pl.CostEstimate(
        flops=2 * M * K * C, transcendentals=0,
        bytes_accessed=M * K * 2 + K * C * 2 + C * 4 + M * C * 2)
    return pl.pallas_call(
        _conv_lrelu_kernel,
        out_shape=jax.ShapeDtypeStruct((M, C), jnp.bfloat16),
        grid=(M // tm,),
        in_specs=[
            pl.BlockSpec((tm, K), lambda i: (i, 0)),
            pl.BlockSpec((K, C), lambda i: (0, 0)),
            pl.BlockSpec((1, C), lambda i: (0, 0)),
        ],
        out_specs=pl.BlockSpec((tm, C), lambda i: (i, 0)),
        compiler_params=pltpu.CompilerParams(dimension_semantics=("parallel",)),
        cost_estimate=cost,
    )(cols, w, b)


def conv_bias_stats(cols, w, b, *, target_tm=1024):
    """conv2 matmul + bias (f32 out) plus per-tile partial sum / sum-of-squares."""
    M, K = cols.shape
    C = w.shape[1]
    tm = _pick_row_tile(M, target_tm)
    g = M // tm
    cost = pl.CostEstimate(
        flops=2 * M * K * C + 4 * M * C, transcendentals=0,
        bytes_accessed=M * K * 2 + K * C * 2 + C * 4 + M * C * 4 + 2 * g * C * 4)
    return pl.pallas_call(
        _conv_stats_kernel,
        out_shape=(jax.ShapeDtypeStruct((M, C), jnp.float32),
                   jax.ShapeDtypeStruct((g, 1, C), jnp.float32),
                   jax.ShapeDtypeStruct((g, 1, C), jnp.float32)),
        grid=(g,),
        in_specs=[
            pl.BlockSpec((tm, K), lambda i: (i, 0)),
            pl.BlockSpec((K, C), lambda i: (0, 0)),
            pl.BlockSpec((1, C), lambda i: (0, 0)),
        ],
        out_specs=(pl.BlockSpec((tm, C), lambda i: (i, 0)),
                   pl.BlockSpec((None, 1, C), lambda i: (i, 0, 0)),
                   pl.BlockSpec((None, 1, C), lambda i: (i, 0, 0))),
        compiler_params=pltpu.CompilerParams(dimension_semantics=("parallel",)),
        cost_estimate=cost,
    )(cols, w, b)


def bn_lrelu_conv3_sigmoid(y3d, scale, shift, w3, b3):
    """Per-sample BN affine + LeakyReLU + conv3(256->1, k7 valid) + sigmoid."""
    N, G, C = y3d.shape
    cost = pl.CostEstimate(
        flops=6 * N * G * C, transcendentals=N,
        bytes_accessed=N * G * C * 4 + G * C * 4 + 2 * C * 4 + N * 4)
    return pl.pallas_call(
        _bn_lrelu_conv3_sigmoid_kernel,
        out_shape=jax.ShapeDtypeStruct((N, 1, 1), jnp.float32),
        grid=(N,),
        in_specs=[
            pl.BlockSpec((None, G, C), lambda n: (n, 0, 0)),
            pl.BlockSpec((1, C), lambda n: (0, 0)),
            pl.BlockSpec((1, C), lambda n: (0, 0)),
            pl.BlockSpec((G, C), lambda n: (0, 0)),
            pl.BlockSpec((1, 1), lambda n: (0, 0)),
        ],
        out_specs=pl.BlockSpec((None, 1, 1), lambda n: (n, 0, 0)),
        compiler_params=pltpu.CompilerParams(dimension_semantics=("parallel",)),
        cost_estimate=cost,
    )(y3d, scale, shift, w3, b3)


# ---------------------------------------------------------------------------
# Plain-JAX glue: NHWC im2col (channels last -> lane-dense, no transposes)
# ---------------------------------------------------------------------------
def _im2col_nhwc(x_nhwc, k, stride, pad):
    N, H, W, C = x_nhwc.shape
    Ho = (H + 2 * pad - k) // stride + 1
    Wo = (W + 2 * pad - k) // stride + 1
    xp = jnp.pad(x_nhwc, ((0, 0), (pad, pad), (pad, pad), (0, 0)))
    blocks = [
        xp[:, i:i + stride * Ho:stride, j:j + stride * Wo:stride, :]
        for i in range(k) for j in range(k)
    ]
    # column order = (ki, kj, c); weights are reshaped to match this order
    patches = jnp.concatenate(blocks, axis=-1)           # (N, Ho, Wo, k*k*C)
    return patches.reshape(N * Ho * Wo, k * k * C), Ho, Wo


# ---------------------------------------------------------------------------
# Parameters (deterministic, PyTorch shapes: weight (Cout, Cin, kH, kW))
# ---------------------------------------------------------------------------
def init_params(c, key):
    ks = jax.random.split(key, 6)

    def conv_w(k, shape):
        fan_in = shape[1] * shape[2] * shape[3]
        return jax.random.normal(k, shape, jnp.float32) * (1.0 / jnp.sqrt(fan_in))

    return {
        "w1": conv_w(ks[0], (128, c, 4, 4)),
        "b1": jax.random.normal(ks[1], (128,), jnp.float32) * 0.01,
        "w2": conv_w(ks[2], (256, 128, 4, 4)),
        "b2": jax.random.normal(ks[3], (256,), jnp.float32) * 0.01,
        "gamma": jnp.ones((256,), jnp.float32),
        "beta": jnp.zeros((256,), jnp.float32),
        "w3": conv_w(ks[4], (1, 256, 7, 7)),
        "b3": jax.random.normal(ks[5], (1,), jnp.float32) * 0.01,
    }


# ---------------------------------------------------------------------------
# Forward pass
# ---------------------------------------------------------------------------
def discriminator_forward(x, params):
    N, C, H, W = x.shape
    x_nhwc = jnp.transpose(x, (0, 2, 3, 1)).astype(jnp.bfloat16)

    # --- Conv1 (C -> 128, k4 s2 p1) + LeakyReLU(0.2) ------------------------
    cols1, H1, W1 = _im2col_nhwc(x_nhwc, 4, 2, 1)           # (N*H1*W1, 16C) bf16
    w1 = jnp.transpose(params["w1"], (2, 3, 1, 0)).reshape(-1, 128)
    a1 = conv_lrelu(cols1, w1.astype(jnp.bfloat16), params["b1"].reshape(1, -1))
    a1 = a1.reshape(N, H1, W1, 128)                         # NHWC bf16

    # --- Conv2 (128 -> 256, k4 s2 p1) + bias, with per-tile BN partials -----
    # TODO(synk): fuse this patch extraction into the conv2 kernel (in-kernel
    # strided gather / space-to-depth) to avoid the cols2 HBM materialization.
    cols2, H2, W2 = _im2col_nhwc(a1, 4, 2, 1)               # (N*49, 2048) bf16
    w2 = jnp.transpose(params["w2"], (2, 3, 1, 0)).reshape(-1, 256)
    y2, psum, psumsq = conv_bias_stats(cols2, w2.astype(jnp.bfloat16),
                                       params["b2"].reshape(1, -1))

    # --- BatchNorm2d(256): training-mode batch stats, biased var, eps=1e-5 --
    # Stats are finalized here in plain JAX from the per-tile partials (256-wide).
    m2 = y2.shape[0]
    mean = jnp.sum(psum, axis=(0, 1)) / m2
    var = jnp.maximum(jnp.sum(psumsq, axis=(0, 1)) / m2 - mean * mean, 0.0)
    inv_std = jax.lax.rsqrt(var + 1e-5)
    scale = (params["gamma"] * inv_std).reshape(1, -1)
    shift = (params["beta"] - mean * params["gamma"] * inv_std).reshape(1, -1)

    # --- BN + LeakyReLU + Conv3 (256 -> 1, k7 valid) + Sigmoid, per sample ---
    assert H2 == 7 and W2 == 7, "conv3(k=7, valid) expects a 7x7 feature map"
    groups = H2 * W2
    w3 = jnp.transpose(params["w3"], (0, 2, 3, 1)).reshape(groups, 256)
    y2_3d = y2.reshape(N, groups, 256)
    out = bn_lrelu_conv3_sigmoid(y2_3d, scale, shift, w3,
                                 params["b3"].reshape(1, 1))
    return out.reshape(N, 1, 1, 1)


# ---------------------------------------------------------------------------
if __name__ == "__main__":
    key = jax.random.PRNGKey(0)
    k_x, k_p = jax.random.split(key)

    # MNIST-like geometry implied by the module: 28 -> 14 -> 7 -> 1
    N, C, H, W = 2, 1, 28, 28
    x = jax.random.normal(k_x, (N, C, H, W), jnp.float32)
    params = init_params(C, k_p)

    out = jax.jit(discriminator_forward)(x, params)
    out = jax.block_until_ready(out)

    assert out.shape == (N, 1, 1, 1), out.shape
    assert bool(jnp.all(jnp.isfinite(out)))
    assert bool(jnp.all((out >= 0.0) & (out <= 1.0)))  # sigmoid range
    print("KERNEL_OK")
</pallas_src>

<mosaic_0001>
module attributes {stable_mosaic.version = 11 : i64} {
  func.func @_conv_lrelu_kernel(%arg0: i32, %arg1: memref<56x16xbf16, #tpu.memory_space<vmem>>, %arg2: memref<16x128xbf16, #tpu.memory_space<vmem>>, %arg3: memref<1x128xf32, #tpu.memory_space<vmem>>, %arg4: memref<56x128xbf16, #tpu.memory_space<vmem>>) attributes {dimension_semantics = [#tpu.dimension_semantics<parallel>], iteration_bounds = array<i64: 7>, scalar_prefetch = 0 : i64, scratch_operands = 0 : i64, tpu.core_type = #tpu.core_type<tc>, window_params = [{transform_indices = @transform_0, window_bounds = array<i64: 56, 16>}, {pipeline_mode = #tpu.pipeline_mode<synchronous>, transform_indices = @transform_1, window_bounds = array<i64: 16, 128>}, {pipeline_mode = #tpu.pipeline_mode<synchronous>, transform_indices = @transform_2, window_bounds = array<i64: 1, 128>}, {transform_indices = @transform_3, window_bounds = array<i64: 56, 128>}]} {
    %c0 = arith.constant 0 : index
    %c0_0 = arith.constant 0 : index
    %0 = vector.load %arg1[%c0, %c0_0] : memref<56x16xbf16, #tpu.memory_space<vmem>>, vector<56x16xbf16>
    %c0_1 = arith.constant 0 : index
    %c0_2 = arith.constant 0 : index
    %1 = vector.load %arg2[%c0_1, %c0_2] : memref<16x128xbf16, #tpu.memory_space<vmem>>, vector<16x128xbf16>
    %cst = arith.constant dense<0.000000e+00> : vector<56x128xf32>
    %2 = tpu.matmul %0, %1, %cst {dimension_numbers = #tpu.dot_dimension_numbers<[1], [0], [0], [1], [0, 0, 1, 1], [], []>} : vector<56x16xbf16>, vector<16x128xbf16>, vector<56x128xf32> -> vector<56x128xf32>
    %c0_3 = arith.constant 0 : index
    %c0_4 = arith.constant 0 : index
    %3 = vector.load %arg3[%c0_3, %c0_4] : memref<1x128xf32, #tpu.memory_space<vmem>>, vector<1x128xf32>
    %4 = vector.broadcast %3 : vector<1x128xf32> to vector<56x128xf32>
    %5 = arith.addf %2, %4 : vector<56x128xf32>
    %cst_5 = arith.constant 2.000000e-01 : f32
    %6 = vector.broadcast %cst_5 : f32 to vector<56x128xf32>
    %7 = arith.mulf %6, %5 : vector<56x128xf32>
    %8 = arith.maximumf %5, %7 : vector<56x128xf32>
    %9 = arith.truncf %8 : vector<56x128xf32> to vector<56x128xbf16>
    %c0_6 = arith.constant 0 : index
    %c0_7 = arith.constant 0 : index
    %10 = vector.load %arg4[%c0_6, %c0_7] : memref<56x128xbf16, #tpu.memory_space<vmem>>, vector<56x128xbf16>
    tpu.vector_store %arg4[%c0_6, %c0_7], %9 {strides = array<i32>} : memref<56x128xbf16, #tpu.memory_space<vmem>>, vector<56x128xbf16>,
    return
  }
  func.func @transform_0(%arg0: i32) -> (i32, i32) {
    %c0_i32 = arith.constant 0 : i32
    %c0_i32_0 = arith.constant 0 : i32
    return %arg0, %c0_i32 : i32, i32
  }
  func.func @transform_1(%arg0: i32) -> (i32, i32) {
    %c0_i32 = arith.constant 0 : i32
    %c0_i32_0 = arith.constant 0 : i32
    %c0_i32_1 = arith.constant 0 : i32
    return %c0_i32, %c0_i32_0 : i32, i32
  }
  func.func @transform_2(%arg0: i32) -> (i32, i32) {
    %c0_i32 = arith.constant 0 : i32
    %c0_i32_0 = arith.constant 0 : i32
    %c0_i32_1 = arith.constant 0 : i32
    return %c0_i32, %c0_i32_0 : i32, i32
  }
  func.func @transform_3(%arg0: i32) -> (i32, i32) {
    %c0_i32 = arith.constant 0 : i32
    %c0_i32_0 = arith.constant 0 : i32
    return %arg0, %c0_i32 : i32, i32
  }
}

module attributes {stable_mosaic.version = 11 : i64} {
  func.func @_conv_stats_kernel(%arg0: i32, %arg1: memref<98x2048xbf16, #tpu.memory_space<vmem>>, %arg2: memref<2048x256xbf16, #tpu.memory_space<vmem>>, %arg3: memref<1x256xf32, #tpu.memory_space<vmem>>, %arg4: memref<98x256xf32, #tpu.memory_space<vmem>>, %arg5: memref<1x1x256xf32, #tpu.memory_space<vmem>>, %arg6: memref<1x1x256xf32, #tpu.memory_space<vmem>>) attributes {dimension_semantics = [#tpu.dimension_semantics<parallel>], iteration_bounds = array<i64: 1>, scalar_prefetch = 0 : i64, scratch_operands = 0 : i64, tpu.core_type = #tpu.core_type<tc>, window_params = [{transform_indices = @transform_0, window_bounds = array<i64: 98, 2048>}, {pipeline_mode = #tpu.pipeline_mode<synchronous>, transform_indices = @transform_1, window_bounds = array<i64: 2048, 256>}, {pipeline_mode = #tpu.pipeline_mode<synchronous>, transform_indices = @transform_2, window_bounds = array<i64: 1, 256>}, {transform_indices = @transform_3, window_bounds = array<i64: 98, 256>}, {transform_indices = @transform_4, window_bounds = array<i64: 1, 1, 256>}, {transform_indices = @transform_5, window_bounds = array<i64: 1, 1, 256>}]} {
    %c0 = arith.constant 0 : index
    %c0_0 = arith.constant 0 : index
    %0 = vector.load %arg1[%c0, %c0_0] : memref<98x2048xbf16, #tpu.memory_space<vmem>>, vector<98x2048xbf16>
    %c0_1 = arith.constant 0 : index
    %c0_2 = arith.constant 0 : index
    %1 = vector.load %arg2[%c0_1, %c0_2] : memref<2048x256xbf16, #tpu.memory_space<vmem>>, vector<2048x256xbf16>
    %cst = arith.constant dense<0.000000e+00> : vector<98x256xf32>
    %2 = tpu.matmul %0, %1, %cst {dimension_numbers = #tpu.dot_dimension_numbers<[1], [0], [0], [1], [0, 0, 1, 1], [], []>} : vector<98x2048xbf16>, vector<2048x256xbf16>, vector<98x256xf32> -> vector<98x256xf32>
    %c0_3 = arith.constant 0 : index
    %c0_4 = arith.constant 0 : index
    %3 = vector.load %arg3[%c0_3, %c0_4] : memref<1x256xf32, #tpu.memory_space<vmem>>, vector<1x256xf32>
    %4 = vector.broadcast %3 : vector<1x256xf32> to vector<98x256xf32>
    %5 = arith.addf %2, %4 : vector<98x256xf32>
    %c0_5 = arith.constant 0 : index
    %c0_6 = arith.constant 0 : index
    %6 = vector.load %arg4[%c0_5, %c0_6] : memref<98x256xf32, #tpu.memory_space<vmem>>, vector<98x256xf32>
    tpu.vector_store %arg4[%c0_5, %c0_6], %5 {strides = array<i32>} : memref<98x256xf32, #tpu.memory_space<vmem>>, vector<98x256xf32>,
    %cst_7 = arith.constant dense<0.000000e+00> : vector<256xf32>
    %7 = vector.multi_reduction <add>, %5, %cst_7 [0] : vector<98x256xf32> to vector<256xf32>
    %8 = vector.shape_cast %7 : vector<256xf32> to vector<1x256xf32>
    %c0_8 = arith.constant 0 : index
    %c0_9 = arith.constant 0 : index
    %c0_10 = arith.constant 0 : index
    %9 = vector.load %arg5[%c0_8, %c0_9, %c0_10] : memref<1x1x256xf32, #tpu.memory_space<vmem>>, vector<1x1x256xf32>
    %10 = vector.shape_cast %9 : vector<1x1x256xf32> to vector<1x256xf32>
    %11 = vector.shape_cast %8 : vector<1x256xf32> to vector<1x1x256xf32>
    tpu.vector_store %arg5[%c0_8, %c0_9, %c0_10], %11 {strides = array<i32>} : memref<1x1x256xf32, #tpu.memory_space<vmem>>, vector<1x1x256xf32>,
    %12 = arith.mulf %5, %5 : vector<98x256xf32>
    %cst_11 = arith.constant dense<0.000000e+00> : vector<256xf32>
    %13 = vector.multi_reduction <add>, %12, %cst_11 [0] : vector<98x256xf32> to vector<256xf32>
    %14 = vector.shape_cast %13 : vector<256xf32> to vector<1x256xf32>
    %c0_12 = arith.constant 0 : index
    %c0_13 = arith.constant 0 : index
    %c0_14 = arith.constant 0 : index
    %15 = vector.load %arg6[%c0_12, %c0_13, %c0_14] : memref<1x1x256xf32, #tpu.memory_space<vmem>>, vector<1x1x256xf32>
    %16 = vector.shape_cast %15 : vector<1x1x256xf32> to vector<1x256xf32>
    %17 = vector.shape_cast %14 : vector<1x256xf32> to vector<1x1x256xf32>
    tpu.vector_store %arg6[%c0_12, %c0_13, %c0_14], %17 {strides = array<i32>} : memref<1x1x256xf32, #tpu.memory_space<vmem>>, vector<1x1x256xf32>,
    return
  }
  func.func @transform_0(%arg0: i32) -> (i32, i32) {
    %c0_i32 = arith.constant 0 : i32
    %c0_i32_0 = arith.constant 0 : i32
    return %arg0, %c0_i32 : i32, i32
  }
  func.func @transform_1(%arg0: i32) -> (i32, i32) {
    %c0_i32 = arith.constant 0 : i32
    %c0_i32_0 = arith.constant 0 : i32
    %c0_i32_1 = arith.constant 0 : i32
    return %c0_i32, %c0_i32_0 : i32, i32
  }
  func.func @transform_2(%arg0: i32) -> (i32, i32) {
    %c0_i32 = arith.constant 0 : i32
    %c0_i32_0 = arith.constant 0 : i32
    %c0_i32_1 = arith.constant 0 : i32
    return %c0_i32, %c0_i32_0 : i32, i32
  }
  func.func @transform_3(%arg0: i32) -> (i32, i32) {
    %c0_i32 = arith.constant 0 : i32
    %c0_i32_0 = arith.constant 0 : i32
    return %arg0, %c0_i32 : i32, i32
  }
  func.func @transform_4(%arg0: i32) -> (i32, i32, i32) {
    %c0_i32 = arith.constant 0 : i32
    %c0_i32_0 = arith.constant 0 : i32
    %c0_i32_1 = arith.constant 0 : i32
    return %arg0, %c0_i32, %c0_i32_0 : i32, i32, i32
  }
  func.func @transform_5(%arg0: i32) -> (i32, i32, i32) {
    %c0_i32 = arith.constant 0 : i32
    %c0_i32_0 = arith.constant 0 : i32
    %c0_i32_1 = arith.constant 0 : i32
    return %arg0, %c0_i32, %c0_i32_0 : i32, i32, i32
  }
}

module attributes {stable_mosaic.version = 11 : i64} {
  func.func @_bn_lrelu_conv3_sigmoid_kernel(%arg0: i32, %arg1: memref<1x49x256xf32, #tpu.memory_space<vmem>>, %arg2: memref<1x256xf32, #tpu.memory_space<vmem>>, %arg3: memref<1x256xf32, #tpu.memory_space<vmem>>, %arg4: memref<49x256xf32, #tpu.memory_space<vmem>>, %arg5: memref<1x1xf32, #tpu.memory_space<vmem>>, %arg6: memref<1x1x1xf32, #tpu.memory_space<vmem>>) attributes {dimension_semantics = [#tpu.dimension_semantics<parallel>], iteration_bounds = array<i64: 2>, scalar_prefetch = 0 : i64, scratch_operands = 0 : i64, tpu.core_type = #tpu.core_type<tc>, window_params = [{transform_indices = @transform_0, window_bounds = array<i64: 1, 49, 256>}, {pipeline_mode = #tpu.pipeline_mode<synchronous>, transform_indices = @transform_1, window_bounds = array<i64: 1, 256>}, {pipeline_mode = #tpu.pipeline_mode<synchronous>, transform_indices = @transform_2, window_bounds = array<i64: 1, 256>}, {pipeline_mode = #tpu.pipeline_mode<synchronous>, transform_indices = @transform_3, window_bounds = array<i64: 49, 256>}, {pipeline_mode = #tpu.pipeline_mode<synchronous>, transform_indices = @transform_4, window_bounds = array<i64: 1, 1>}, {transform_indices = @transform_5, window_bounds = array<i64: 1, 1, 1>}]} {
    %c0 = arith.constant 0 : index
    %c0_0 = arith.constant 0 : index
    %c0_1 = arith.constant 0 : index
    %0 = vector.load %arg1[%c0, %c0_0, %c0_1] : memref<1x49x256xf32, #tpu.memory_space<vmem>>, vector<1x49x256xf32>
    %1 = vector.shape_cast %0 : vector<1x49x256xf32> to vector<49x256xf32>
    %c0_2 = arith.constant 0 : index
    %c0_3 = arith.constant 0 : index
    %2 = vector.load %arg2[%c0_2, %c0_3] : memref<1x256xf32, #tpu.memory_space<vmem>>, vector<1x256xf32>
    %3 = vector.broadcast %2 : vector<1x256xf32> to vector<49x256xf32>
    %4 = arith.mulf %1, %3 : vector<49x256xf32>
    %c0_4 = arith.constant 0 : index
    %c0_5 = arith.constant 0 : index
    %5 = vector.load %arg3[%c0_4, %c0_5] : memref<1x256xf32, #tpu.memory_space<vmem>>, vector<1x256xf32>
    %6 = vector.broadcast %5 : vector<1x256xf32> to vector<49x256xf32>
    %7 = arith.addf %4, %6 : vector<49x256xf32>
    %cst = arith.constant 2.000000e-01 : f32
    %8 = vector.broadcast %cst : f32 to vector<49x256xf32>
    %9 = arith.mulf %8, %7 : vector<49x256xf32>
    %10 = arith.maximumf %7, %9 : vector<49x256xf32>
    %c0_6 = arith.constant 0 : index
    %c0_7 = arith.constant 0 : index
    %11 = vector.load %arg4[%c0_6, %c0_7] : memref<49x256xf32, #tpu.memory_space<vmem>>, vector<49x256xf32>
    %12 = arith.mulf %10, %11 : vector<49x256xf32>
    %cst_8 = arith.constant dense<0.000000e+00> : vector<256xf32>
    %13 = vector.multi_reduction <add>, %12, %cst_8 [0] : vector<49x256xf32> to vector<256xf32>
    %14 = vector.shape_cast %13 : vector<256xf32> to vector<1x256xf32>
    %cst_9 = arith.constant dense<0.000000e+00> : vector<1xf32>
    %15 = vector.multi_reduction <add>, %14, %cst_9 [1] : vector<1x256xf32> to vector<1xf32>
    %16 = vector.shape_cast %15 : vector<1xf32> to vector<1x1xf32>
    %c0_10 = arith.constant 0 : index
    %c0_11 = arith.constant 0 : index
    %17 = vector.load %arg5[%c0_10, %c0_11] : memref<1x1xf32, #tpu.memory_space<vmem>>, vector<1x1xf32>
    %18 = arith.addf %16, %17 : vector<1x1xf32>
    %cst_12 = arith.constant 0.000000e+00 : f32
    %19 = vector.broadcast %cst_12 : f32 to vector<1x1xf32>
    %20 = arith.subf %19, %18 : vector<1x1xf32>
    %21 = math.exp %20 : vector<1x1xf32>
    %cst_13 = arith.constant 1.000000e+00 : f32
    %22 = vector.broadcast %cst_13 : f32 to vector<1x1xf32>
    %23 = arith.addf %22, %21 : vector<1x1xf32>
    %cst_14 = arith.constant 1.000000e+00 : f32
    %24 = vector.broadcast %cst_14 : f32 to vector<1x1xf32>
    %25 = arith.divf %24, %23 : vector<1x1xf32>
    %c0_15 = arith.constant 0 : index
    %c0_16 = arith.constant 0 : index
    %c0_17 = arith.constant 0 : index
    %26 = vector.load %arg6[%c0_15, %c0_16, %c0_17] : memref<1x1x1xf32, #tpu.memory_space<vmem>>, vector<1x1x1xf32>
    %27 = vector.shape_cast %26 : vector<1x1x1xf32> to vector<1x1xf32>
    %28 = vector.shape_cast %25 : vector<1x1xf32> to vector<1x1x1xf32>
    tpu.vector_store %arg6[%c0_15, %c0_16, %c0_17], %28 {strides = array<i32>} : memref<1x1x1xf32, #tpu.memory_space<vmem>>, vector<1x1x1xf32>,
    return
  }
  func.func @transform_0(%arg0: i32) -> (i32, i32, i32) {
    %c0_i32 = arith.constant 0 : i32
    %c0_i32_0 = arith.constant 0 : i32
    %c0_i32_1 = arith.constant 0 : i32
    return %arg0, %c0_i32, %c0_i32_0 : i32, i32, i32
  }
  func.func @transform_1(%arg0: i32) -> (i32, i32) {
    %c0_i32 = arith.constant 0 : i32
    %c0_i32_0 = arith.constant 0 : i32
    %c0_i32_1 = arith.constant 0 : i32
    return %c0_i32, %c0_i32_0 : i32, i32
  }
  func.func @transform_2(%arg0: i32) -> (i32, i32) {
    %c0_i32 = arith.constant 0 : i32
    %c0_i32_0 = arith.constant 0 : i32
    %c0_i32_1 = arith.constant 0 : i32
    return %c0_i32, %c0_i32_0 : i32, i32
  }
  func.func @transform_3(%arg0: i32) -> (i32, i32) {
    %c0_i32 = arith.constant 0 : i32
    %c0_i32_0 = arith.constant 0 : i32
    %c0_i32_1 = arith.constant 0 : i32
    return %c0_i32, %c0_i32_0 : i32, i32
  }
  func.func @transform_4(%arg0: i32) -> (i32, i32) {
    %c0_i32 = arith.constant 0 : i32
    %c0_i32_0 = arith.constant 0 : i32
    %c0_i32_1 = arith.constant 0 : i32
    return %c0_i32, %c0_i32_0 : i32, i32
  }
  func.func @transform_5(%arg0: i32) -> (i32, i32, i32) {
    %c0_i32 = arith.constant 0 : i32
    %c0_i32_0 = arith.constant 0 : i32
    %c0_i32_1 = arith.constant 0 : i32
    return %arg0, %c0_i32, %c0_i32_0 : i32, i32, i32
  }
}

</mosaic_0001>

<llo_original>
// kernel: discriminator_forward.3
$region0: #{discriminator_forward.3}
  #allocation0 [shape = 'u32[]', space=smem, size = 0x4, offset = 0x4, fixed_abs, tag = 'smem constant byte address 0x4 - core index']
  #allocation1 [shape = 'u32[144,128]{1,0:T(1,128)}', space=vmem, size = 0x12000, scoped, tag = 'internal scratch']
  %s0 = inlined_call_operand.vmem [shape: bf16[392,16], index: 0, kind: input, shape index: {}]
  %s1 = inlined_call_operand.vmem [shape: bf16[16,128], index: 1, kind: input, shape index: {}]
  %s2 = inlined_call_operand.hbm [shape: f32[1,128], index: 2, kind: input, shape index: {}]
  %s3 = inlined_call_operand.vmem [shape: bf16[392,128], index: 3, kind: output, shape index: {}]
  %s4 = sld [smem:[#allocation0]]
  $region49: #{discriminator_forward.3} parent=0
    _
  %s6 = ssub.s32 1, %s4
  %s7 = scalar_select 0, %s6, %s4
  $region1: #{discriminator_forward.3} parent=0
    #allocation2 [shape = 'u8[512]{0}', space=vmem, size = 0x400, scoped, tag = 'input window, operand 2, single buffered']
    #allocation3 [shape = 's32[2]{0}', space=sflag, size = 0x8, scoped, tag = 'scoped memory for discriminator_forward.3']
    %8 = vsyncpa [#allocation3], 0
    loop: start=0, step=1, limit=9
    $region2: #{discriminator_forward.3} parent=1 // loop_pre_header
      _
    $region3: #{discriminator_forward.3} parent=1 // loop_header
      %s10 = sphi 0, %s14
      %p11 = scmp.ge.s32.totalorder %s10, 9
      %s20 = sphi 0, %s22
      %s23 = sphi 0, %s20
      %s24 = sphi 0, %s23
      %s40 = sphi 0, %s24
      %s44 = sphi 0, %s44
      %s46 = sphi 0, %s44
      %s47 = sphi 0, %s46
      %s61 = sphi 0, %s47
      %s65 = sphi 0, %s65
      %s67 = sphi 0, %s65
      %s68 = sphi 0, %s67
      %s82 = sphi 0, %s68
      %s88 = sphi 0, %s90
      %s91 = sphi 0, %s88
      %s92 = sphi 0, %s91
      %s108 = sphi 0, %s92
    $region4: #{discriminator_forward.3} parent=1 // loop_header_branch
      %13 = sbr.rel (%p11) target = $region8
    $region5: #{discriminator_forward.3} parent=1 // loop_body
      %s15 = ssub.s32 %s10, 1
      %s16 = ssub.s32 %s10, 2
      %s17 = sadd.s32 %s10, 1
      %s18 = ssub.s32 %s10, %s17
      %p19 = scmp.eq.s32.totalorder %s18, 0
      %s21 = sadd.s32 %s20, 1
      %s22 = scalar_select %p19, %s20, %s21
      %p25 = pneg %p19
      %p26 = scmp.eq.s32.totalorder %s10, 6
      %p27 = por %p25, %p26
      %p28 = scmp.ne.s32.totalorder %s20, %s23
      %p29 = scmp.eq.s32.totalorder %s10, 0
      %p30 = por %p28, %p29
      %p31 = scmp.ne.s32.totalorder %s20, %s23
      %p32 = scmp.eq.s32.totalorder %s15, 6
      %p33 = por %p31, %p32
      %p34 = scmp.ne.s32.totalorder %s23, %s24
      %p35 = scmp.eq.s32.totalorder %s15, 0
      %p36 = por %p34, %p35
      %p37 = scmp.ne.s32.totalorder %s23, %s24
      %p38 = scmp.eq.s32.totalorder %s16, 6
      %p39 = por %p37, %p38
      %p41 = scmp.ne.s32.totalorder %s24, %s40
      %p42 = scmp.eq.s32.totalorder %s16, 0
      %p43 = por %p41, %p42
      %s45 = sadd.s32 %s44, 1
      %p48 = scmp.eq.s32.totalorder %s10, 6
      %p49 = scmp.ne.s32.totalorder %s44, %s46
      %p50 = scmp.eq.s32.totalorder %s10, 0
      %p51 = por %p49, %p50
      %p52 = scmp.ne.s32.totalorder %s44, %s46
      %p53 = scmp.eq.s32.totalorder %s15, 6
      %p54 = por %p52, %p53
      %p55 = scmp.ne.s32.totalorder %s46, %s47
      %p56 = scmp.eq.s32.totalorder %s15, 0
      %p57 = por %p55, %p56
      %p58 = scmp.ne.s32.totalorder %s46, %s47
      %p59 = scmp.eq.s32.totalorder %s16, 6
      %p60 = por %p58, %p59
      %p62 = scmp.ne.s32.totalorder %s47, %s61
      %p63 = scmp.eq.s32.totalorder %s16, 0
      %p64 = por %p62, %p63
      %s66 = sadd.s32 %s65, 1
      %p69 = scmp.eq.s32.totalorder %s10, 6
      %p70 = scmp.ne.s32.totalorder %s65, %s67
      %p71 = scmp.eq.s32.totalorder %s10, 0
      %p72 = por %p70, %p71
      %p73 = scmp.ne.s32.totalorder %s65, %s67
      %p74 = scmp.eq.s32.totalorder %s15, 6
      %p75 = por %p73, %p74
      %p76 = scmp.ne.s32.totalorder %s67, %s68
      %p77 = scmp.eq.s32.totalorder %s15, 0
      %p78 = por %p76, %p77
      %p79 = scmp.ne.s32.totalorder %s67, %s68
      %p80 = scmp.eq.s32.totalorder %s16, 6
      %p81 = por %p79, %p80
      %p83 = scmp.ne.s32.totalorder %s68, %s82
      %p84 = scmp.eq.s32.totalorder %s16, 0
      %p85 = por %p83, %p84
      %s86 = ssub.s32 %s10, %s17
      %p87 = scmp.eq.s32.totalorder %s86, 0
      %s89 = sadd.s32 %s88, 1
      %s90 = scalar_select %p87, %s88, %s89
      %p93 = pneg %p87
      %p94 = scmp.eq.s32.totalorder %s10, 6
      %p95 = por %p93, %p94
      %p96 = scmp.ne.s32.totalorder %s88, %s91
      %p97 = scmp.eq.s32.totalorder %s10, 0
      %p98 = por %p96, %p97
      %p99 = scmp.ne.s32.totalorder %s88, %s91
      %p100 = scmp.eq.s32.totalorder %s15, 6
      %p101 = por %p99, %p100
      %p102 = scmp.ne.s32.totalorder %s91, %s92
      %p103 = scmp.eq.s32.totalorder %s15, 0
      %p104 = por %p102, %p103
      %p105 = scmp.ne.s32.totalorder %s91, %s92
      %p106 = scmp.eq.s32.totalorder %s16, 6
      %p107 = por %p105, %p106
      %p109 = scmp.ne.s32.totalorder %s92, %s108
      %p110 = scmp.eq.s32.totalorder %s16, 0
      %p111 = por %p109, %p110
      %p112 = scmp.le.s32.totalorder 1, %s10
      %p113 = scmp.lt.s32.totalorder %s10, 8
      %p114 = pnand %p112, %p113
      %p115 = pneg %p114
      // Predicated region
      $region9: #{discriminator_forward.3} parent=5 // pred_check
        _
      $region10: #{discriminator_forward.3} parent=5 // pred_check_branch
        %117 = sbr.rel (%p114) target = $region12
      $region11: #{discriminator_forward.3} parent=5 // pred_region
        %s118 = ssub.s32 %s10, 1
        // Predicated region
        $region13: #{discriminator_forward.3} parent=11 // pred_check
          %p119 = pneg %p57
        $region14: #{discriminator_forward.3} parent=11 // pred_check_branch
          %121 = sbr.rel (%p119) target = $region16
        $region15: #{discriminator_forward.3} parent=11 // pred_region
          _
        $region16: #{discriminator_forward.3} parent=11 // pred_fallthru
          _
        // Predicated region
        $region17: #{discriminator_forward.3} parent=11 // pred_check
          %p122 = pneg %p78
        $region18: #{discriminator_forward.3} parent=11 // pred_check_branch
          %124 = sbr.rel (%p122) target = $region20
        $region19: #{discriminator_forward.3} parent=11 // pred_region
          %s126 = ssub.s32 16, 16
          %127 = vsyncadd [#allocation3], %s126
          %s129 = sshll.u32 [#allocation2], 4
          %s130 = int_to_ptr.vmem [resolvable:$true] %s129
          %132 = dma.hbm_to_vmem [thread:$0]  %s2, 16, %s130, [#allocation3]
        $region20: #{discriminator_forward.3} parent=11 // pred_fallthru
          _
      $region12: #{discriminator_forward.3} parent=5 // pred_fallthru
        _
      %p133 = scmp.lt.s32.totalorder %s10, 7
      // Predicated region
      $region21: #{discriminator_forward.3} parent=5 // pred_check
        %p134 = pneg %p133
      $region22: #{discriminator_forward.3} parent=5 // pred_check_branch
        %136 = sbr.rel (%p134) target = $region24
      $region23: #{discriminator_forward.3} parent=5 // pred_region
        // Predicated region
        $region25: #{discriminator_forward.3} parent=23 // pred_check
          %p137 = pneg %p30
        $region26: #{discriminator_forward.3} parent=23 // pred_check_branch
          %139 = sbr.rel (%p137) target = $region28
        $region27: #{discriminator_forward.3} parent=23 // pred_region
          %s140 = smul.u32 7, %s10
          %p141 = scmp.lt.s32.totalorder %s140, 48
          %s142 = scalar_select %p141, %s140, 48
          %s143 = smul.addr %s142, 4
          %s144 = scalar_lea.vmem %s0, %s143
          %s145 = smul.u32 7, %s10
        $region28: #{discriminator_forward.3} parent=23 // pred_fallthru
          _
      $region24: #{discriminator_forward.3} parent=5 // pred_fallthru
        _
      %p146 = scmp.le.s32.totalorder 1, %s10
      %p147 = scmp.lt.s32.totalorder %s10, 8
      %p148 = pnand %p146, %p147
      %p149 = pneg %p148
      // Predicated region
      $region29: #{discriminator_forward.3} parent=5 // pred_check
        _
      $region30: #{discriminator_forward.3} parent=5 // pred_check_branch
        %151 = sbr.rel (%p148) target = $region32
      $region31: #{discriminator_forward.3} parent=5 // pred_region
        %s152 = ssub.s32 %s10, 1
        // Predicated region
        $region33: #{discriminator_forward.3} parent=31 // pred_check
          %p153 = pneg %p78
        $region34: #{discriminator_forward.3} parent=31 // pred_check_branch
          %155 = sbr.rel (%p153) target = $region36
        $region35: #{discriminator_forward.3} parent=31 // pred_region
          %156 = dma.done [#allocation3], 16
        $region36: #{discriminator_forward.3} parent=31 // pred_fallthru
          _
        %s157 = smul.u32 7, %s15
        %p158 = scmp.lt.s32.totalorder %s157, 48
        %s159 = scalar_select %p158, %s157, 48
        %s160 = smul.addr %s159, 4
        %s161 = scalar_lea.vmem %s0, %s160
        %p162 = pneg %p36
        %p163 = pneg %p33
        %p164 = pneg %p57
        %p165 = pneg %p54
        %p166 = pneg %p78
        %p167 = pneg %p75
        %p168 = pneg %p104
        %p169 = pneg %p101
        %s170 = smul.u32 7, %s15
        %p171 = scmp.lt.s32.totalorder %s170, 48
        %s172 = scalar_select %p171, %s170, 48
        %s173 = smul.addr %s172, 4
        %s174 = scalar_lea.vmem %s3, %s173
        %s175 = smul.u32 7, %s15
        %p176 = scmp.lt.s32.totalorder %s175, 48
        %s177 = scalar_select %p176, %s175, 48
        %s178 = smul.addr %s177, 4
        %s179 = scalar_lea.vmem %s0, %s178
        %s180 = smul.u32 7, %s15
        %s181 = smul.u32 7, %s15
        %p182 = scmp.lt.s32.totalorder %s181, 48
        %s183 = scalar_select %p182, %s181, 48
        %s184 = smul.addr %s183, 4
        %s185 = scalar_lea.vmem %s3, %s184
        %s186 = smul.u32 7, %s15
        %v188 = vld [vmem:[%s179] sm:$0xf]
        %v189 = vld [vmem:[%s179 + $0x4] sm:$0xf]
        %v190 = vld [vmem:[%s179 + $0x8] sm:$0xf]
        %v191 = vld [vmem:[%s179 + $0xc] sm:$0xf]
        %v192 = vld [vmem:[%s179 + $0x10] sm:$0xf]
        %v193 = vld [vmem:[%s179 + $0x14] sm:$0xf]
        %v194 = vld [vmem:[%s179 + $0x18] sm:$0xf]
        %v195 = vld [vmem:[%s1] sm:$0xf]
        %v196 = vld [vmem:[%s1 + $0x4] sm:$0xf]
        %v197 = vld [vmem:[#allocation2] sm:$0x1]
        %v199 = vlaneseq
        %v200 = vshrl.u32 %v199, 7
        %v201 = vsub.s32 0, %v200
        %v202 = vrot.slane %v197, %v201
        %v211 = vunpack.c.l.b16 %v188
        %v212 = vunpack.c.l.b16 %v189
        %v213 = vunpack.c.l.b16 %v190
        %v214 = vunpack.c.l.b16 %v191
        %v215 = vunpack.c.l.b16 %v192
        %v216 = vunpack.c.l.b16 %v193
        %v217 = vunpack.c.l.b16 %v194
        %v218 = vpack.c.b16 %v212, %v211
        %v219 = vpack.c.b16 %v214, %v213
        %v220 = vpack.c.b16 %v216, %v215
        %v221 = vpack.c.b16 %v217, %v217
        %v224 = vunpack.c.l.b16 %v195
        %v225 = vunpack.c.l.b16 %v196
        %v226 = vpack.c.b16 %v225, %v224
        %vm228 = vcmask 130048
        %v230 = vsel %vm228, %v218, 0
        %v233 = vsel %vm228, %v219, 0
        %v236 = vsel %vm228, %v220, 0
        %v239 = vsel %vm228, %v221, 0
        %241 = vmatprep.subr.bf16.mxu0 0
        %242 = vmatpush1.bf16.msra.mxu0 %v226
        %243 = vmatprep.subr.bf16.mxu0 0
        %244 = vmatpush1.bf16.msra.mxu0 0
        %245 = vmatprep.subr.bf16.mxu0 0
        %246 = vmatpush1.bf16.msra.mxu0 0
        %247 = vmatprep.subr.bf16.mxu0 0
        %248 = vmatpush1.bf16.msra.mxu0 0
        %249 = vmatprep.subr.bf16.mxu0 0
        %250 = vmatpush1.bf16.msra.mxu0 0
        %251 = vmatprep.subr.bf16.mxu0 0
        %252 = vmatpush1.bf16.msra.mxu0 0
        %253 = vmatprep.subr.bf16.mxu0 0
        %254 = vmatpush1.bf16.msra.mxu0 0
        %255 = vmatprep.subr.bf16.mxu0 0
        %256 = vmatpush1.bf16.msra.mxu0 0
        %257 = vmatprep.subr.bf16.mxu0 0
        %258 = vmatpush1.bf16.msra.mxu0 0
        %259 = vmatprep.subr.bf16.mxu0 0
        %260 = vmatpush1.bf16.msra.mxu0 0
        %261 = vmatprep.subr.bf16.mxu0 0
        %262 = vmatpush1.bf16.msra.mxu0 0
        %263 = vmatprep.subr.bf16.mxu0 0
        %264 = vmatpush1.bf16.msra.mxu0 0
        %265 = vmatprep.subr.bf16.mxu0 0
        %266 = vmatpush1.bf16.msra.mxu0 0
        %267 = vmatprep.subr.bf16.mxu0 0
        %268 = vmatpush1.bf16.msra.mxu0 0
        %269 = vmatprep.subr.bf16.mxu0 0
        %270 = vmatpush1.bf16.msra.mxu0 0
        %271 = vmatprep.subr.bf16.mxu0 0
        %272 = vmatpush1.bf16.msra.mxu0 0
        %273 = vmatprep.mubr.bf16.mxu0 0
        %274 = vmatmul.mubr.bf16.gmra.mrb[0].mxu0 %v230
        %v275 = vpop.f32.mrb[0].mxu0
        %v276 = vadd.f32 %v202, %v275
        %v277 = vpop.f32.mrb[0].mxu0
        %v278 = vpop.f32.mrb[0].mxu0
        %v279 = vadd.f32 %v202, %v278
        %v280 = vpop.f32.mrb[0].mxu0
        %281 = vmatprep.mubr.bf16.mxu0 0
        %282 = vmatmul.mubr.bf16.gmra.mrb[0].mxu0 %v233
        %v283 = vpop.f32.mrb[0].mxu0
        %v284 = vadd.f32 %v202, %v283
        %v285 = vpop.f32.mrb[0].mxu0
        %v286 = vpop.f32.mrb[0].mxu0
        %v287 = vadd.f32 %v202, %v286
        %v288 = vpop.f32.mrb[0].mxu0
        %289 = vmatprep.mubr.bf16.mxu0 0
        %290 = vmatmul.mubr.bf16.gmra.mrb[0].mxu0 %v236
        %v291 = vpop.f32.mrb[0].mxu0
        %v292 = vadd.f32 %v202, %v291
        %v293 = vpop.f32.mrb[0].mxu0
        %v294 = vpop.f32.mrb[0].mxu0
        %v295 = vadd.f32 %v202, %v294
        %v296 = vpop.f32.mrb[0].mxu0
        %297 = vmatprep.mubr.bf16.mxu0 0
        %298 = vmatmul.mubr.bf16.gmra.mrb[0].mxu0 %v239
        %v299 = vpop.f32.mrb[0].mxu0
        %v300 = vadd.f32 %v202, %v299
        %v301 = vpop.f32.mrb[0].mxu0
        %v302 = vpop.f32.mrb[0].mxu0
        %v303 = vpop.f32.mrb[0].mxu0
        %304 = vdwg.mxu0
        %v305 = vmul.f32 %v276, 0.2
        %v306 = vmul.f32 %v279, 0.2
        %v307 = vmul.f32 %v284, 0.2
        %v308 = vmul.f32 %v287, 0.2
        %v309 = vmul.f32 %v292, 0.2
        %v310 = vmul.f32 %v295, 0.2
        %v311 = vmul.f32 %v300, 0.2
        %v312 = vmax.f32 %v276, %v305
        %v313 = vmax.f32 %v279, %v306
        %v314 = vmax.f32 %v284, %v307
        %v315 = vmax.f32 %v287, %v308
        %v316 = vmax.f32 %v292, %v309
        %v317 = vmax.f32 %v295, %v310
        %v318 = vmax.f32 %v300, %v311
        %v319 = vpack.c.bf16 %v313, %v312
        %v320 = vpack.c.bf16 %v315, %v314
        %v321 = vpack.c.bf16 %v317, %v316
        %v322 = vpack.c.bf16 %v318, %v318
        %v327 = vunpack.c.l.b16 %v319
        %v328 = vunpack.c.h.b16 %v319
        %v329 = vunpack.c.l.b16 %v320
        %v330 = vunpack.c.h.b16 %v320
        %v331 = vunpack.c.l.b16 %v321
        %v332 = vunpack.c.h.b16 %v321
        %v333 = vunpack.c.l.b16 %v322
        %v334 = vpack.c.b16 %v327, %v327
        %v335 = vpack.c.b16 %v328, %v328
        %v336 = vpack.c.b16 %v329, %v329
        %v337 = vpack.c.b16 %v330, %v330
        %v338 = vpack.c.b16 %v331, %v331
        %v339 = vpack.c.b16 %v332, %v332
        %v340 = vpack.c.b16 %v333, %v333
        %348 = vst [vmem:[%s185] sm:$0xf] %v334
        %349 = vst [vmem:[%s185 + $0x4] sm:$0xf] %v335
        %350 = vst [vmem:[%s185 + $0x8] sm:$0xf] %v336
        %351 = vst [vmem:[%s185 + $0xc] sm:$0xf] %v337
        %352 = vst [vmem:[%s185 + $0x10] sm:$0xf] %v338
        %353 = vst [vmem:[%s185 + $0x14] sm:$0xf] %v339
        %354 = vst [vmem:[%s185 + $0x18] sm:$0xf] %v340
        %s355 = smul.u32 7, %s15
        %p356 = scmp.lt.s32.totalorder %s355, 48
        %s357 = scalar_select %p356, %s355, 48
        %s358 = smul.addr %s357, 4
        %s359 = scalar_lea.vmem %s3, %s358
        // Predicated region
        $region37: #{discriminator_forward.3} parent=31 // pred_check
          %p360 = pneg %p101
        $region38: #{discriminator_forward.3} parent=31 // pred_check_branch
          %362 = sbr.rel (%p360) target = $region40
        $region39: #{discriminator_forward.3} parent=31 // pred_region
          %s363 = smul.u32 7, %s15
        $region40: #{discriminator_forward.3} parent=31 // pred_fallthru
          _
      $region32: #{discriminator_forward.3} parent=5 // pred_fallthru
        _
      %p364 = scmp.le.s32.totalorder 2, %s10
      // Predicated region
      $region41: #{discriminator_forward.3} parent=5 // pred_check
        %p365 = pneg %p364
      $region42: #{discriminator_forward.3} parent=5 // pred_check_branch
        %367 = sbr.rel (%p365) target = $region44
      $region43: #{discriminator_forward.3} parent=5 // pred_region
        %s368 = ssub.s32 %s10, 2
        // Predicated region
        $region45: #{discriminator_forward.3} parent=43 // pred_check
          %p369 = pneg %p107
        $region46: #{discriminator_forward.3} parent=43 // pred_check_branch
          %371 = sbr.rel (%p369) target = $region48
        $region47: #{discriminator_forward.3} parent=43 // pred_region
          %s372 = smul.u32 7, %s16
          %p373 = scmp.lt.s32.totalorder %s372, 48
          %s374 = scalar_select %p373, %s372, 48
          %s375 = smul.addr %s374, 4
          %s376 = scalar_lea.vmem %s3, %s375
        $region48: #{discriminator_forward.3} parent=43 // pred_fallthru
          _
      $region44: #{discriminator_forward.3} parent=5 // pred_fallthru
        _
    $region6: #{discriminator_forward.3} parent=1 // loop_footer
      %s14 = sadd.s32 1, %s10
    $region7: #{discriminator_forward.3} parent=1 // loop_footer_branch
      %9 = sbr.rel target = $region3
    $region8: #{discriminator_forward.3} parent=1 // loop_exit
      _
    %377 = vsyncpa [#allocation3], 1
    %s378 = scalar_lea.sflag [#allocation3], 1
    %379 = vsyncpa %s378, 1

// kernel: discriminator_forward.4
$region0: #{discriminator_forward.4}
  #allocation0 [shape = 'u32[]', space=smem, size = 0x4, offset = 0x4, fixed_abs, tag = 'smem constant byte address 0x4 - core index']
  #allocation1 [shape = 'u32[144,128]{1,0:T(1,128)}', space=vmem, size = 0x12000, scoped, tag = 'internal scratch']
  %s0 = inlined_call_operand.vmem [shape: bf16[98,2048], index: 0, kind: input, shape index: {}]
  %s1 = inlined_call_operand.vmem [shape: bf16[2048,256], index: 1, kind: input, shape index: {}]
  %s2 = inlined_call_operand.vmem [shape: f32[1,256], index: 2, kind: input, shape index: {}]
  %s3 = inlined_call_operand.vmem [shape: f32[98,256], index: 3, kind: output, shape index: {0}]
  %s4 = inlined_call_operand.vmem [shape: f32[1,1,256], index: 4, kind: output, shape index: {1}]
  %s5 = inlined_call_operand.vmem [shape: f32[1,1,256], index: 5, kind: output, shape index: {2}]
  %6 = xla_tuple %s3, %s4, %s5
  %s7 = sld [smem:[#allocation0]]
  $region38: #{discriminator_forward.4} parent=0
    _
  %s9 = ssub.s32 1, %s7
  %s10 = scalar_select 0, %s9, %s7
  // Predicated region
  $region2: #{discriminator_forward.4} parent=0 // pred_check
    _
  $region3: #{discriminator_forward.4} parent=0 // pred_check_branch
    %12 = sbr.rel (0) target = $region5
  $region4: #{discriminator_forward.4} parent=0 // pred_region
    _
  $region5: #{discriminator_forward.4} parent=0 // pred_fallthru
    _
  // Predicated region
  $region6: #{discriminator_forward.4} parent=0 // pred_check
    _
  $region7: #{discriminator_forward.4} parent=0 // pred_check_branch
    %14 = sbr.rel (0) target = $region9
  $region8: #{discriminator_forward.4} parent=0 // pred_region
    _
  $region9: #{discriminator_forward.4} parent=0 // pred_fallthru
    _
  // Predicated region
  $region10: #{discriminator_forward.4} parent=0 // pred_check
    _
  $region11: #{discriminator_forward.4} parent=0 // pred_check_branch
    %16 = sbr.rel (0) target = $region13
  $region12: #{discriminator_forward.4} parent=0 // pred_region
    _
  $region13: #{discriminator_forward.4} parent=0 // pred_fallthru
    _
  %v17 = vld [vmem:[%s0] sm:$0xff]
  %v18 = vld [vmem:[%s0 + $0x8] sm:$0xff]
  %v19 = vld [vmem:[%s0 + $0x10] sm:$0xff]
  %v20 = vld [vmem:[%s0 + $0x18] sm:$0xff]
  %v21 = vld [vmem:[%s0 + $0x20] sm:$0xff]
  %v22 = vld [vmem:[%s0 + $0x28] sm:$0xff]
  %v23 = vld [vmem:[%s0 + $0x30] sm:$0xff]
  %v24 = vld [vmem:[%s0 + $0x38] sm:$0xff]
  %v25 = vld [vmem:[%s0 + $0x40] sm:$0xff]
  %v26 = vld [vmem:[%s0 + $0x48] sm:$0xff]
  %v27 = vld [vmem:[%s0 + $0x50] sm:$0xff]
  %v28 = vld [vmem:[%s0 + $0x58] sm:$0xff]
  %v29 = vld [vmem:[%s0 + $0x60] sm:$0xff]
  %v30 = vld [vmem:[%s0 + $0x68] sm:$0xff]
  %v31 = vld [vmem:[%s0 + $0x70] sm:$0xff]
  %v32 = vld [vmem:[%s0 + $0x78] sm:$0xff]
  %v33 = vld [vmem:[%s0 + $0x80] sm:$0xff]
  %v34 = vld [vmem:[%s0 + $0x88] sm:$0xff]
  %v35 = vld [vmem:[%s0 + $0x90] sm:$0xff]
  %v36 = vld [vmem:[%s0 + $0x98] sm:$0xff]
  %v37 = vld [vmem:[%s0 + $0xa0] sm:$0xff]
  %v38 = vld [vmem:[%s0 + $0xa8] sm:$0xff]
  %v39 = vld [vmem:[%s0 + $0xb0] sm:$0xff]
  %v40 = vld [vmem:[%s0 + $0xb8] sm:$0xff]
  %v41 = vld [vmem:[%s0 + $0xc0] sm:$0xff]
  %v42 = vld [vmem:[%s0 + $0xc8] sm:$0xff]
  %v43 = vld [vmem:[%s0 + $0xd0] sm:$0xff]
  %v44 = vld [vmem:[%s0 + $0xd8] sm:$0xff]
  %v45 = vld [vmem:[%s0 + $0xe0] sm:$0xff]
  %v46 = vld [vmem:[%s0 + $0xe8] sm:$0xff]
  %v47 = vld [vmem:[%s0 + $0xf0] sm:$0xff]
  %v48 = vld [vmem:[%s0 + $0xf8] sm:$0xff]
  %v49 = vld [vmem:[%s0 + $0x100] sm:$0xff]
  %v50 = vld [vmem:[%s0 + $0x108] sm:$0xff]
  %v51 = vld [vmem:[%s0 + $0x110] sm:$0xff]
  %v52 = vld [vmem:[%s0 + $0x118] sm:$0xff]
  %v53 = vld [vmem:[%s0 + $0x120] sm:$0xff]
  %v54 = vld [vmem:[%s0 + $0x128] sm:$0xff]
  %v55 = vld [vmem:[%s0 + $0x130] sm:$0xff]
  %v56 = vld [vmem:[%s0 + $0x138] sm:$0xff]
  %v57 = vld [vmem:[%s0 + $0x140] sm:$0xff]
  %v58 = vld [vmem:[%s0 + $0x148] sm:$0xff]
  %v59 = vld [vmem:[%s0 + $0x150] sm:$0xff]
  %v60 = vld [vmem:[%s0 + $0x158] sm:$0xff]
  %v61 = vld [vmem:[%s0 + $0x160] sm:$0xff]
  %v62 = vld [vmem:[%s0 + $0x168] sm:$0xff]
  %v63 = vld [vmem:[%s0 + $0x170] sm:$0xff]
  %v64 = vld [vmem:[%s0 + $0x178] sm:$0xff]
  %v65 = vld [vmem:[%s0 + $0x180] sm:$0xff]
  %v66 = vld [vmem:[%s0 + $0x188] sm:$0xff]
  %v67 = vld [vmem:[%s0 + $0x190] sm:$0xff]
  %v68 = vld [vmem:[%s0 + $0x198] sm:$0xff]
  %v69 = vld [vmem:[%s0 + $0x1a0] sm:$0xff]
  %v70 = vld [vmem:[%s0 + $0x1a8] sm:$0xff]
  %v71 = vld [vmem:[%s0 + $0x1b0] sm:$0xff]
  %v72 = vld [vmem:[%s0 + $0x1b8] sm:$0xff]
  %v73 = vld [vmem:[%s0 + $0x1c0] sm:$0xff]
  %v74 = vld [vmem:[%s0 + $0x1c8] sm:$0xff]
  %v75 = vld [vmem:[%s0 + $0x1d0] sm:$0xff]
  %v76 = vld [vmem:[%s0 + $0x1d8] sm:$0xff]
  %v77 = vld [vmem:[%s0 + $0x1e0] sm:$0xff]
  %v78 = vld [vmem:[%s0 + $0x1e8] sm:$0xff]
  %v79 = vld [vmem:[%s0 + $0x1f0] sm:$0xff]
  %v80 = vld [vmem:[%s0 + $0x1f8] sm:$0xff]
  %v81 = vld [vmem:[%s0 + $0x200] sm:$0xff]
  %v82 = vld [vmem:[%s0 + $0x208] sm:$0xff]
  %v83 = vld [vmem:[%s0 + $0x210] sm:$0xff]
  %v84 = vld [vmem:[%s0 + $0x218] sm:$0xff]
  %v85 = vld [vmem:[%s0 + $0x220] sm:$0xff]
  %v86 = vld [vmem:[%s0 + $0x228] sm:$0xff]
  %v87 = vld [vmem:[%s0 + $0x230] sm:$0xff]
  %v88 = vld [vmem:[%s0 + $0x238] sm:$0xff]
  %v89 = vld [vmem:[%s0 + $0x240] sm:$0xff]
  %v90 = vld [vmem:[%s0 + $0x248] sm:$0xff]
  %v91 = vld [vmem:[%s0 + $0x250] sm:$0xff]
  %v92 = vld [vmem:[%s0 + $0x258] sm:$0xff]
  %v93 = vld [vmem:[%s0 + $0x260] sm:$0xff]
  %v94 = vld [vmem:[%s0 + $0x268] sm:$0xff]
  %v95 = vld [vmem:[%s0 + $0x270] sm:$0xff]
  %v96 = vld [vmem:[%s0 + $0x278] sm:$0xff]
  %v97 = vld [vmem:[%s0 + $0x280] sm:$0xff]
  %v98 = vld [vmem:[%s0 + $0x288] sm:$0xff]
  %v99 = vld [vmem:[%s0 + $0x290] sm:$0xff]
  %v100 = vld [vmem:[%s0 + $0x298] sm:$0xff]
  %v101 = vld [vmem:[%s0 + $0x2a0] sm:$0xff]
  %v102 = vld [vmem:[%s0 + $0x2a8] sm:$0xff]
  %v103 = vld [vmem:[%s0 + $0x2b0] sm:$0xff]
  %v104 = vld [vmem:[%s0 + $0x2b8] sm:$0xff]
  %v105 = vld [vmem:[%s0 + $0x2c0] sm:$0xff]
  %v106 = vld [vmem:[%s0 + $0x2c8] sm:$0xff]
  %v107 = vld [vmem:[%s0 + $0x2d0] sm:$0xff]
  %v108 = vld [vmem:[%s0 + $0x2d8] sm:$0xff]
  %v109 = vld [vmem:[%s0 + $0x2e0] sm:$0xff]
  %v110 = vld [vmem:[%s0 + $0x2e8] sm:$0xff]
  %v111 = vld [vmem:[%s0 + $0x2f0] sm:$0xff]
  %v112 = vld [vmem:[%s0 + $0x2f8] sm:$0xff]
  %v113 = vld [vmem:[%s0 + $0x300] sm:$0x11]
  %v114 = vld [vmem:[%s0 + $0x308] sm:$0x11]
  %v115 = vld [vmem:[%s0 + $0x310] sm:$0x11]
  %v116 = vld [vmem:[%s0 + $0x318] sm:$0x11]
  %v117 = vld [vmem:[%s0 + $0x320] sm:$0x11]
  %v118 = vld [vmem:[%s0 + $0x328] sm:$0x11]
  %v119 = vld [vmem:[%s0 + $0x330] sm:$0x11]
  %v120 = vld [vmem:[%s0 + $0x338] sm:$0x11]
  %v121 = vld [vmem:[%s1] sm:$0xff]
  %v122 = vld [vmem:[%s1 + $0x8] sm:$0xff]
  %v123 = vld [vmem:[%s1 + $0x10] sm:$0xff]
  %v124 = vld [vmem:[%s1 + $0x18] sm:$0xff]
  %v125 = vld [vmem:[%s1 + $0x20] sm:$0xff]
  %v126 = vld [vmem:[%s1 + $0x28] sm:$0xff]
  %v127 = vld [vmem:[%s1 + $0x30] sm:$0xff]
  %v128 = vld [vmem:[%s1 + $0x38] sm:$0xff]
  %v129 = vld [vmem:[%s1 + $0x40] sm:$0xff]
  %v130 = vld [vmem:[%s1 + $0x48] sm:$0xff]
  %v131 = vld [vmem:[%s1 + $0x50] sm:$0xff]
  %v132 = vld [vmem:[%s1 + $0x58] sm:$0xff]
  %v133 = vld [vmem:[%s1 + $0x60] sm:$0xff]
  %v134 = vld [vmem:[%s1 + $0x68] sm:$0xff]
  %v135 = vld [vmem:[%s1 + $0x70] sm:$0xff]
  %v136 = vld [vmem:[%s1 + $0x78] sm:$0xff]
  %v137 = vld [vmem:[%s1 + $0x80] sm:$0xff]
  %v138 = vld [vmem:[%s1 + $0x88] sm:$0xff]
  %v139 = vld [vmem:[%s1 + $0x90] sm:$0xff]
  %v140 = vld [vmem:[%s1 + $0x98] sm:$0xff]
  %v141 = vld [vmem:[%s1 + $0xa0] sm:$0xff]
  %v142 = vld [vmem:[%s1 + $0xa8] sm:$0xff]
  %v143 = vld [vmem:[%s1 + $0xb0] sm:$0xff]
  %v144 = vld [vmem:[%s1 + $0xb8] sm:$0xff]
  %v145 = vld [vmem:[%s1 + $0xc0] sm:$0xff]
  %v146 = vld [vmem:[%s1 + $0xc8] sm:$0xff]
  %v147 = vld [vmem:[%s1 + $0xd0] sm:$0xff]
  %v148 = vld [vmem:[%s1 + $0xd8] sm:$0xff]
  %v149 = vld [vmem:[%s1 + $0xe0] sm:$0xff]
  %v150 = vld [vmem:[%s1 + $0xe8] sm:$0xff]
  %v151 = vld [vmem:[%s1 + $0xf0] sm:$0xff]
  %v152 = vld [vmem:[%s1 + $0xf8] sm:$0xff]
  %v153 = vld [vmem:[%s1 + $0x100] sm:$0xff]
  %v154 = vld [vmem:[%s1 + $0x108] sm:$0xff]
  %v155 = vld [vmem:[%s1 + $0x110] sm:$0xff]
  %v156 = vld [vmem:[%s1 + $0x118] sm:$0xff]
  %v157 = vld [vmem:[%s1 + $0x120] sm:$0xff]
  %v158 = vld [vmem:[%s1 + $0x128] sm:$0xff]
  %v159 = vld [vmem:[%s1 + $0x130] sm:$0xff]
  %v160 = vld [vmem:[%s1 + $0x138] sm:$0xff]
  %v161 = vld [vmem:[%s1 + $0x140] sm:$0xff]
  %v162 = vld [vmem:[%s1 + $0x148] sm:$0xff]
  %v163 = vld [vmem:[%s1 + $0x150] sm:$0xff]
  %v164 = vld [vmem:[%s1 + $0x158] sm:$0xff]
  %v165 = vld [vmem:[%s1 + $0x160] sm:$0xff]
  %v166 = vld [vmem:[%s1 + $0x168] sm:$0xff]
  %v167 = vld [vmem:[%s1 + $0x170] sm:$0xff]
  %v168 = vld [vmem:[%s1 + $0x178] sm:$0xff]
  %v169 = vld [vmem:[%s1 + $0x180] sm:$0xff]
  %v170 = vld [vmem:[%s1 + $0x188] sm:$0xff]
  %v171 = vld [vmem:[%s1 + $0x190] sm:$0xff]
  %v172 = vld [vmem:[%s1 + $0x198] sm:$0xff]
  %v173 = vld [vmem:[%s1 + $0x1a0] sm:$0xff]
  %v174 = vld [vmem:[%s1 + $0x1a8] sm:$0xff]
  %v175 = vld [vmem:[%s1 + $0x1b0] sm:$0xff]
  %v176 = vld [vmem:[%s1 + $0x1b8] sm:$0xff]
  %v177 = vld [vmem:[%s1 + $0x1c0] sm:$0xff]
  %v178 = vld [vmem:[%s1 + $0x1c8] sm:$0xff]
  %v179 = vld [vmem:[%s1 + $0x1d0] sm:$0xff]
  %v180 = vld [vmem:[%s1 + $0x1d8] sm:$0xff]
  %v181 = vld [vmem:[%s1 + $0x1e0] sm:$0xff]
  %v182 = vld [vmem:[%s1 + $0x1e8] sm:$0xff]
  %v183 = vld [vmem:[%s1 + $0x1f0] sm:$0xff]
  %v184 = vld [vmem:[%s1 + $0x1f8] sm:$0xff]
  %v185 = vld [vmem:[%s1 + $0x200] sm:$0xff]
  %v186 = vld [vmem:[%s1 + $0x208] sm:$0xff]
  %v187 = vld [vmem:[%s1 + $0x210] sm:$0xff]
  %v188 = vld [vmem:[%s1 + $0x218] sm:$0xff]
  %v189 = vld [vmem:[%s1 + $0x220] sm:$0xff]
  %v190 = vld [vmem:[%s1 + $0x228] sm:$0xff]
  %v191 = vld [vmem:[%s1 + $0x230] sm:$0xff]
  %v192 = vld [vmem:[%s1 + $0x238] sm:$0xff]
  %v193 = vld [vmem:[%s1 + $0x240] sm:$0xff]
  %v194 = vld [vmem:[%s1 + $0x248] sm:$0xff]
  %v195 = vld [vmem:[%s1 + $0x250] sm:$0xff]
  %v196 = vld [vmem:[%s1 + $0x258] sm:$0xff]
  %v197 = vld [vmem:[%s1 + $0x260] sm:$0xff]
  %v198 = vld [vmem:[%s1 + $0x268] sm:$0xff]
  %v199 = vld [vmem:[%s1 + $0x270] sm:$0xff]
  %v200 = vld [vmem:[%s1 + $0x278] sm:$0xff]
  %v201 = vld [vmem:[%s1 + $0x280] sm:$0xff]
  %v202 = vld [vmem:[%s1 + $0x288] sm:$0xff]
  %v203 = vld [vmem:[%s1 + $0x290] sm:$0xff]
  %v204 = vld [vmem:[%s1 + $0x298] sm:$0xff]
  %v205 = vld [vmem:[%s1 + $0x2a0] sm:$0xff]
  %v206 = vld [vmem:[%s1 + $0x2a8] sm:$0xff]
  %v207 = vld [vmem:[%s1 + $0x2b0] sm:$0xff]
  %v208 = vld [vmem:[%s1 + $0x2b8] sm:$0xff]
  %v209 = vld [vmem:[%s1 + $0x2c0] sm:$0xff]
  %v210 = vld [vmem:[%s1 + $0x2c8] sm:$0xff]
  %v211 = vld [vmem:[%s1 + $0x2d0] sm:$0xff]
  %v212 = vld [vmem:[%s1 + $0x2d8] sm:$0xff]
  %v213 = vld [vmem:[%s1 + $0x2e0] sm:$0xff]
  %v214 = vld [vmem:[%s1 + $0x2e8] sm:$0xff]
  %v215 = vld [vmem:[%s1 + $0x2f0] sm:$0xff]
  %v216 = vld [vmem:[%s1 + $0x2f8] sm:$0xff]
  %v217 = vld [vmem:[%s1 + $0x300] sm:$0xff]
  %v218 = vld [vmem:[%s1 + $0x308] sm:$0xff]
  %v219 = vld [vmem:[%s1 + $0x310] sm:$0xff]
  %v220 = vld [vmem:[%s1 + $0x318] sm:$0xff]
  %v221 = vld [vmem:[%s1 + $0x320] sm:$0xff]
  %v222 = vld [vmem:[%s1 + $0x328] sm:$0xff]
  %v223 = vld [vmem:[%s1 + $0x330] sm:$0xff]
  %v224 = vld [vmem:[%s1 + $0x338] sm:$0xff]
  %v225 = vld [vmem:[%s1 + $0x340] sm:$0xff]
  %v226 = vld [vmem:[%s1 + $0x348] sm:$0xff]
  %v227 = vld [vmem:[%s1 + $0x350] sm:$0xff]
  %v228 = vld [vmem:[%s1 + $0x358] sm:$0xff]
  %v229 = vld [vmem:[%s1 + $0x360] sm:$0xff]
  %v230 = vld [vmem:[%s1 + $0x368] sm:$0xff]
  %v231 = vld [vmem:[%s1 + $0x370] sm:$0xff]
  %v232 = vld [vmem:[%s1 + $0x378] sm:$0xff]
  %v233 = vld [vmem:[%s1 + $0x380] sm:$0xff]
  %v234 = vld [vmem:[%s1 + $0x388] sm:$0xff]
  %v235 = vld [vmem:[%s1 + $0x390] sm:$0xff]
  %v236 = vld [vmem:[%s1 + $0x398] sm:$0xff]
  %v237 = vld [vmem:[%s1 + $0x3a0] sm:$0xff]
  %v238 = vld [vmem:[%s1 + $0x3a8] sm:$0xff]
  %v239 = vld [vmem:[%s1 + $0x3b0] sm:$0xff]
  %v240 = vld [vmem:[%s1 + $0x3b8] sm:$0xff]
  %v241 = vld [vmem:[%s1 + $0x3c0] sm:$0xff]
  %v242 = vld [vmem:[%s1 + $0x3c8] sm:$0xff]
  %v243 = vld [vmem:[%s1 + $0x3d0] sm:$0xff]
  %v244 = vld [vmem:[%s1 + $0x3d8] sm:$0xff]
  %v245 = vld [vmem:[%s1 + $0x3e0] sm:$0xff]
  %v246 = vld [vmem:[%s1 + $0x3e8] sm:$0xff]
  %v247 = vld [vmem:[%s1 + $0x3f0] sm:$0xff]
  %v248 = vld [vmem:[%s1 + $0x3f8] sm:$0xff]
  %v249 = vld [vmem:[%s1 + $0x400] sm:$0xff]
  %v250 = vld [vmem:[%s1 + $0x408] sm:$0xff]
  %v251 = vld [vmem:[%s1 + $0x410] sm:$0xff]
  %v252 = vld [vmem:[%s1 + $0x418] sm:$0xff]
  %v253 = vld [vmem:[%s1 + $0x420] sm:$0xff]
  %v254 = vld [vmem:[%s1 + $0x428] sm:$0xff]
  %v255 = vld [vmem:[%s1 + $0x430] sm:$0xff]
  %v256 = vld [vmem:[%s1 + $0x438] sm:$0xff]
  %v257 = vld [vmem:[%s1 + $0x440] sm:$0xff]
  %v258 = vld [vmem:[%s1 + $0x448] sm:$0xff]
  %v259 = vld [vmem:[%s1 + $0x450] sm:$0xff]
  %v260 = vld [vmem:[%s1 + $0x458] sm:$0xff]
  %v261 = vld [vmem:[%s1 + $0x460] sm:$0xff]
  %v262 = vld [vmem:[%s1 + $0x468] sm:$0xff]
  %v263 = vld [vmem:[%s1 + $0x470] sm:$0xff]
  %v264 = vld [vmem:[%s1 + $0x478] sm:$0xff]
  %v265 = vld [vmem:[%s1 + $0x480] sm:$0xff]
  %v266 = vld [vmem:[%s1 + $0x488] sm:$0xff]
  %v267 = vld [vmem:[%s1 + $0x490] sm:$0xff]
  %v268 = vld [vmem:[%s1 + $0x498] sm:$0xff]
  %v269 = vld [vmem:[%s1 + $0x4a0] sm:$0xff]
  %v270 = vld [vmem:[%s1 + $0x4a8] sm:$0xff]
  %v271 = vld [vmem:[%s1 + $0x4b0] sm:$0xff]
  %v272 = vld [vmem:[%s1 + $0x4b8] sm:$0xff]
  %v273 = vld [vmem:[%s1 + $0x4c0] sm:$0xff]
  %v274 = vld [vmem:[%s1 + $0x4c8] sm:$0xff]
  %v275 = vld [vmem:[%s1 + $0x4d0] sm:$0xff]
  %v276 = vld [vmem:[%s1 + $0x4d8] sm:$0xff]
  %v277 = vld [vmem:[%s1 + $0x4e0] sm:$0xff]
  %v278 = vld [vmem:[%s1 + $0x4e8] sm:$0xff]
  %v279 = vld [vmem:[%s1 + $0x4f0] sm:$0xff]
  %v280 = vld [vmem:[%s1 + $0x4f8] sm:$0xff]
  %v281 = vld [vmem:[%s1 + $0x500] sm:$0xff]
  %v282 = vld [vmem:[%s1 + $0x508] sm:$0xff]
  %v283 = vld [vmem:[%s1 + $0x510] sm:$0xff]
  %v284 = vld [vmem:[%s1 + $0x518] sm:$0xff]
  %v285 = vld [vmem:[%s1 + $0x520] sm:$0xff]
  %v286 = vld [vmem:[%s1 + $0x528] sm:$0xff]
  %v287 = vld [vmem:[%s1 + $0x530] sm:$0xff]
  %v288 = vld [vmem:[%s1 + $0x538] sm:$0xff]
  %v289 = vld [vmem:[%s1 + $0x540] sm:$0xff]
  %v290 = vld [vmem:[%s1 + $0x548] sm:$0xff]
  %v291 = vld [vmem:[%s1 + $0x550] sm:$0xff]
  %v292 = vld [vmem:[%s1 + $0x558] sm:$0xff]
  %v293 = vld [vmem:[%s1 + $0x560] sm:$0xff]
  %v294 = vld [vmem:[%s1 + $0x568] sm:$0xff]
  %v295 = vld [vmem:[%s1 + $0x570] sm:$0xff]
  %v296 = vld [vmem:[%s1 + $0x578] sm:$0xff]
  %v297 = vld [vmem:[%s1 + $0x580] sm:$0xff]
  %v298 = vld [vmem:[%s1 + $0x588] sm:$0xff]
  %v299 = vld [vmem:[%s1 + $0x590] sm:$0xff]
  %v300 = vld [vmem:[%s1 + $0x598] sm:$0xff]
  %v301 = vld [vmem:[%s1 + $0x5a0] sm:$0xff]
  %v302 = vld [vmem:[%s1 + $0x5a8] sm:$0xff]
  %v303 = vld [vmem:[%s1 + $0x5b0] sm:$0xff]
  %v304 = vld [vmem:[%s1 + $0x5b8] sm:$0xff]
  %v305 = vld [vmem:[%s1 + $0x5c0] sm:$0xff]
  %v306 = vld [vmem:[%s1 + $0x5c8] sm:$0xff]
  %v307 = vld [vmem:[%s1 + $0x5d0] sm:$0xff]
  %v308 = vld [vmem:[%s1 + $0x5d8] sm:$0xff]
  %v309 = vld [vmem:[%s1 + $0x5e0] sm:$0xff]
  %v310 = vld [vmem:[%s1 + $0x5e8] sm:$0xff]
  %v311 = vld [vmem:[%s1 + $0x5f0] sm:$0xff]
  %v312 = vld [vmem:[%s1 + $0x5f8] sm:$0xff]
  %v313 = vld [vmem:[%s1 + $0x600] sm:$0xff]
  %v314 = vld [vmem:[%s1 + $0x608] sm:$0xff]
  %v315 = vld [vmem:[%s1 + $0x610] sm:$0xff]
  %v316 = vld [vmem:[%s1 + $0x618] sm:$0xff]
  %v317 = vld [vmem:[%s1 + $0x620] sm:$0xff]
  %v318 = vld [vmem:[%s1 + $0x628] sm:$0xff]
  %v319 = vld [vmem:[%s1 + $0x630] sm:$0xff]
  %v320 = vld [vmem:[%s1 + $0x638] sm:$0xff]
  %v321 = vld [vmem:[%s1 + $0x640] sm:$0xff]
  %v322 = vld [vmem:[%s1 + $0x648] sm:$0xff]
  %v323 = vld [vmem:[%s1 + $0x650] sm:$0xff]
  %v324 = vld [vmem:[%s1 + $0x658] sm:$0xff]
  %v325 = vld [vmem:[%s1 + $0x660] sm:$0xff]
  %v326 = vld [vmem:[%s1 + $0x668] sm:$0xff]
  %v327 = vld [vmem:[%s1 + $0x670] sm:$0xff]
  %v328 = vld [vmem:[%s1 + $0x678] sm:$0xff]
  %v329 = vld [vmem:[%s1 + $0x680] sm:$0xff]
  %v330 = vld [vmem:[%s1 + $0x688] sm:$0xff]
  %v331 = vld [vmem:[%s1 + $0x690] sm:$0xff]
  %v332 = vld [vmem:[%s1 + $0x698] sm:$0xff]
  %v333 = vld [vmem:[%s1 + $0x6a0] sm:$0xff]
  %v334 = vld [vmem:[%s1 + $0x6a8] sm:$0xff]
  %v335 = vld [vmem:[%s1 + $0x6b0] sm:$0xff]
  %v336 = vld [vmem:[%s1 + $0x6b8] sm:$0xff]
  %v337 = vld [vmem:[%s1 + $0x6c0] sm:$0xff]
  %v338 = vld [vmem:[%s1 + $0x6c8] sm:$0xff]
  %v339 = vld [vmem:[%s1 + $0x6d0] sm:$0xff]
  %v340 = vld [vmem:[%s1 + $0x6d8] sm:$0xff]
  %v341 = vld [vmem:[%s1 + $0x6e0] sm:$0xff]
  %v342 = vld [vmem:[%s1 + $0x6e8] sm:$0xff]
  %v343 = vld [vmem:[%s1 + $0x6f0] sm:$0xff]
  %v344 = vld [vmem:[%s1 + $0x6f8] sm:$0xff]
  %v345 = vld [vmem:[%s1 + $0x700] sm:$0xff]
  %v346 = vld [vmem:[%s1 + $0x708] sm:$0xff]
  %v347 = vld [vmem:[%s1 + $0x710] sm:$0xff]
  %v348 = vld [vmem:[%s1 + $0x718] sm:$0xff]
  %v349 = vld [vmem:[%s1 + $0x720] sm:$0xff]
  %v350 = vld [vmem:[%s1 + $0x728] sm:$0xff]
  %v351 = vld [vmem:[%s1 + $0x730] sm:$0xff]
  %v352 = vld [vmem:[%s1 + $0x738] sm:$0xff]
  %v353 = vld [vmem:[%s1 + $0x740] sm:$0xff]
  %v354 = vld [vmem:[%s1 + $0x748] sm:$0xff]
  %v355 = vld [vmem:[%s1 + $0x750] sm:$0xff]
  %v356 = vld [vmem:[%s1 + $0x758] sm:$0xff]
  %v357 = vld [vmem:[%s1 + $0x760] sm:$0xff]
  %v358 = vld [vmem:[%s1 + $0x768] sm:$0xff]
  %v359 = vld [vmem:[%s1 + $0x770] sm:$0xff]
  %v360 = vld [vmem:[%s1 + $0x778] sm:$0xff]
  %v361 = vld [vmem:[%s1 + $0x780] sm:$0xff]
  %v362 = vld [vmem:[%s1 + $0x788] sm:$0xff]
  %v363 = vld [vmem:[%s1 + $0x790] sm:$0xff]
  %v364 = vld [vmem:[%s1 + $0x798] sm:$0xff]
  %v365 = vld [vmem:[%s1 + $0x7a0] sm:$0xff]
  %v366 = vld [vmem:[%s1 + $0x7a8] sm:$0xff]
  %v367 = vld [vmem:[%s1 + $0x7b0] sm:$0xff]
  %v368 = vld [vmem:[%s1 + $0x7b8] sm:$0xff]
  %v369 = vld [vmem:[%s1 + $0x7c0] sm:$0xff]
  %v370 = vld [vmem:[%s1 + $0x7c8] sm:$0xff]
  %v371 = vld [vmem:[%s1 + $0x7d0] sm:$0xff]
  %v372 = vld [vmem:[%s1 + $0x7d8] sm:$0xff]
  %v373 = vld [vmem:[%s1 + $0x7e0] sm:$0xff]
  %v374 = vld [vmem:[%s1 + $0x7e8] sm:$0xff]
  %v375 = vld [vmem:[%s1 + $0x7f0] sm:$0xff]
  %v376 = vld [vmem:[%s1 + $0x7f8] sm:$0xff]
  %v377 = vld [vmem:[%s2] sm:$0x3]
  %v379 = vlaneseq
  %v380 = vshrl.u32 %v379, 7
  %v381 = vsub.s32 0, %v380
  %v382 = vrot.slane %v377, %v381
  %v383 = vlaneseq
  %v384 = vshrl.u32 %v383, 7
  %v385 = vsub.s32 1, %v384
  %v386 = vrot.slane %v377, %v385
  %v493 = vunpack.c.l.b16 %v17
  %v494 = vunpack.c.h.b16 %v17
  %v495 = vunpack.c.l.b16 %v18
  %v496 = vunpack.c.h.b16 %v18
  %v497 = vunpack.c.l.b16 %v19
  %v498 = vunpack.c.h.b16 %v19
  %v499 = vunpack.c.l.b16 %v20
  %v500 = vunpack.c.h.b16 %v20
  %v501 = vunpack.c.l.b16 %v21
  %v502 = vunpack.c.h.b16 %v21
  %v503 = vunpack.c.l.b16 %v22
  %v504 = vunpack.c.h.b16 %v22
  %v505 = vunpack.c.l.b16 %v23
  %v506 = vunpack.c.h.b16 %v23
  %v507 = vunpack.c.l.b16 %v24
  %v508 = vunpack.c.h.b16 %v24
  %v509 = vunpack.c.l.b16 %v25
  %v510 = vunpack.c.h.b16 %v25
  %v511 = vunpack.c.l.b16 %v26
  %v512 = vunpack.c.h.b16 %v26
  %v513 = vunpack.c.l.b16 %v27
  %v514 = vunpack.c.h.b16 %v27
  %v515 = vunpack.c.l.b16 %v28
  %v516 = vunpack.c.h.b16 %v28
  %v517 = vunpack.c.l.b16 %v29
  %v518 = vunpack.c.h.b16 %v29
  %v519 = vunpack.c.l.b16 %v30
  %v520 = vunpack.c.h.b16 %v30
  %v521 = vunpack.c.l.b16 %v31
  %v522 = vunpack.c.h.b16 %v31
  %v523 = vunpack.c.l.b16 %v32
  %v524 = vunpack.c.h.b16 %v32
  %v525 = vunpack.c.l.b16 %v33
  %v526 = vunpack.c.h.b16 %v33
  %v527 = vunpack.c.l.b16 %v34
  %v528 = vunpack.c.h.b16 %v34
  %v529 = vunpack.c.l.b16 %v35
  %v530 = vunpack.c.h.b16 %v35
  %v531 = vunpack.c.l.b16 %v36
  %v532 = vunpack.c.h.b16 %v36
  %v533 = vunpack.c.l.b16 %v37
  %v534 = vunpack.c.h.b16 %v37
  %v535 = vunpack.c.l.b16 %v38
  %v536 = vunpack.c.h.b16 %v38
  %v537 = vunpack.c.l.b16 %v39
  %v538 = vunpack.c.h.b16 %v39
  %v539 = vunpack.c.l.b16 %v40
  %v540 = vunpack.c.h.b16 %v40
  %v541 = vunpack.c.l.b16 %v41
  %v542 = vunpack.c.h.b16 %v41
  %v543 = vunpack.c.l.b16 %v42
  %v544 = vunpack.c.h.b16 %v42
  %v545 = vunpack.c.l.b16 %v43
  %v546 = vunpack.c.h.b16 %v43
  %v547 = vunpack.c.l.b16 %v44
  %v548 = vunpack.c.h.b16 %v44
  %v549 = vunpack.c.l.b16 %v45
  %v550 = vunpack.c.h.b16 %v45
  %v551 = vunpack.c.l.b16 %v46
  %v552 = vunpack.c.h.b16 %v46
  %v553 = vunpack.c.l.b16 %v47
  %v554 = vunpack.c.h.b16 %v47
  %v555 = vunpack.c.l.b16 %v48
  %v556 = vunpack.c.h.b16 %v48
  %v557 = vunpack.c.l.b16 %v49
  %v558 = vunpack.c.h.b16 %v49
  %v559 = vunpack.c.l.b16 %v50
  %v560 = vunpack.c.h.b16 %v50
  %v561 = vunpack.c.l.b16 %v51
  %v562 = vunpack.c.h.b16 %v51
  %v563 = vunpack.c.l.b16 %v52
  %v564 = vunpack.c.h.b16 %v52
  %v565 = vunpack.c.l.b16 %v53
  %v566 = vunpack.c.h.b16 %v53
  %v567 = vunpack.c.l.b16 %v54
  %v568 = vunpack.c.h.b16 %v54
  %v569 = vunpack.c.l.b16 %v55
  %v570 = vunpack.c.h.b16 %v55
  %v571 = vunpack.c.l.b16 %v56
  %v572 = vunpack.c.h.b16 %v56
  %v573 = vunpack.c.l.b16 %v57
  %v574 = vunpack.c.h.b16 %v57
  %v575 = vunpack.c.l.b16 %v58
  %v576 = vunpack.c.h.b16 %v58
  %v577 = vunpack.c.l.b16 %v59
  %v578 = vunpack.c.h.b16 %v59
  %v579 = vunpack.c.l.b16 %v60
  %v580 = vunpack.c.h.b16 %v60
  %v581 = vunpack.c.l.b16 %v61
  %v582 = vunpack.c.h.b16 %v61
  %v583 = vunpack.c.l.b16 %v62
  %v584 = vunpack.c.h.b16 %v62
  %v585 = vunpack.c.l.b16 %v63
  %v586 = vunpack.c.h.b16 %v63
  %v587 = vunpack.c.l.b16 %v64
  %v588 = vunpack.c.h.b16 %v64
  %v589 = vunpack.c.l.b16 %v65
  %v590 = vunpack.c.h.b16 %v65
  %v591 = vunpack.c.l.b16 %v66
  %v592 = vunpack.c.h.b16 %v66
  %v593 = vunpack.c.l.b16 %v67
  %v594 = vunpack.c.h.b16 %v67
  %v595 = vunpack.c.l.b16 %v68
  %v596 = vunpack.c.h.b16 %v68
  %v597 = vunpack.c.l.b16 %v69
  %v598 = vunpack.c.h.b16 %v69
  %v599 = vunpack.c.l.b16 %v70
  %v600 = vunpack.c.h.b16 %v70
  %v601 = vunpack.c.l.b16 %v71
  %v602 = vunpack.c.h.b16 %v71
  %v603 = vunpack.c.l.b16 %v72
  %v604 = vunpack.c.h.b16 %v72
  %v605 = vunpack.c.l.b16 %v73
  %v606 = vunpack.c.h.b16 %v73
  %v607 = vunpack.c.l.b16 %v74
  %v608 = vunpack.c.h.b16 %v74
  %v609 = vunpack.c.l.b16 %v75
  %v610 = vunpack.c.h.b16 %v75
  %v611 = vunpack.c.l.b16 %v76
  %v612 = vunpack.c.h.b16 %v76
  %v613 = vunpack.c.l.b16 %v77
  %v614 = vunpack.c.h.b16 %v77
  %v615 = vunpack.c.l.b16 %v78
  %v616 = vunpack.c.h.b16 %v78
  %v617 = vunpack.c.l.b16 %v79
  %v618 = vunpack.c.h.b16 %v79
  %v619 = vunpack.c.l.b16 %v80
  %v620 = vunpack.c.h.b16 %v80
  %v621 = vunpack.c.l.b16 %v81
  %v622 = vunpack.c.h.b16 %v81
  %v623 = vunpack.c.l.b16 %v82
  %v624 = vunpack.c.h.b16 %v82
  %v625 = vunpack.c.l.b16 %v83
  %v626 = vunpack.c.h.b16 %v83
  %v627 = vunpack.c.l.b16 %v84
  %v628 = vunpack.c.h.b16 %v84
  %v629 = vunpack.c.l.b16 %v85
  %v630 = vunpack.c.h.b16 %v85
  %v631 = vunpack.c.l.b16 %v86
  %v632 = vunpack.c.h.b16 %v86
  %v633 = vunpack.c.l.b16 %v87
  %v634 = vunpack.c.h.b16 %v87
  %v635 = vunpack.c.l.b16 %v88
  %v636 = vunpack.c.h.b16 %v88
  %v637 = vunpack.c.l.b16 %v89
  %v638 = vunpack.c.h.b16 %v89
  %v639 = vunpack.c.l.b16 %v90
  %v640 = vunpack.c.h.b16 %v90
  %v641 = vunpack.c.l.b16 %v91
  %v642 = vunpack.c.h.b16 %v91
  %v643 = vunpack.c.l.b16 %v92
  %v644 = vunpack.c.h.b16 %v92
  %v645 = vunpack.c.l.b16 %v93
  %v646 = vunpack.c.h.b16 %v93
  %v647 = vunpack.c.l.b16 %v94
  %v648 = vunpack.c.h.b16 %v94
  %v649 = vunpack.c.l.b16 %v95
  %v650 = vunpack.c.h.b16 %v95
  %v651 = vunpack.c.l.b16 %v96
  %v652 = vunpack.c.h.b16 %v96
  %v653 = vunpack.c.l.b16 %v97
  %v654 = vunpack.c.h.b16 %v97
  %v655 = vunpack.c.l.b16 %v98
  %v656 = vunpack.c.h.b16 %v98
  %v657 = vunpack.c.l.b16 %v99
  %v658 = vunpack.c.h.b16 %v99
  %v659 = vunpack.c.l.b16 %v100
  %v660 = vunpack.c.h.b16 %v100
  %v661 = vunpack.c.l.b16 %v101
  %v662 = vunpack.c.h.b16 %v101
  %v663 = vunpack.c.l.b16 %v102
  %v664 = vunpack.c.h.b16 %v102
  %v665 = vunpack.c.l.b16 %v103
  %v666 = vunpack.c.h.b16 %v103
  %v667 = vunpack.c.l.b16 %v104
  %v668 = vunpack.c.h.b16 %v104
  %v669 = vunpack.c.l.b16 %v105
  %v670 = vunpack.c.h.b16 %v105
  %v671 = vunpack.c.l.b16 %v106
  %v672 = vunpack.c.h.b16 %v106
  %v673 = vunpack.c.l.b16 %v107
  %v674 = vunpack.c.h.b16 %v107
  %v675 = vunpack.c.l.b16 %v108
  %v676 = vunpack.c.h.b16 %v108
  %v677 = vunpack.c.l.b16 %v109
  %v678 = vunpack.c.h.b16 %v109
  %v679 = vunpack.c.l.b16 %v110
  %v680 = vunpack.c.h.b16 %v110
  %v681 = vunpack.c.l.b16 %v111
  %v682 = vunpack.c.h.b16 %v111
  %v683 = vunpack.c.l.b16 %v112
  %v684 = vunpack.c.h.b16 %v112
  %v685 = vunpack.c.l.b16 %v113
  %v686 = vunpack.c.h.b16 %v113
  %v687 = vunpack.c.l.b16 %v114
  %v688 = vunpack.c.h.b16 %v114
  %v689 = vunpack.c.l.b16 %v115
  %v690 = vunpack.c.h.b16 %v115
  %v691 = vunpack.c.l.b16 %v116
  %v692 = vunpack.c.h.b16 %v116
  %v693 = vunpack.c.l.b16 %v117
  %v694 = vunpack.c.h.b16 %v117
  %v695 = vunpack.c.l.b16 %v118
  %v696 = vunpack.c.h.b16 %v118
  %v697 = vunpack.c.l.b16 %v119
  %v698 = vunpack.c.h.b16 %v119
  %v699 = vunpack.c.l.b16 %v120
  %v700 = vunpack.c.h.b16 %v120
  %v701 = vpack.c.b16 %v509, %v493
  %v702 = vpack.c.b16 %v510, %v494
  %v703 = vpack.c.b16 %v511, %v495
  %v704 = vpack.c.b16 %v512, %v496
  %v705 = vpack.c.b16 %v513, %v497
  %v706 = vpack.c.b16 %v514, %v498
  %v707 = vpack.c.b16 %v515, %v499
  %v708 = vpack.c.b16 %v516, %v500
  %v709 = vpack.c.b16 %v517, %v501
  %v710 = vpack.c.b16 %v518, %v502
  %v711 = vpack.c.b16 %v519, %v503
  %v712 = vpack.c.b16 %v520, %v504
  %v713 = vpack.c.b16 %v521, %v505
  %v714 = vpack.c.b16 %v522, %v506
  %v715 = vpack.c.b16 %v523, %v507
  %v716 = vpack.c.b16 %v524, %v508
  %v717 = vpack.c.b16 %v541, %v525
  %v718 = vpack.c.b16 %v542, %v526
  %v719 = vpack.c.b16 %v543, %v527
  %v720 = vpack.c.b16 %v544, %v528
  %v721 = vpack.c.b16 %v545, %v529
  %v722 = vpack.c.b16 %v546, %v530
  %v723 = vpack.c.b16 %v547, %v531
  %v724 = vpack.c.b16 %v548, %v532
  %v725 = vpack.c.b16 %v549, %v533
  %v726 = vpack.c.b16 %v550, %v534
  %v727 = vpack.c.b16 %v551, %v535
  %v728 = vpack.c.b16 %v552, %v536
  %v729 = vpack.c.b16 %v553, %v537
  %v730 = vpack.c.b16 %v554, %v538
  %v731 = vpack.c.b16 %v555, %v539
  %v732 = vpack.c.b16 %v556, %v540
  %v733 = vpack.c.b16 %v573, %v557
  %v734 = vpack.c.b16 %v574, %v558
  %v735 = vpack.c.b16 %v575, %v559
  %v736 = vpack.c.b16 %v576, %v560
  %v737 = vpack.c.b16 %v577, %v561
  %v738 = vpack.c.b16 %v578, %v562
  %v739 = vpack.c.b16 %v579, %v563
  %v740 = vpack.c.b16 %v580, %v564
  %v741 = vpack.c.b16 %v581, %v565
  %v742 = vpack.c.b16 %v582, %v566
  %v743 = vpack.c.b16 %v583, %v567
  %v744 = vpack.c.b16 %v584, %v568
  %v745 = vpack.c.b16 %v585, %v569
  %v746 = vpack.c.b16 %v586, %v570
  %v747 = vpack.c.b16 %v587, %v571
  %v748 = vpack.c.b16 %v588, %v572
  %v749 = vpack.c.b16 %v605, %v589
  %v750 = vpack.c.b16 %v606, %v590
  %v751 = vpack.c.b16 %v607, %v591
  %v752 = vpack.c.b16 %v608, %v592
  %v753 = vpack.c.b16 %v609, %v593
  %v754 = vpack.c.b16 %v610, %v594
  %v755 = vpack.c.b16 %v611, %v595
  %v756 = vpack.c.b16 %v612, %v596
  %v757 = vpack.c.b16 %v613, %v597
  %v758 = vpack.c.b16 %v614, %v598
  %v759 = vpack.c.b16 %v615, %v599
  %v760 = vpack.c.b16 %v616, %v600
  %v761 = vpack.c.b16 %v617, %v601
  %v762 = vpack.c.b16 %v618, %v602
  %v763 = vpack.c.b16 %v619, %v603
  %v764 = vpack.c.b16 %v620, %v604
  %v765 = vpack.c.b16 %v637, %v621
  %v766 = vpack.c.b16 %v638, %v622
  %v767 = vpack.c.b16 %v639, %v623
  %v768 = vpack.c.b16 %v640, %v624
  %v769 = vpack.c.b16 %v641, %v625
  %v770 = vpack.c.b16 %v642, %v626
  %v771 = vpack.c.b16 %v643, %v627
  %v772 = vpack.c.b16 %v644, %v628
  %v773 = vpack.c.b16 %v645, %v629
  %v774 = vpack.c.b16 %v646, %v630
  %v775 = vpack.c.b16 %v647, %v631
  %v776 = vpack.c.b16 %v648, %v632
  %v777 = vpack.c.b16 %v649, %v633
  %v778 = vpack.c.b16 %v650, %v634
  %v779 = vpack.c.b16 %v651, %v635
  %v780 = vpack.c.b16 %v652, %v636
  %v781 = vpack.c.b16 %v669, %v653
  %v782 = vpack.c.b16 %v670, %v654
  %v783 = vpack.c.b16 %v671, %v655
  %v784 = vpack.c.b16 %v672, %v656
  %v785 = vpack.c.b16 %v673, %v657
  %v786 = vpack.c.b16 %v674, %v658
  %v787 = vpack.c.b16 %v675, %v659
  %v788 = vpack.c.b16 %v676, %v660
  %v789 = vpack.c.b16 %v677, %v661
  %v790 = vpack.c.b16 %v678, %v662
  %v791 = vpack.c.b16 %v679, %v663
  %v792 = vpack.c.b16 %v680, %v664
  %v793 = vpack.c.b16 %v681, %v665
  %v794 = vpack.c.b16 %v682, %v666
  %v795 = vpack.c.b16 %v683, %v667
  %v796 = vpack.c.b16 %v684, %v668
  %v797 = vpack.c.b16 %v685, %v685
  %v798 = vpack.c.b16 %v686, %v686
  %v799 = vpack.c.b16 %v687, %v687
  %v800 = vpack.c.b16 %v688, %v688
  %v801 = vpack.c.b16 %v689, %v689
  %v802 = vpack.c.b16 %v690, %v690
  %v803 = vpack.c.b16 %v691, %v691
  %v804 = vpack.c.b16 %v692, %v692
  %v805 = vpack.c.b16 %v693, %v693
  %v806 = vpack.c.b16 %v694, %v694
  %v807 = vpack.c.b16 %v695, %v695
  %v808 = vpack.c.b16 %v696, %v696
  %v809 = vpack.c.b16 %v697, %v697
  %v810 = vpack.c.b16 %v698, %v698
  %v811 = vpack.c.b16 %v699, %v699
  %v812 = vpack.c.b16 %v700, %v700
  %v1181 = vunpack.c.l.b16 %v121
  %v1182 = vunpack.c.h.b16 %v121
  %v1183 = vunpack.c.l.b16 %v122
  %v1184 = vunpack.c.h.b16 %v122
  %v1185 = vunpack.c.l.b16 %v123
  %v1186 = vunpack.c.h.b16 %v123
  %v1187 = vunpack.c.l.b16 %v124
  %v1188 = vunpack.c.h.b16 %v124
  %v1189 = vunpack.c.l.b16 %v125
  %v1190 = vunpack.c.h.b16 %v125
  %v1191 = vunpack.c.l.b16 %v126
  %v1192 = vunpack.c.h.b16 %v126
  %v1193 = vunpack.c.l.b16 %v127
  %v1194 = vunpack.c.h.b16 %v127
  %v1195 = vunpack.c.l.b16 %v128
  %v1196 = vunpack.c.h.b16 %v128
  %v1197 = vunpack.c.l.b16 %v129
  %v1198 = vunpack.c.h.b16 %v129
  %v1199 = vunpack.c.l.b16 %v130
  %v1200 = vunpack.c.h.b16 %v130
  %v1201 = vunpack.c.l.b16 %v131
  %v1202 = vunpack.c.h.b16 %v131
  %v1203 = vunpack.c.l.b16 %v132
  %v1204 = vunpack.c.h.b16 %v132
  %v1205 = vunpack.c.l.b16 %v133
  %v1206 = vunpack.c.h.b16 %v133
  %v1207 = vunpack.c.l.b16 %v134
  %v1208 = vunpack.c.h.b16 %v134
  %v1209 = vunpack.c.l.b16 %v135
  %v1210 = vunpack.c.h.b16 %v135
  %v1211 = vunpack.c.l.b16 %v136
  %v1212 = vunpack.c.h.b16 %v136
  %v1213 = vunpack.c.l.b16 %v137
  %v1214 = vunpack.c.h.b16 %v137
  %v1215 = vunpack.c.l.b16 %v138
  %v1216 = vunpack.c.h.b16 %v138
  %v1217 = vunpack.c.l.b16 %v139
  %v1218 = vunpack.c.h.b16 %v139
  %v1219 = vunpack.c.l.b16 %v140
  %v1220 = vunpack.c.h.b16 %v140
  %v1221 = vunpack.c.l.b16 %v141
  %v1222 = vunpack.c.h.b16 %v141
  %v1223 = vunpack.c.l.b16 %v142
  %v1224 = vunpack.c.h.b16 %v142
  %v1225 = vunpack.c.l.b16 %v143
  %v1226 = vunpack.c.h.b16 %v143
  %v1227 = vunpack.c.l.b16 %v144
  %v1228 = vunpack.c.h.b16 %v144
  %v1229 = vunpack.c.l.b16 %v145
  %v1230 = vunpack.c.h.b16 %v145
  %v1231 = vunpack.c.l.b16 %v146
  %v1232 = vunpack.c.h.b16 %v146
  %v1233 = vunpack.c.l.b16 %v147
  %v1234 = vunpack.c.h.b16 %v147
  %v1235 = vunpack.c.l.b16 %v148
  %v1236 = vunpack.c.h.b16 %v148
  %v1237 = vunpack.c.l.b16 %v149
  %v1238 = vunpack.c.h.b16 %v149
  %v1239 = vunpack.c.l.b16 %v150
  %v1240 = vunpack.c.h.b16 %v150
  %v1241 = vunpack.c.l.b16 %v151
  %v1242 = vunpack.c.h.b16 %v151
  %v1243 = vunpack.c.l.b16 %v152
  %v1244 = vunpack.c.h.b16 %v152
  %v1245 = vunpack.c.l.b16 %v153
  %v1246 = vunpack.c.h.b16 %v153
  %v1247 = vunpack.c.l.b16 %v154
  %v1248 = vunpack.c.h.b16 %v154
  %v1249 = vunpack.c.l.b16 %v155
  %v1250 = vunpack.c.h.b16 %v155
  %v1251 = vunpack.c.l.b16 %v156
  %v1252 = vunpack.c.h.b16 %v156
  %v1253 = vunpack.c.l.b16 %v157
  %v1254 = vunpack.c.h.b16 %v157
  %v1255 = vunpack.c.l.b16 %v158
  %v1256 = vunpack.c.h.b16 %v158
  %v1257 = vunpack.c.l.b16 %v159
  %v1258 = vunpack.c.h.b16 %v159
  %v1259 = vunpack.c.l.b16 %v160
  %v1260 = vunpack.c.h.b16 %v160
  %v1261 = vunpack.c.l.b16 %v161
  %v1262 = vunpack.c.h.b16 %v161
  %v1263 = vunpack.c.l.b16 %v162
  %v1264 = vunpack.c.h.b16 %v162
  %v1265 = vunpack.c.l.b16 %v163
  %v1266 = vunpack.c.h.b16 %v163
  %v1267 = vunpack.c.l.b16 %v164
  %v1268 = vunpack.c.h.b16 %v164
  %v1269 = vunpack.c.l.b16 %v165
  %v1270 = vunpack.c.h.b16 %v165
  %v1271 = vunpack.c.l.b16 %v166
  %v1272 = vunpack.c.h.b16 %v166
  %v1273 = vunpack.c.l.b16 %v167
  %v1274 = vunpack.c.h.b16 %v167
  %v1275 = vunpack.c.l.b16 %v168
  %v1276 = vunpack.c.h.b16 %v168
  %v1277 = vunpack.c.l.b16 %v169
  %v1278 = vunpack.c.h.b16 %v169
  %v1279 = vunpack.c.l.b16 %v170
  %v1280 = vunpack.c.h.b16 %v170
  %v1281 = vunpack.c.l.b16 %v171
  %v1282 = vunpack.c.h.b16 %v171
  %v1283 = vunpack.c.l.b16 %v172
  %v1284 = vunpack.c.h.b16 %v172
  %v1285 = vunpack.c.l.b16 %v173
  %v1286 = vunpack.c.h.b16 %v173
  %v1287 = vunpack.c.l.b16 %v174
  %v1288 = vunpack.c.h.b16 %v174
  %v1289 = vunpack.c.l.b16 %v175
  %v1290 = vunpack.c.h.b16 %v175
  %v1291 = vunpack.c.l.b16 %v176
  %v1292 = vunpack.c.h.b16 %v176
  %v1293 = vunpack.c.l.b16 %v177
  %v1294 = vunpack.c.h.b16 %v177
  %v1295 = vunpack.c.l.b16 %v178
  %v1296 = vunpack.c.h.b16 %v178
  %v1297 = vunpack.c.l.b16 %v179
  %v1298 = vunpack.c.h.b16 %v179
  %v1299 = vunpack.c.l.b16 %v180
  %v1300 = vunpack.c.h.b16 %v180
  %v1301 = vunpack.c.l.b16 %v181
  %v1302 = vunpack.c.h.b16 %v181
  %v1303 = vunpack.c.l.b16 %v182
  %v1304 = vunpack.c.h.b16 %v182
  %v1305 = vunpack.c.l.b16 %v183
  %v1306 = vunpack.c.h.b16 %v183
  %v1307 = vunpack.c.l.b16 %v184
  %v1308 = vunpack.c.h.b16 %v184
  %v1309 = vunpack.c.l.b16 %v185
  %v1310 = vunpack.c.h.b16 %v185
  %v1311 = vunpack.c.l.b16 %v186
  %v1312 = vunpack.c.h.b16 %v186
  %v1313 = vunpack.c.l.b16 %v187
  %v1314 = vunpack.c.h.b16 %v187
  %v1315 = vunpack.c.l.b16 %v188
  %v1316 = vunpack.c.h.b16 %v188
  %v1317 = vunpack.c.l.b16 %v189
  %v1318 = vunpack.c.h.b16 %v189
  %v1319 = vunpack.c.l.b16 %v190
  %v1320 = vunpack.c.h.b16 %v190
  %v1321 = vunpack.c.l.b16 %v191
  %v1322 = vunpack.c.h.b16 %v191
  %v1323 = vunpack.c.l.b16 %v192
  %v1324 = vunpack.c.h.b16 %v192
  %v1325 = vunpack.c.l.b16 %v193
  %v1326 = vunpack.c.h.b16 %v193
  %v1327 = vunpack.c.l.b16 %v194
  %v1328 = vunpack.c.h.b16 %v194
  %v1329 = vunpack.c.l.b16 %v195
  %v1330 = vunpack.c.h.b16 %v195
  %v1331 = vunpack.c.l.b16 %v196
  %v1332 = vunpack.c.h.b16 %v196
  %v1333 = vunpack.c.l.b16 %v197
  %v1334 = vunpack.c.h.b16 %v197
  %v1335 = vunpack.c.l.b16 %v198
  %v1336 = vunpack.c.h.b16 %v198
  %v1337 = vunpack.c.l.b16 %v199
  %v1338 = vunpack.c.h.b16 %v199
  %v1339 = vunpack.c.l.b16 %v200
  %v1340 = vunpack.c.h.b16 %v200
  %v1341 = vunpack.c.l.b16 %v201
  %v1342 = vunpack.c.h.b16 %v201
  %v1343 = vunpack.c.l.b16 %v202
  %v1344 = vunpack.c.h.b16 %v202
  %v1345 = vunpack.c.l.b16 %v203
  %v1346 = vunpack.c.h.b16 %v203
  %v1347 = vunpack.c.l.b16 %v204
  %v1348 = vunpack.c.h.b16 %v204
  %v1349 = vunpack.c.l.b16 %v205
  %v1350 = vunpack.c.h.b16 %v205
  %v1351 = vunpack.c.l.b16 %v206
  %v1352 = vunpack.c.h.b16 %v206
  %v1353 = vunpack.c.l.b16 %v207
  %v1354 = vunpack.c.h.b16 %v207
  %v1355 = vunpack.c.l.b16 %v208
  %v1356 = vunpack.c.h.b16 %v208
  %v1357 = vunpack.c.l.b16 %v209
  %v1358 = vunpack.c.h.b16 %v209
  %v1359 = vunpack.c.l.b16 %v210
  %v1360 = vunpack.c.h.b16 %v210
  %v1361 = vunpack.c.l.b16 %v211
  %v1362 = vunpack.c.h.b16 %v211
  %v1363 = vunpack.c.l.b16 %v212
  %v1364 = vunpack.c.h.b16 %v212
  %v1365 = vunpack.c.l.b16 %v213
  %v1366 = vunpack.c.h.b16 %v213
  %v1367 = vunpack.c.l.b16 %v214
  %v1368 = vunpack.c.h.b16 %v214
  %v1369 = vunpack.c.l.b16 %v215
  %v1370 = vunpack.c.h.b16 %v215
  %v1371 = vunpack.c.l.b16 %v216
  %v1372 = vunpack.c.h.b16 %v216
  %v1373 = vunpack.c.l.b16 %v217
  %v1374 = vunpack.c.h.b16 %v217
  %v1375 = vunpack.c.l.b16 %v218
  %v1376 = vunpack.c.h.b16 %v218
  %v1377 = vunpack.c.l.b16 %v219
  %v1378 = vunpack.c.h.b16 %v219
  %v1379 = vunpack.c.l.b16 %v220
  %v1380 = vunpack.c.h.b16 %v220
  %v1381 = vunpack.c.l.b16 %v221
  %v1382 = vunpack.c.h.b16 %v221
  %v1383 = vunpack.c.l.b16 %v222
  %v1384 = vunpack.c.h.b16 %v222
  %v1385 = vunpack.c.l.b16 %v223
  %v1386 = vunpack.c.h.b16 %v223
  %v1387 = vunpack.c.l.b16 %v224
  %v1388 = vunpack.c.h.b16 %v224
  %v1389 = vunpack.c.l.b16 %v225
  %v1390 = vunpack.c.h.b16 %v225
  %v1391 = vunpack.c.l.b16 %v226
  %v1392 = vunpack.c.h.b16 %v226
  %v1393 = vunpack.c.l.b16 %v227
  %v1394 = vunpack.c.h.b16 %v227
  %v1395 = vunpack.c.l.b16 %v228
  %v1396 = vunpack.c.h.b16 %v228
  %v1397 = vunpack.c.l.b16 %v229
  %v1398 = vunpack.c.h.b16 %v229
  %v1399 = vunpack.c.l.b16 %v230
  %v1400 = vunpack.c.h.b16 %v230
  %v1401 = vunpack.c.l.b16 %v231
  %v1402 = vunpack.c.h.b16 %v231
  %v1403 = vunpack.c.l.b16 %v232
  %v1404 = vunpack.c.h.b16 %v232
  %v1405 = vunpack.c.l.b16 %v233
  %v1406 = vunpack.c.h.b16 %v233
  %v1407 = vunpack.c.l.b16 %v234
  %v1408 = vunpack.c.h.b16 %v234
  %v1409 = vunpack.c.l.b16 %v235
  %v1410 = vunpack.c.h.b16 %v235
  %v1411 = vunpack.c.l.b16 %v236
  %v1412 = vunpack.c.h.b16 %v236
  %v1413 = vunpack.c.l.b16 %v237
  %v1414 = vunpack.c.h.b16 %v237
  %v1415 = vunpack.c.l.b16 %v238
  %v1416 = vunpack.c.h.b16 %v238
  %v1417 = vunpack.c.l.b16 %v239
  %v1418 = vunpack.c.h.b16 %v239
  %v1419 = vunpack.c.l.b16 %v240
  %v1420 = vunpack.c.h.b16 %v240
  %v1421 = vunpack.c.l.b16 %v241
  %v1422 = vunpack.c.h.b16 %v241
  %v1423 = vunpack.c.l.b16 %v242
  %v1424 = vunpack.c.h.b16 %v242
  %v1425 = vunpack.c.l.b16 %v243
  %v1426 = vunpack.c.h.b16 %v243
  %v1427 = vunpack.c.l.b16 %v244
  %v1428 = vunpack.c.h.b16 %v244
  %v1429 = vunpack.c.l.b16 %v245
  %v1430 = vunpack.c.h.b16 %v245
  %v1431 = vunpack.c.l.b16 %v246
  %v1432 = vunpack.c.h.b16 %v246
  %v1433 = vunpack.c.l.b16 %v247
  %v1434 = vunpack.c.h.b16 %v247
  %v1435 = vunpack.c.l.b16 %v248
  %v1436 = vunpack.c.h.b16 %v248
  %v1437 = vunpack.c.l.b16 %v249
  %v1438 = vunpack.c.h.b16 %v249
  %v1439 = vunpack.c.l.b16 %v250
  %v1440 = vunpack.c.h.b16 %v250
  %v1441 = vunpack.c.l.b16 %v251
  %v1442 = vunpack.c.h.b16 %v251
  %v1443 = vunpack.c.l.b16 %v252
  %v1444 = vunpack.c.h.b16 %v252
  %v1445 = vunpack.c.l.b16 %v253
  %v1446 = vunpack.c.h.b16 %v253
  %v1447 = vunpack.c.l.b16 %v254
  %v1448 = vunpack.c.h.b16 %v254
  %v1449 = vunpack.c.l.b16 %v255
  %v1450 = vunpack.c.h.b16 %v255
  %v1451 = vunpack.c.l.b16 %v256
  %v1452 = vunpack.c.h.b16 %v256
  %v1453 = vunpack.c.l.b16 %v257
  %v1454 = vunpack.c.h.b16 %v257
  %v1455 = vunpack.c.l.b16 %v258
  %v1456 = vunpack.c.h.b16 %v258
  %v1457 = vunpack.c.l.b16 %v259
  %v1458 = vunpack.c.h.b16 %v259
  %v1459 = vunpack.c.l.b16 %v260
  %v1460 = vunpack.c.h.b16 %v260
  %v1461 = vunpack.c.l.b16 %v261
  %v1462 = vunpack.c.h.b16 %v261
  %v1463 = vunpack.c.l.b16 %v262
  %v1464 = vunpack.c.h.b16 %v262
  %v1465 = vunpack.c.l.b16 %v263
  %v1466 = vunpack.c.h.b16 %v263
  %v1467 = vunpack.c.l.b16 %v264
  %v1468 = vunpack.c.h.b16 %v264
  %v1469 = vunpack.c.l.b16 %v265
  %v1470 = vunpack.c.h.b16 %v265
  %v1471 = vunpack.c.l.b16 %v266
  %v1472 = vunpack.c.h.b16 %v266
  %v1473 = vunpack.c.l.b16 %v267
  %v1474 = vunpack.c.h.b16 %v267
  %v1475 = vunpack.c.l.b16 %v268
  %v1476 = vunpack.c.h.b16 %v268
  %v1477 = vunpack.c.l.b16 %v269
  %v1478 = vunpack.c.h.b16 %v269
  %v1479 = vunpack.c.l.b16 %v270
  %v1480 = vunpack.c.h.b16 %v270
  %v1481 = vunpack.c.l.b16 %v271
  %v1482 = vunpack.c.h.b16 %v271
  %v1483 = vunpack.c.l.b16 %v272
  %v1484 = vunpack.c.h.b16 %v272
  %v1485 = vunpack.c.l.b16 %v273
  %v1486 = vunpack.c.h.b16 %v273
  %v1487 = vunpack.c.l.b16 %v274
  %v1488 = vunpack.c.h.b16 %v274
  %v1489 = vunpack.c.l.b16 %v275
  %v1490 = vunpack.c.h.b16 %v275
  %v1491 = vunpack.c.l.b16 %v276
  %v1492 = vunpack.c.h.b16 %v276
  %v1493 = vunpack.c.l.b16 %v277
  %v1494 = vunpack.c.h.b16 %v277
  %v1495 = vunpack.c.l.b16 %v278
  %v1496 = vunpack.c.h.b16 %v278
  %v1497 = vunpack.c.l.b16 %v279
  %v1498 = vunpack.c.h.b16 %v279
  %v1499 = vunpack.c.l.b16 %v280
  %v1500 = vunpack.c.h.b16 %v280
  %v1501 = vunpack.c.l.b16 %v281
  %v1502 = vunpack.c.h.b16 %v281
  %v1503 = vunpack.c.l.b16 %v282
  %v1504 = vunpack.c.h.b16 %v282
  %v1505 = vunpack.c.l.b16 %v283
  %v1506 = vunpack.c.h.b16 %v283
  %v1507 = vunpack.c.l.b16 %v284
  %v1508 = vunpack.c.h.b16 %v284
  %v1509 = vunpack.c.l.b16 %v285
  %v1510 = vunpack.c.h.b16 %v285
  %v1511 = vunpack.c.l.b16 %v286
  %v1512 = vunpack.c.h.b16 %v286
  %v1513 = vunpack.c.l.b16 %v287
  %v1514 = vunpack.c.h.b16 %v287
  %v1515 = vunpack.c.l.b16 %v288
  %v1516 = vunpack.c.h.b16 %v288
  %v1517 = vunpack.c.l.b16 %v289
  %v1518 = vunpack.c.h.b16 %v289
  %v1519 = vunpack.c.l.b16 %v290
  %v1520 = vunpack.c.h.b16 %v290
  %v1521 = vunpack.c.l.b16 %v291
  %v1522 = vunpack.c.h.b16 %v291
  %v1523 = vunpack.c.l.b16 %v292
  %v1524 = vunpack.c.h.b16 %v292
  %v1525 = vunpack.c.l.b16 %v293
  %v1526 = vunpack.c.h.b16 %v293
  %v1527 = vunpack.c.l.b16 %v294
  %v1528 = vunpack.c.h.b16 %v294
  %v1529 = vunpack.c.l.b16 %v295
  %v1530 = vunpack.c.h.b16 %v295
  %v1531 = vunpack.c.l.b16 %v296
  %v1532 = vunpack.c.h.b16 %v296
  %v1533 = vunpack.c.l.b16 %v297
  %v1534 = vunpack.c.h.b16 %v297
  %v1535 = vunpack.c.l.b16 %v298
  %v1536 = vunpack.c.h.b16 %v298
  %v1537 = vunpack.c.l.b16 %v299
  %v1538 = vunpack.c.h.b16 %v299
  %v1539 = vunpack.c.l.b16 %v300
  %v1540 = vunpack.c.h.b16 %v300
  %v1541 = vunpack.c.l.b16 %v301
  %v1542 = vunpack.c.h.b16 %v301
  %v1543 = vunpack.c.l.b16 %v302
  %v1544 = vunpack.c.h.b16 %v302
  %v1545 = vunpack.c.l.b16 %v303
  %v1546 = vunpack.c.h.b16 %v303
  %v1547 = vunpack.c.l.b16 %v304
  %v1548 = vunpack.c.h.b16 %v304
  %v1549 = vunpack.c.l.b16 %v305
  %v1550 = vunpack.c.h.b16 %v305
  %v1551 = vunpack.c.l.b16 %v306
  %v1552 = vunpack.c.h.b16 %v306
  %v1553 = vunpack.c.l.b16 %v307
  %v1554 = vunpack.c.h.b16 %v307
  %v1555 = vunpack.c.l.b16 %v308
  %v1556 = vunpack.c.h.b16 %v308
  %v1557 = vunpack.c.l.b16 %v309
  %v1558 = vunpack.c.h.b16 %v309
  %v1559 = vunpack.c.l.b16 %v310
  %v1560 = vunpack.c.h.b16 %v310
  %v1561 = vunpack.c.l.b16 %v311
  %v1562 = vunpack.c.h.b16 %v311
  %v1563 = vunpack.c.l.b16 %v312
  %v1564 = vunpack.c.h.b16 %v312
  %v1565 = vunpack.c.l.b16 %v313
  %v1566 = vunpack.c.h.b16 %v313
  %v1567 = vunpack.c.l.b16 %v314
  %v1568 = vunpack.c.h.b16 %v314
  %v1569 = vunpack.c.l.b16 %v315
  %v1570 = vunpack.c.h.b16 %v315
  %v1571 = vunpack.c.l.b16 %v316
  %v1572 = vunpack.c.h.b16 %v316
  %v1573 = vunpack.c.l.b16 %v317
  %v1574 = vunpack.c.h.b16 %v317
  %v1575 = vunpack.c.l.b16 %v318
  %v1576 = vunpack.c.h.b16 %v318
  %v1577 = vunpack.c.l.b16 %v319
  %v1578 = vunpack.c.h.b16 %v319
  %v1579 = vunpack.c.l.b16 %v320
  %v1580 = vunpack.c.h.b16 %v320
  %v1581 = vunpack.c.l.b16 %v321
  %v1582 = vunpack.c.h.b16 %v321
  %v1583 = vunpack.c.l.b16 %v322
  %v1584 = vunpack.c.h.b16 %v322
  %v1585 = vunpack.c.l.b16 %v323
  %v1586 = vunpack.c.h.b16 %v323
  %v1587 = vunpack.c.l.b16 %v324
  %v1588 = vunpack.c.h.b16 %v324
  %v1589 = vunpack.c.l.b16 %v325
  %v1590 = vunpack.c.h.b16 %v325
  %v1591 = vunpack.c.l.b16 %v326
  %v1592 = vunpack.c.h.b16 %v326
  %v1593 = vunpack.c.l.b16 %v327
  %v1594 = vunpack.c.h.b16 %v327
  %v1595 = vunpack.c.l.b16 %v328
  %v1596 = vunpack.c.h.b16 %v328
  %v1597 = vunpack.c.l.b16 %v329
  %v1598 = vunpack.c.h.b16 %v329
  %v1599 = vunpack.c.l.b16 %v330
  %v1600 = vunpack.c.h.b16 %v330
  %v1601 = vunpack.c.l.b16 %v331
  %v1602 = vunpack.c.h.b16 %v331
  %v1603 = vunpack.c.l.b16 %v332
  %v1604 = vunpack.c.h.b16 %v332
  %v1605 = vunpack.c.l.b16 %v333
  %v1606 = vunpack.c.h.b16 %v333
  %v1607 = vunpack.c.l.b16 %v334
  %v1608 = vunpack.c.h.b16 %v334
  %v1609 = vunpack.c.l.b16 %v335
  %v1610 = vunpack.c.h.b16 %v335
  %v1611 = vunpack.c.l.b16 %v336
  %v1612 = vunpack.c.h.b16 %v336
  %v1613 = vunpack.c.l.b16 %v337
  %v1614 = vunpack.c.h.b16 %v337
  %v1615 = vunpack.c.l.b16 %v338
  %v1616 = vunpack.c.h.b16 %v338
  %v1617 = vunpack.c.l.b16 %v339
  %v1618 = vunpack.c.h.b16 %v339
  %v1619 = vunpack.c.l.b16 %v340
  %v1620 = vunpack.c.h.b16 %v340
  %v1621 = vunpack.c.l.b16 %v341
  %v1622 = vunpack.c.h.b16 %v341
  %v1623 = vunpack.c.l.b16 %v342
  %v1624 = vunpack.c.h.b16 %v342
  %v1625 = vunpack.c.l.b16 %v343
  %v1626 = vunpack.c.h.b16 %v343
  %v1627 = vunpack.c.l.b16 %v344
  %v1628 = vunpack.c.h.b16 %v344
  %v1629 = vunpack.c.l.b16 %v345
  %v1630 = vunpack.c.h.b16 %v345
  %v1631 = vunpack.c.l.b16 %v346
  %v1632 = vunpack.c.h.b16 %v346
  %v1633 = vunpack.c.l.b16 %v347
  %v1634 = vunpack.c.h.b16 %v347
  %v1635 = vunpack.c.l.b16 %v348
  %v1636 = vunpack.c.h.b16 %v348
  %v1637 = vunpack.c.l.b16 %v349
  %v1638 = vunpack.c.h.b16 %v349
  %v1639 = vunpack.c.l.b16 %v350
  %v1640 = vunpack.c.h.b16 %v350
  %v1641 = vunpack.c.l.b16 %v351
  %v1642 = vunpack.c.h.b16 %v351
  %v1643 = vunpack.c.l.b16 %v352
  %v1644 = vunpack.c.h.b16 %v352
  %v1645 = vunpack.c.l.b16 %v353
  %v1646 = vunpack.c.h.b16 %v353
  %v1647 = vunpack.c.l.b16 %v354
  %v1648 = vunpack.c.h.b16 %v354
  %v1649 = vunpack.c.l.b16 %v355
  %v1650 = vunpack.c.h.b16 %v355
  %v1651 = vunpack.c.l.b16 %v356
  %v1652 = vunpack.c.h.b16 %v356
  %v1653 = vunpack.c.l.b16 %v357
  %v1654 = vunpack.c.h.b16 %v357
  %v1655 = vunpack.c.l.b16 %v358
  %v1656 = vunpack.c.h.b16 %v358
  %v1657 = vunpack.c.l.b16 %v359
  %v1658 = vunpack.c.h.b16 %v359
  %v1659 = vunpack.c.l.b16 %v360
  %v1660 = vunpack.c.h.b16 %v360
  %v1661 = vunpack.c.l.b16 %v361
  %v1662 = vunpack.c.h.b16 %v361
  %v1663 = vunpack.c.l.b16 %v362
  %v1664 = vunpack.c.h.b16 %v362
  %v1665 = vunpack.c.l.b16 %v363
  %v1666 = vunpack.c.h.b16 %v363
  %v1667 = vunpack.c.l.b16 %v364
  %v1668 = vunpack.c.h.b16 %v364
  %v1669 = vunpack.c.l.b16 %v365
  %v1670 = vunpack.c.h.b16 %v365
  %v1671 = vunpack.c.l.b16 %v366
  %v1672 = vunpack.c.h.b16 %v366
  %v1673 = vunpack.c.l.b16 %v367
  %v1674 = vunpack.c.h.b16 %v367
  %v1675 = vunpack.c.l.b16 %v368
  %v1676 = vunpack.c.h.b16 %v368
  %v1677 = vunpack.c.l.b16 %v369
  %v1678 = vunpack.c.h.b16 %v369
  %v1679 = vunpack.c.l.b16 %v370
  %v1680 = vunpack.c.h.b16 %v370
  %v1681 = vunpack.c.l.b16 %v371
  %v1682 = vunpack.c.h.b16 %v371
  %v1683 = vunpack.c.l.b16 %v372
  %v1684 = vunpack.c.h.b16 %v372
  %v1685 = vunpack.c.l.b16 %v373
  %v1686 = vunpack.c.h.b16 %v373
  %v1687 = vunpack.c.l.b16 %v374
  %v1688 = vunpack.c.h.b16 %v374
  %v1689 = vunpack.c.l.b16 %v375
  %v1690 = vunpack.c.h.b16 %v375
  %v1691 = vunpack.c.l.b16 %v376
  %v1692 = vunpack.c.h.b16 %v376
  %v1693 = vpack.c.b16 %v1183, %v1181
  %v1694 = vpack.c.b16 %v1184, %v1182
  %v1695 = vpack.c.b16 %v1187, %v1185
  %v1696 = vpack.c.b16 %v1188, %v1186
  %v1697 = vpack.c.b16 %v1191, %v1189
  %v1698 = vpack.c.b16 %v1192, %v1190
  %v1699 = vpack.c.b16 %v1195, %v1193
  %v1700 = vpack.c.b16 %v1196, %v1194
  %v1701 = vpack.c.b16 %v1199, %v1197
  %v1702 = vpack.c.b16 %v1200, %v1198
  %v1703 = vpack.c.b16 %v1203, %v1201
  %v1704 = vpack.c.b16 %v1204, %v1202
  %v1705 = vpack.c.b16 %v1207, %v1205
  %v1706 = vpack.c.b16 %v1208, %v1206
  %v1707 = vpack.c.b16 %v1211, %v1209
  %v1708 = vpack.c.b16 %v1212, %v1210
  %v1709 = vpack.c.b16 %v1215, %v1213
  %v1710 = vpack.c.b16 %v1216, %v1214
  %v1711 = vpack.c.b16 %v1219, %v1217
  %v1712 = vpack.c.b16 %v1220, %v1218
  %v1713 = vpack.c.b16 %v1223, %v1221
  %v1714 = vpack.c.b16 %v1224, %v1222
  %v1715 = vpack.c.b16 %v1227, %v1225
  %v1716 = vpack.c.b16 %v1228, %v1226
  %v1717 = vpack.c.b16 %v1231, %v1229
  %v1718 = vpack.c.b16 %v1232, %v1230
  %v1719 = vpack.c.b16 %v1235, %v1233
  %v1720 = vpack.c.b16 %v1236, %v1234
  %v1721 = vpack.c.b16 %v1239, %v1237
  %v1722 = vpack.c.b16 %v1240, %v1238
  %v1723 = vpack.c.b16 %v1243, %v1241
  %v1724 = vpack.c.b16 %v1244, %v1242
  %v1725 = vpack.c.b16 %v1247, %v1245
  %v1726 = vpack.c.b16 %v1248, %v1246
  %v1727 = vpack.c.b16 %v1251, %v1249
  %v1728 = vpack.c.b16 %v1252, %v1250
  %v1729 = vpack.c.b16 %v1255, %v1253
  %v1730 = vpack.c.b16 %v1256, %v1254
  %v1731 = vpack.c.b16 %v1259, %v1257
  %v1732 = vpack.c.b16 %v1260, %v1258
  %v1733 = vpack.c.b16 %v1263, %v1261
  %v1734 = vpack.c.b16 %v1264, %v1262
  %v1735 = vpack.c.b16 %v1267, %v1265
  %v1736 = vpack.c.b16 %v1268, %v1266
  %v1737 = vpack.c.b16 %v1271, %v1269
  %v1738 = vpack.c.b16 %v1272, %v1270
  %v1739 = vpack.c.b16 %v1275, %v1273
  %v1740 = vpack.c.b16 %v1276, %v1274
  %v1741 = vpack.c.b16 %v1279, %v1277
  %v1742 = vpack.c.b16 %v1280, %v1278
  %v1743 = vpack.c.b16 %v1283, %v1281
  %v1744 = vpack.c.b16 %v1284, %v1282
  %v1745 = vpack.c.b16 %v1287, %v1285
  %v1746 = vpack.c.b16 %v1288, %v1286
  %v1747 = vpack.c.b16 %v1291, %v1289
  %v1748 = vpack.c.b16 %v1292, %v1290
  %v1749 = vpack.c.b16 %v1295, %v1293
  %v1750 = vpack.c.b16 %v1296, %v1294
  %v1751 = vpack.c.b16 %v1299, %v1297
  %v1752 = vpack.c.b16 %v1300, %v1298
  %v1753 = vpack.c.b16 %v1303, %v1301
  %v1754 = vpack.c.b16 %v1304, %v1302
  %v1755 = vpack.c.b16 %v1307, %v1305
  %v1756 = vpack.c.b16 %v1308, %v1306
  %v1757 = vpack.c.b16 %v1311, %v1309
  %v1758 = vpack.c.b16 %v1312, %v1310
  %v1759 = vpack.c.b16 %v1315, %v1313
  %v1760 = vpack.c.b16 %v1316, %v1314
  %v1761 = vpack.c.b16 %v1319, %v1317
  %v1762 = vpack.c.b16 %v1320, %v1318
  %v1763 = vpack.c.b16 %v1323, %v1321
  %v1764 = vpack.c.b16 %v1324, %v1322
  %v1765 = vpack.c.b16 %v1327, %v1325
  %v1766 = vpack.c.b16 %v1328, %v1326
  %v1767 = vpack.c.b16 %v1331, %v1329
  %v1768 = vpack.c.b16 %v1332, %v1330
  %v1769 = vpack.c.b16 %v1335, %v1333
  %v1770 = vpack.c.b16 %v1336, %v1334
  %v1771 = vpack.c.b16 %v1339, %v1337
  %v1772 = vpack.c.b16 %v1340, %v1338
  %v1773 = vpack.c.b16 %v1343, %v1341
  %v1774 = vpack.c.b16 %v1344, %v1342
  %v1775 = vpack.c.b16 %v1347, %v1345
  %v1776 = vpack.c.b16 %v1348, %v1346
  %v1777 = vpack.c.b16 %v1351, %v1349
  %v1778 = vpack.c.b16 %v1352, %v1350
  %v1779 = vpack.c.b16 %v1355, %v1353
  %v1780 = vpack.c.b16 %v1356, %v1354
  %v1781 = vpack.c.b16 %v1359, %v1357
  %v1782 = vpack.c.b16 %v1360, %v1358
  %v1783 = vpack.c.b16 %v1363, %v1361
  %v1784 = vpack.c.b16 %v1364, %v1362
  %v1785 = vpack.c.b16 %v1367, %v1365
  %v1786 = vpack.c.b16 %v1368, %v1366
  %v1787 = vpack.c.b16 %v1371, %v1369
  %v1788 = vpack.c.b16 %v1372, %v1370
  %v1789 = vpack.c.b16 %v1375, %v1373
  %v1790 = vpack.c.b16 %v1376, %v1374
  %v1791 = vpack.c.b16 %v1379, %v1377
  %v1792 = vpack.c.b16 %v1380, %v1378
  %v1793 = vpack.c.b16 %v1383, %v1381
  %v1794 = vpack.c.b16 %v1384, %v1382
  %v1795 = vpack.c.b16 %v1387, %v1385
  %v1796 = vpack.c.b16 %v1388, %v1386
  %v1797 = vpack.c.b16 %v1391, %v1389
  %v1798 = vpack.c.b16 %v1392, %v1390
  %v1799 = vpack.c.b16 %v1395, %v1393
  %v1800 = vpack.c.b16 %v1396, %v1394
  %v1801 = vpack.c.b16 %v1399, %v1397
  %v1802 = vpack.c.b16 %v1400, %v1398
  %v1803 = vpack.c.b16 %v1403, %v1401
  %v1804 = vpack.c.b16 %v1404, %v1402
  %v1805 = vpack.c.b16 %v1407, %v1405
  %v1806 = vpack.c.b16 %v1408, %v1406
  %v1807 = vpack.c.b16 %v1411, %v1409
  %v1808 = vpack.c.b16 %v1412, %v1410
  %v1809 = vpack.c.b16 %v1415, %v1413
  %v1810 = vpack.c.b16 %v1416, %v1414
  %v1811 = vpack.c.b16 %v1419, %v1417
  %v1812 = vpack.c.b16 %v1420, %v1418
  %v1813 = vpack.c.b16 %v1423, %v1421
  %v1814 = vpack.c.b16 %v1424, %v1422
  %v1815 = vpack.c.b16 %v1427, %v1425
  %v1816 = vpack.c.b16 %v1428, %v1426
  %v1817 = vpack.c.b16 %v1431, %v1429
  %v1818 = vpack.c.b16 %v1432, %v1430
  %v1819 = vpack.c.b16 %v1435, %v1433
  %v1820 = vpack.c.b16 %v1436, %v1434
  %v1821 = vpack.c.b16 %v1439, %v1437
  %v1822 = vpack.c.b16 %v1440, %v1438
  %v1823 = vpack.c.b16 %v1443, %v1441
  %v1824 = vpack.c.b16 %v1444, %v1442
  %v1825 = vpack.c.b16 %v1447, %v1445
  %v1826 = vpack.c.b16 %v1448, %v1446
  %v1827 = vpack.c.b16 %v1451, %v1449
  %v1828 = vpack.c.b16 %v1452, %v1450
  %v1829 = vpack.c.b16 %v1455, %v1453
  %v1830 = vpack.c.b16 %v1456, %v1454
  %v1831 = vpack.c.b16 %v1459, %v1457
  %v1832 = vpack.c.b16 %v1460, %v1458
  %v1833 = vpack.c.b16 %v1463, %v1461
  %v1834 = vpack.c.b16 %v1464, %v1462
  %v1835 = vpack.c.b16 %v1467, %v1465
  %v1836 = vpack.c.b16 %v1468, %v1466
  %v1837 = vpack.c.b16 %v1471, %v1469
  %v1838 = vpack.c.b16 %v1472, %v1470
  %v1839 = vpack.c.b16 %v1475, %v1473
  %v1840 = vpack.c.b16 %v1476, %v1474
  %v1841 = vpack.c.b16 %v1479, %v1477
  %v1842 = vpack.c.b16 %v1480, %v1478
  %v1843 = vpack.c.b16 %v1483, %v1481
  %v1844 = vpack.c.b16 %v1484, %v1482
  %v1845 = vpack.c.b16 %v1487, %v1485
  %v1846 = vpack.c.b16 %v1488, %v1486
  %v1847 = vpack.c.b16 %v1491, %v1489
  %v1848 = vpack.c.b16 %v1492, %v1490
  %v1849 = vpack.c.b16 %v1495, %v1493
  %v1850 = vpack.c.b16 %v1496, %v1494
  %v1851 = vpack.c.b16 %v1499, %v1497
  %v1852 = vpack.c.b16 %v1500, %v1498
  %v1853 = vpack.c.b16 %v1503, %v1501
  %v1854 = vpack.c.b16 %v1504, %v1502
  %v1855 = vpack.c.b16 %v1507, %v1505
  %v1856 = vpack.c.b16 %v1508, %v1506
  %v1857 = vpack.c.b16 %v1511, %v1509
  %v1858 = vpack.c.b16 %v1512, %v1510
  %v1859 = vpack.c.b16 %v1515, %v1513
  %v1860 = vpack.c.b16 %v1516, %v1514
  %v1861 = vpack.c.b16 %v1519, %v1517
  %v1862 = vpack.c.b16 %v1520, %v1518
  %v1863 = vpack.c.b16 %v1523, %v1521
  %v1864 = vpack.c.b16 %v1524, %v1522
  %v1865 = vpack.c.b16 %v1527, %v1525
  %v1866 = vpack.c.b16 %v1528, %v1526
  %v1867 = vpack.c.b16 %v1531, %v1529
  %v1868 = vpack.c.b16 %v1532, %v1530
  %v1869 = vpack.c.b16 %v1535, %v1533
  %v1870 = vpack.c.b16 %v1536, %v1534
  %v1871 = vpack.c.b16 %v1539, %v1537
  %v1872 = vpack.c.b16 %v1540, %v1538
  %v1873 = vpack.c.b16 %v1543, %v1541
  %v1874 = vpack.c.b16 %v1544, %v1542
  %v1875 = vpack.c.b16 %v1547, %v1545
  %v1876 = vpack.c.b16 %v1548, %v1546
  %v1877 = vpack.c.b16 %v1551, %v1549
  %v1878 = vpack.c.b16 %v1552, %v1550
  %v1879 = vpack.c.b16 %v1555, %v1553
  %v1880 = vpack.c.b16 %v1556, %v1554
  %v1881 = vpack.c.b16 %v1559, %v1557
  %v1882 = vpack.c.b16 %v1560, %v1558
  %v1883 = vpack.c.b16 %v1563, %v1561
  %v1884 = vpack.c.b16 %v1564, %v1562
  %v1885 = vpack.c.b16 %v1567, %v1565
  %v1886 = vpack.c.b16 %v1568, %v1566
  %v1887 = vpack.c.b16 %v1571, %v1569
  %v1888 = vpack.c.b16 %v1572, %v1570
  %v1889 = vpack.c.b16 %v1575, %v1573
  %v1890 = vpack.c.b16 %v1576, %v1574
  %v1891 = vpack.c.b16 %v1579, %v1577
  %v1892 = vpack.c.b16 %v1580, %v1578
  %v1893 = vpack.c.b16 %v1583, %v1581
  %v1894 = vpack.c.b16 %v1584, %v1582
  %v1895 = vpack.c.b16 %v1587, %v1585
  %v1896 = vpack.c.b16 %v1588, %v1586
  %v1897 = vpack.c.b16 %v1591, %v1589
  %v1898 = vpack.c.b16 %v1592, %v1590
  %v1899 = vpack.c.b16 %v1595, %v1593
  %v1900 = vpack.c.b16 %v1596, %v1594
  %v1901 = vpack.c.b16 %v1599, %v1597
  %v1902 = vpack.c.b16 %v1600, %v1598
  %v1903 = vpack.c.b16 %v1603, %v1601
  %v1904 = vpack.c.b16 %v1604, %v1602
  %v1905 = vpack.c.b16 %v1607, %v1605
  %v1906 = vpack.c.b16 %v1608, %v1606
  %v1907 = vpack.c.b16 %v1611, %v1609
  %v1908 = vpack.c.b16 %v1612, %v1610
  %v1909 = vpack.c.b16 %v1615, %v1613
  %v1910 = vpack.c.b16 %v1616, %v1614
  %v1911 = vpack.c.b16 %v1619, %v1617
  %v1912 = vpack.c.b16 %v1620, %v1618
  %v1913 = vpack.c.b16 %v1623, %v1621
  %v1914 = vpack.c.b16 %v1624, %v1622
  %v1915 = vpack.c.b16 %v1627, %v1625
  %v1916 = vpack.c.b16 %v1628, %v1626
  %v1917 = vpack.c.b16 %v1631, %v1629
  %v1918 = vpack.c.b16 %v1632, %v1630
  %v1919 = vpack.c.b16 %v1635, %v1633
  %v1920 = vpack.c.b16 %v1636, %v1634
  %v1921 = vpack.c.b16 %v1639, %v1637
  %v1922 = vpack.c.b16 %v1640, %v1638
  %v1923 = vpack.c.b16 %v1643, %v1641
  %v1924 = vpack.c.b16 %v1644, %v1642
  %v1925 = vpack.c.b16 %v1647, %v1645
  %v1926 = vpack.c.b16 %v1648, %v1646
  %v1927 = vpack.c.b16 %v1651, %v1649
  %v1928 = vpack.c.b16 %v1652, %v1650
  %v1929 = vpack.c.b16 %v1655, %v1653
  %v1930 = vpack.c.b16 %v1656, %v1654
  %v1931 = vpack.c.b16 %v1659, %v1657
  %v1932 = vpack.c.b16 %v1660, %v1658
  %v1933 = vpack.c.b16 %v1663, %v1661
  %v1934 = vpack.c.b16 %v1664, %v1662
  %v1935 = vpack.c.b16 %v1667, %v1665
  %v1936 = vpack.c.b16 %v1668, %v1666
  %v1937 = vpack.c.b16 %v1671, %v1669
  %v1938 = vpack.c.b16 %v1672, %v1670
  %v1939 = vpack.c.b16 %v1675, %v1673
  %v1940 = vpack.c.b16 %v1676, %v1674
  %v1941 = vpack.c.b16 %v1679, %v1677
  %v1942 = vpack.c.b16 %v1680, %v1678
  %v1943 = vpack.c.b16 %v1683, %v1681
  %v1944 = vpack.c.b16 %v1684, %v1682
  %v1945 = vpack.c.b16 %v1687, %v1685
  %v1946 = vpack.c.b16 %v1688, %v1686
  %v1947 = vpack.c.b16 %v1691, %v1689
  %v1948 = vpack.c.b16 %v1692, %v1690
  %2205 = vmatprep.subr.bf16.mxu0 %v1694
  %2206 = vmatpush1.bf16.msra.mxu0 %v1693
  %2207 = vmatprep.subr.bf16.mxu0 %v1696
  %2208 = vmatpush1.bf16.msra.mxu0 %v1695
  %2209 = vmatprep.subr.bf16.mxu0 %v1698
  %2210 = vmatpush1.bf16.msra.mxu0 %v1697
  %2211 = vmatprep.subr.bf16.mxu0 %v1700
  %2212 = vmatpush1.bf16.msra.mxu0 %v1699
  %2213 = vmatprep.subr.bf16.mxu0 %v1702
  %2214 = vmatpush1.bf16.msra.mxu0 %v1701
  %2215 = vmatprep.subr.bf16.mxu0 %v1704
  %2216 = vmatpush1.bf16.msra.mxu0 %v1703
  %2217 = vmatprep.subr.bf16.mxu0 %v1706
  %2218 = vmatpush1.bf16.msra.mxu0 %v1705
  %2219 = vmatprep.subr.bf16.mxu0 %v1708
  %2220 = vmatpush1.bf16.msra.mxu0 %v1707
  %2221 = vmatprep.subr.bf16.mxu0 %v1710
  %2222 = vmatpush1.bf16.msra.mxu0 %v1709
  %2223 = vmatprep.subr.bf16.mxu0 %v1712
  %2224 = vmatpush1.bf16.msra.mxu0 %v1711
  %2225 = vmatprep.subr.bf16.mxu0 %v1714
  %2226 = vmatpush1.bf16.msra.mxu0 %v1713
  %2227 = vmatprep.subr.bf16.mxu0 %v1716
  %2228 = vmatpush1.bf16.msra.mxu0 %v1715
  %2229 = vmatprep.subr.bf16.mxu0 %v1718
  %2230 = vmatpush1.bf16.msra.mxu0 %v1717
  %2231 = vmatprep.subr.bf16.mxu0 %v1720
  %2232 = vmatpush1.bf16.msra.mxu0 %v1719
  %2233 = vmatprep.subr.bf16.mxu0 %v1722
  %2234 = vmatpush1.bf16.msra.mxu0 %v1721
  %2235 = vmatprep.subr.bf16.mxu0 %v1724
  %2236 = vmatpush1.bf16.msra.mxu0 %v1723
  %2237 = vmatprep.mubr.bf16.mxu0 %v702
  %2238 = vmatmul.mubr.bf16.gmra.mrb[0].mxu0 %v701
  %v2239 = vpop.f32.mrb[0].mxu0
  %v2240 = vadd.f32 %v382, %v2239
  %v2241 = vpop.f32.mrb[0].mxu0
  %v2242 = vadd.f32 %v386, %v2241
  %v2243 = vpop.f32.mrb[0].mxu0
  %v2244 = vadd.f32 %v382, %v2243
  %v2245 = vpop.f32.mrb[0].mxu0
  %v2246 = vadd.f32 %v386, %v2245
  %2247 = vmatprep.mubr.bf16.mxu0 %v718
  %2248 = vmatmul.mubr.bf16.gmra.mrb[0].mxu0 %v717
  %v2249 = vpop.f32.mrb[0].mxu0
  %v2250 = vadd.f32 %v382, %v2249
  %v2251 = vpop.f32.mrb[0].mxu0
  %v2252 = vadd.f32 %v386, %v2251
  %v2253 = vpop.f32.mrb[0].mxu0
  %v2254 = vadd.f32 %v382, %v2253
  %v2255 = vpop.f32.mrb[0].mxu0
  %v2256 = vadd.f32 %v386, %v2255
  %2257 = vmatprep.mubr.bf16.mxu0 %v734
  %2258 = vmatmul.mubr.bf16.gmra.mrb[0].mxu0 %v733
  %v2259 = vpop.f32.mrb[0].mxu0
  %v2260 = vadd.f32 %v382, %v2259
  %v2261 = vpop.f32.mrb[0].mxu0
  %v2262 = vadd.f32 %v386, %v2261
  %v2263 = vpop.f32.mrb[0].mxu0
  %v2264 = vadd.f32 %v382, %v2263
  %v2265 = vpop.f32.mrb[0].mxu0
  %v2266 = vadd.f32 %v386, %v2265
  %2267 = vmatprep.mubr.bf16.mxu0 %v750
  %2268 = vmatmul.mubr.bf16.gmra.mrb[0].mxu0 %v749
  %v2269 = vpop.f32.mrb[0].mxu0
  %v2270 = vadd.f32 %v382, %v2269
  %v2271 = vpop.f32.mrb[0].mxu0
  %v2272 = vadd.f32 %v386, %v2271
  %v2273 = vpop.f32.mrb[0].mxu0
  %v2274 = vadd.f32 %v382, %v2273
  %v2275 = vpop.f32.mrb[0].mxu0
  %v2276 = vadd.f32 %v386, %v2275
  %2277 = vmatprep.mubr.bf16.mxu0 %v766
  %2278 = vmatmul.mubr.bf16.gmra.mrb[0].mxu0 %v765
  %v2279 = vpop.f32.mrb[0].mxu0
  %v2280 = vadd.f32 %v382, %v2279
  %v2281 = vpop.f32.mrb[0].mxu0
  %v2282 = vadd.f32 %v386, %v2281
  %v2283 = vpop.f32.mrb[0].mxu0
  %v2284 = vadd.f32 %v382, %v2283
  %v2285 = vpop.f32.mrb[0].mxu0
  %v2286 = vadd.f32 %v386, %v2285
  %2287 = vmatprep.mubr.bf16.mxu0 %v782
  %2288 = vmatmul.mubr.bf16.gmra.mrb[0].mxu0 %v781
  %v2289 = vpop.f32.mrb[0].mxu0
  %v2290 = vadd.f32 %v382, %v2289
  %v2291 = vpop.f32.mrb[0].mxu0
  %v2292 = vadd.f32 %v386, %v2291
  %v2293 = vpop.f32.mrb[0].mxu0
  %v2294 = vadd.f32 %v382, %v2293
  %v2295 = vpop.f32.mrb[0].mxu0
  %v2296 = vadd.f32 %v386, %v2295
  %2297 = vmatprep.mubr.bf16.mxu0 %v798
  %2298 = vmatmul.mubr.bf16.gmra.mrb[0].mxu0 %v797
  %v2299 = vpop.f32.mrb[0].mxu0
  %v2300 = vadd.f32 %v382, %v2299
  %v2301 = vpop.f32.mrb[0].mxu0
  %v2302 = vadd.f32 %v386, %v2301
  %v2303 = vpop.f32.mrb[0].mxu0
  %v2304 = vpop.f32.mrb[0].mxu0
  %2305 = vdwg.mxu0
  %2306 = vmatprep.subr.bf16.mxu0 %v1726
  %2307 = vmatpush1.bf16.msra.mxu0 %v1725
  %2308 = vmatprep.subr.bf16.mxu0 %v1728
  %2309 = vmatpush1.bf16.msra.mxu0 %v1727
  %2310 = vmatprep.subr.bf16.mxu0 %v1730
  %2311 = vmatpush1.bf16.msra.mxu0 %v1729
  %2312 = vmatprep.subr.bf16.mxu0 %v1732
  %2313 = vmatpush1.bf16.msra.mxu0 %v1731
  %2314 = vmatprep.subr.bf16.mxu0 %v1734
  %2315 = vmatpush1.bf16.msra.mxu0 %v1733
  %2316 = vmatprep.subr.bf16.mxu0 %v1736
  %2317 = vmatpush1.bf16.msra.mxu0 %v1735
  %2318 = vmatprep.subr.bf16.mxu0 %v1738
  %2319 = vmatpush1.bf16.msra.mxu0 %v1737
  %2320 = vmatprep.subr.bf16.mxu0 %v1740
  %2321 = vmatpush1.bf16.msra.mxu0 %v1739
  %2322 = vmatprep.subr.bf16.mxu0 %v1742
  %2323 = vmatpush1.bf16.msra.mxu0 %v1741
  %2324 = vmatprep.subr.bf16.mxu0 %v1744
  %2325 = vmatpush1.bf16.msra.mxu0 %v1743
  %2326 = vmatprep.subr.bf16.mxu0 %v1746
  %2327 = vmatpush1.bf16.msra.mxu0 %v1745
  %2328 = vmatprep.subr.bf16.mxu0 %v1748
  %2329 = vmatpush1.bf16.msra.mxu0 %v1747
  %2330 = vmatprep.subr.bf16.mxu0 %v1750
  %2331 = vmatpush1.bf16.msra.mxu0 %v1749
  %2332 = vmatprep.subr.bf16.mxu0 %v1752
  %2333 = vmatpush1.bf16.msra.mxu0 %v1751
  %2334 = vmatprep.subr.bf16.mxu0 %v1754
  %2335 = vmatpush1.bf16.msra.mxu0 %v1753
  %2336 = vmatprep.subr.bf16.mxu0 %v1756
  %2337 = vmatpush1.bf16.msra.mxu0 %v1755
  %2338 = vmatprep.mubr.bf16.mxu0 %v704
  %2339 = vmatmul.mubr.bf16.gmra.mrb[0].mxu0 %v703
  %v2340 = vpop.f32.mrb[0].mxu0
  %v2341 = vadd.f32 %v2240, %v2340
  %v2342 = vpop.f32.mrb[0].mxu0
  %v2343 = vadd.f32 %v2242, %v2342
  %v2344 = vpop.f32.mrb[0].mxu0
  %v2345 = vadd.f32 %v2244, %v2344
  %v2346 = vpop.f32.mrb[0].mxu0
  %v2347 = vadd.f32 %v2246, %v2346
  %2348 = vmatprep.mubr.bf16.mxu0 %v720
  %2349 = vmatmul.mubr.bf16.gmra.mrb[0].mxu0 %v719
  %v2350 = vpop.f32.mrb[0].mxu0
  %v2351 = vadd.f32 %v2250, %v2350
  %v2352 = vpop.f32.mrb[0].mxu0
  %v2353 = vadd.f32 %v2252, %v2352
  %v2354 = vpop.f32.mrb[0].mxu0
  %v2355 = vadd.f32 %v2254, %v2354
  %v2356 = vpop.f32.mrb[0].mxu0
  %v2357 = vadd.f32 %v2256, %v2356
  %2358 = vmatprep.mubr.bf16.mxu0 %v736
  %2359 = vmatmul.mubr.bf16.gmra.mrb[0].mxu0 %v735
  %v2360 = vpop.f32.mrb[0].mxu0
  %v2361 = vadd.f32 %v2260, %v2360
  %v2362 = vpop.f32.mrb[0].mxu0
  %v2363 = vadd.f32 %v2262, %v2362
  %v2364 = vpop.f32.mrb[0].mxu0
  %v2365 = vadd.f32 %v2264, %v2364
  %v2366 = vpop.f32.mrb[0].mxu0
  %v2367 = vadd.f32 %v2266, %v2366
  %2368 = vmatprep.mubr.bf16.mxu0 %v752
  %2369 = vmatmul.mubr.bf16.gmra.mrb[0].mxu0 %v751
  %v2370 = vpop.f32.mrb[0].mxu0
  %v2371 = vadd.f32 %v2270, %v2370
  %v2372 = vpop.f32.mrb[0].mxu0
  %v2373 = vadd.f32 %v2272, %v2372
  %v2374 = vpop.f32.mrb[0].mxu0
  %v2375 = vadd.f32 %v2274, %v2374
  %v2376 = vpop.f32.mrb[0].mxu0
  %v2377 = vadd.f32 %v2276, %v2376
  %2378 = vmatprep.mubr.bf16.mxu0 %v768
  %2379 = vmatmul.mubr.bf16.gmra.mrb[0].mxu0 %v767
  %v2380 = vpop.f32.mrb[0].mxu0
  %v2381 = vadd.f32 %v2280, %v2380
  %v2382 = vpop.f32.mrb[0].mxu0
  %v2383 = vadd.f32 %v2282, %v2382
  %v2384 = vpop.f32.mrb[0].mxu0
  %v2385 = vadd.f32 %v2284, %v2384
  %v2386 = vpop.f32.mrb[0].mxu0
  %v2387 = vadd.f32 %v2286, %v2386
  %2388 = vmatprep.mubr.bf16.mxu0 %v784
  %2389 = vmatmul.mubr.bf16.gmra.mrb[0].mxu0 %v783
  %v2390 = vpop.f32.mrb[0].mxu0
  %v2391 = vadd.f32 %v2290, %v2390
  %v2392 = vpop.f32.mrb[0].mxu0
  %v2393 = vadd.f32 %v2292, %v2392
  %v2394 = vpop.f32.mrb[0].mxu0
  %v2395 = vadd.f32 %v2294, %v2394
  %v2396 = vpop.f32.mrb[0].mxu0
  %v2397 = vadd.f32 %v2296, %v2396
  %2398 = vmatprep.mubr.bf16.mxu0 %v800
  %2399 = vmatmul.mubr.bf16.gmra.mrb[0].mxu0 %v799
  %v2400 = vpop.f32.mrb[0].mxu0
  %v2401 = vadd.f32 %v2300, %v2400
  %v2402 = vpop.f32.mrb[0].mxu0
  %v2403 = vadd.f32 %v2302, %v2402
  %v2404 = vpop.f32.mrb[0].mxu0
  %v2405 = vpop.f32.mrb[0].mxu0
  %2406 = vdwg.mxu0
  %2407 = vmatprep.subr.bf16.mxu0 %v1758
  %2408 = vmatpush1.bf16.msra.mxu0 %v1757
  %2409 = vmatprep.subr.bf16.mxu0 %v1760
  %2410 = vmatpush1.bf16.msra.mxu0 %v1759
  %2411 = vmatprep.subr.bf16.mxu0 %v1762
  %2412 = vmatpush1.bf16.msra.mxu0 %v1761
  %2413 = vmatprep.subr.bf16.mxu0 %v1764
  %2414 = vmatpush1.bf16.msra.mxu0 %v1763
  %2415 = vmatprep.subr.bf16.mxu0 %v1766
  %2416 = vmatpush1.bf16.msra.mxu0 %v1765
  %2417 = vmatprep.subr.bf16.mxu0 %v1768
  %2418 = vmatpush1.bf16.msra.mxu0 %v1767
  %2419 = vmatprep.subr.bf16.mxu0 %v1770
  %2420 = vmatpush1.bf16.msra.mxu0 %v1769
  %2421 = vmatprep.subr.bf16.mxu0 %v1772
  %2422 = vmatpush1.bf16.msra.mxu0 %v1771
  %2423 = vmatprep.subr.bf16.mxu0 %v1774
  %2424 = vmatpush1.bf16.msra.mxu0 %v1773
  %2425 = vmatprep.subr.bf16.mxu0 %v1776
  %2426 = vmatpush1.bf16.msra.mxu0 %v1775
  %2427 = vmatprep.subr.bf16.mxu0 %v1778
  %2428 = vmatpush1.bf16.msra.mxu0 %v1777
  %2429 = vmatprep.subr.bf16.mxu0 %v1780
  %2430 = vmatpush1.bf16.msra.mxu0 %v1779
  %2431 = vmatprep.subr.bf16.mxu0 %v1782
  %2432 = vmatpush1.bf16.msra.mxu0 %v1781
  %2433 = vmatprep.subr.bf16.mxu0 %v1784
  %2434 = vmatpush1.bf16.msra.mxu0 %v1783
  %2435 = vmatprep.subr.bf16.mxu0 %v1786
  %2436 = vmatpush1.bf16.msra.mxu0 %v1785
  %2437 = vmatprep.subr.bf16.mxu0 %v1788
  %2438 = vmatpush1.bf16.msra.mxu0 %v1787
  %2439 = vmatprep.mubr.bf16.mxu0 %v706
  %2440 = vmatmul.mubr.bf16.gmra.mrb[0].mxu0 %v705
  %v2441 = vpop.f32.mrb[0].mxu0
  %v2442 = vadd.f32 %v2341, %v2441
  %v2443 = vpop.f32.mrb[0].mxu0
  %v2444 = vadd.f32 %v2343, %v2443
  %v2445 = vpop.f32.mrb[0].mxu0
  %v2446 = vadd.f32 %v2345, %v2445
  %v2447 = vpop.f32.mrb[0].mxu0
  %v2448 = vadd.f32 %v2347, %v2447
  %2449 = vmatprep.mubr.bf16.mxu0 %v722
  %2450 = vmatmul.mubr.bf16.gmra.mrb[0].mxu0 %v721
  %v2451 = vpop.f32.mrb[0].mxu0
  %v2452 = vadd.f32 %v2351, %v2451
  %v2453 = vpop.f32.mrb[0].mxu0
  %v2454 = vadd.f32 %v2353, %v2453
  %v2455 = vpop.f32.mrb[0].mxu0
  %v2456 = vadd.f32 %v2355, %v2455
  %v2457 = vpop.f32.mrb[0].mxu0
  %v2458 = vadd.f32 %v2357, %v2457
  %2459 = vmatprep.mubr.bf16.mxu0 %v738
  %2460 = vmatmul.mubr.bf16.gmra.mrb[0].mxu0 %v737
  %v2461 = vpop.f32.mrb[0].mxu0
  %v2462 = vadd.f32 %v2361, %v2461
  %v2463 = vpop.f32.mrb[0].mxu0
  %v2464 = vadd.f32 %v2363, %v2463
  %v2465 = vpop.f32.mrb[0].mxu0
  %v2466 = vadd.f32 %v2365, %v2465
  %v2467 = vpop.f32.mrb[0].mxu0
  %v2468 = vadd.f32 %v2367, %v2467
  %2469 = vmatprep.mubr.bf16.mxu0 %v754
  %2470 = vmatmul.mubr.bf16.gmra.mrb[0].mxu0 %v753
  %v2471 = vpop.f32.mrb[0].mxu0
  %v2472 = vadd.f32 %v2371, %v2471
  %v2473 = vpop.f32.mrb[0].mxu0
  %v2474 = vadd.f32 %v2373, %v2473
  %v2475 = vpop.f32.mrb[0].mxu0
  %v2476 = vadd.f32 %v2375, %v2475
  %v2477 = vpop.f32.mrb[0].mxu0
  %v2478 = vadd.f32 %v2377, %v2477
  %2479 = vmatprep.mubr.bf16.mxu0 %v770
  %2480 = vmatmul.mubr.bf16.gmra.mrb[0].mxu0 %v769
  %v2481 = vpop.f32.mrb[0].mxu0
  %v2482 = vadd.f32 %v2381, %v2481
  %v2483 = vpop.f32.mrb[0].mxu0
  %v2484 = vadd.f32 %v2383, %v2483
  %v2485 = vpop.f32.mrb[0].mxu0
  %v2486 = vadd.f32 %v2385, %v2485
  %v2487 = vpop.f32.mrb[0].mxu0
  %v2488 = vadd.f32 %v2387, %v2487
  %2489 = vmatprep.mubr.bf16.mxu0 %v786
  %2490 = vmatmul.mubr.bf16.gmra.mrb[0].mxu0 %v785
  %v2491 = vpop.f32.mrb[0].mxu0
  %v2492 = vadd.f32 %v2391, %v2491
  %v2493 = vpop.f32.mrb[0].mxu0
  %v2494 = vadd.f32 %v2393, %v2493
  %v2495 = vpop.f32.mrb[0].mxu0
  %v2496 = vadd.f32 %v2395, %v2495
  %v2497 = vpop.f32.mrb[0].mxu0
  %v2498 = vadd.f32 %v2397, %v2497
  %2499 = vmatprep.mubr.bf16.mxu0 %v802
  %2500 = vmatmul.mubr.bf16.gmra.mrb[0].mxu0 %v801
  %v2501 = vpop.f32.mrb[0].mxu0
  %v2502 = vadd.f32 %v2401, %v2501
  %v2503 = vpop.f32.mrb[0].mxu0
  %v2504 = vadd.f32 %v2403, %v2503
  %v2505 = vpop.f32.mrb[0].mxu0
  %v2506 = vpop.f32.mrb[0].mxu0
  %2507 = vdwg.mxu0
  %2508 = vmatprep.subr.bf16.mxu0 %v1790
  %2509 = vmatpush1.bf16.msra.mxu0 %v1789
  %2510 = vmatprep.subr.bf16.mxu0 %v1792
  %2511 = vmatpush1.bf16.msra.mxu0 %v1791
  %2512 = vmatprep.subr.bf16.mxu0 %v1794
  %2513 = vmatpush1.bf16.msra.mxu0 %v1793
  %2514 = vmatprep.subr.bf16.mxu0 %v1796
  %2515 = vmatpush1.bf16.msra.mxu0 %v1795
  %2516 = vmatprep.subr.bf16.mxu0 %v1798
  %2517 = vmatpush1.bf16.msra.mxu0 %v1797
  %2518 = vmatprep.subr.bf16.mxu0 %v1800
  %2519 = vmatpush1.bf16.msra.mxu0 %v1799
  %2520 = vmatprep.subr.bf16.mxu0 %v1802
  %2521 = vmatpush1.bf16.msra.mxu0 %v1801
  %2522 = vmatprep.subr.bf16.mxu0 %v1804
  %2523 = vmatpush1.bf16.msra.mxu0 %v1803
  %2524 = vmatprep.subr.bf16.mxu0 %v1806
  %2525 = vmatpush1.bf16.msra.mxu0 %v1805
  %2526 = vmatprep.subr.bf16.mxu0 %v1808
  %2527 = vmatpush1.bf16.msra.mxu0 %v1807
  %2528 = vmatprep.subr.bf16.mxu0 %v1810
  %2529 = vmatpush1.bf16.msra.mxu0 %v1809
  %2530 = vmatprep.subr.bf16.mxu0 %v1812
  %2531 = vmatpush1.bf16.msra.mxu0 %v1811
  %2532 = vmatprep.subr.bf16.mxu0 %v1814
  %2533 = vmatpush1.bf16.msra.mxu0 %v1813
  %2534 = vmatprep.subr.bf16.mxu0 %v1816
  %2535 = vmatpush1.bf16.msra.mxu0 %v1815
  %2536 = vmatprep.subr.bf16.mxu0 %v1818
  %2537 = vmatpush1.bf16.msra.mxu0 %v1817
  %2538 = vmatprep.subr.bf16.mxu0 %v1820
  %2539 = vmatpush1.bf16.msra.mxu0 %v1819
  %2540 = vmatprep.mubr.bf16.mxu0 %v708
  %2541 = vmatmul.mubr.bf16.gmra.mrb[0].mxu0 %v707
  %v2542 = vpop.f32.mrb[0].mxu0
  %v2543 = vadd.f32 %v2442, %v2542
  %v2544 = vpop.f32.mrb[0].mxu0
  %v2545 = vadd.f32 %v2444, %v2544
  %v2546 = vpop.f32.mrb[0].mxu0
  %v2547 = vadd.f32 %v2446, %v2546
  %v2548 = vpop.f32.mrb[0].mxu0
  %v2549 = vadd.f32 %v2448, %v2548
  %2550 = vmatprep.mubr.bf16.mxu0 %v724
  %2551 = vmatmul.mubr.bf16.gmra.mrb[0].mxu0 %v723
  %v2552 = vpop.f32.mrb[0].mxu0
  %v2553 = vadd.f32 %v2452, %v2552
  %v2554 = vpop.f32.mrb[0].mxu0
  %v2555 = vadd.f32 %v2454, %v2554
  %v2556 = vpop.f32.mrb[0].mxu0
  %v2557 = vadd.f32 %v2456, %v2556
  %v2558 = vpop.f32.mrb[0].mxu0
  %v2559 = vadd.f32 %v2458, %v2558
  %2560 = vmatprep.mubr.bf16.mxu0 %v740
  %2561 = vmatmul.mubr.bf16.gmra.mrb[0].mxu0 %v739
  %v2562 = vpop.f32.mrb[0].mxu0
  %v2563 = vadd.f32 %v2462, %v2562
  %v2564 = vpop.f32.mrb[0].mxu0
  %v2565 = vadd.f32 %v2464, %v2564
  %v2566 = vpop.f32.mrb[0].mxu0
  %v2567 = vadd.f32 %v2466, %v2566
  %v2568 = vpop.f32.mrb[0].mxu0
  %v2569 = vadd.f32 %v2468, %v2568
  %2570 = vmatprep.mubr.bf16.mxu0 %v756
  %2571 = vmatmul.mubr.bf16.gmra.mrb[0].mxu0 %v755
  %v2572 = vpop.f32.mrb[0].mxu0
  %v2573 = vadd.f32 %v2472, %v2572
  %v2574 = vpop.f32.mrb[0].mxu0
  %v2575 = vadd.f32 %v2474, %v2574
  %v2576 = vpop.f32.mrb[0].mxu0
  %v2577 = vadd.f32 %v2476, %v2576
  %v2578 = vpop.f32.mrb[0].mxu0
  %v2579 = vadd.f32 %v2478, %v2578
  %2580 = vmatprep.mubr.bf16.mxu0 %v772
  %2581 = vmatmul.mubr.bf16.gmra.mrb[0].mxu0 %v771
  %v2582 = vpop.f32.mrb[0].mxu0
  %v2583 = vadd.f32 %v2482, %v2582
  %v2584 = vpop.f32.mrb[0].mxu0
  %v2585 = vadd.f32 %v2484, %v2584
  %v2586 = vpop.f32.mrb[0].mxu0
  %v2587 = vadd.f32 %v2486, %v2586
  %v2588 = vpop.f32.mrb[0].mxu0
  %v2589 = vadd.f32 %v2488, %v2588
  %2590 = vmatprep.mubr.bf16.mxu0 %v788
  %2591 = vmatmul.mubr.bf16.gmra.mrb[0].mxu0 %v787
  %v2592 = vpop.f32.mrb[0].mxu0
  %v2593 = vadd.f32 %v2492, %v2592
  %v2594 = vpop.f32.mrb[0].mxu0
  %v2595 = vadd.f32 %v2494, %v2594
  %v2596 = vpop.f32.mrb[0].mxu0
  %v2597 = vadd.f32 %v2496, %v2596
  %v2598 = vpop.f32.mrb[0].mxu0
  %v2599 = vadd.f32 %v2498, %v2598
  %2600 = vmatprep.mubr.bf16.mxu0 %v804
  %2601 = vmatmul.mubr.bf16.gmra.mrb[0].mxu0 %v803
  %v2602 = vpop.f32.mrb[0].mxu0
  %v2603 = vadd.f32 %v2502, %v2602
  %v2604 = vpop.f32.mrb[0].mxu0
  %v2605 = vadd.f32 %v2504, %v2604
  %v2606 = vpop.f32.mrb[0].mxu0
  %v2607 = vpop.f32.mrb[0].mxu0
  %2608 = vdwg.mxu0
  %2609 = vmatprep.subr.bf16.mxu0 %v1822
  %2610 = vmatpush1.bf16.msra.mxu0 %v1821
  %2611 = vmatprep.subr.bf16.mxu0 %v1824
  %2612 = vmatpush1.bf16.msra.mxu0 %v1823
  %2613 = vmatprep.subr.bf16.mxu0 %v1826
  %2614 = vmatpush1.bf16.msra.mxu0 %v1825
  %2615 = vmatprep.subr.bf16.mxu0 %v1828
  %2616 = vmatpush1.bf16.msra.mxu0 %v1827
  %2617 = vmatprep.subr.bf16.mxu0 %v1830
  %2618 = vmatpush1.bf16.msra.mxu0 %v1829
  %2619 = vmatprep.subr.bf16.mxu0 %v1832
  %2620 = vmatpush1.bf16.msra.mxu0 %v1831
  %2621 = vmatprep.subr.bf16.mxu0 %v1834
  %2622 = vmatpush1.bf16.msra.mxu0 %v1833
  %2623 = vmatprep.subr.bf16.mxu0 %v1836
  %2624 = vmatpush1.bf16.msra.mxu0 %v1835
  %2625 = vmatprep.subr.bf16.mxu0 %v1838
  %2626 = vmatpush1.bf16.msra.mxu0 %v1837
  %2627 = vmatprep.subr.bf16.mxu0 %v1840
  %2628 = vmatpush1.bf16.msra.mxu0 %v1839
  %2629 = vmatprep.subr.bf16.mxu0 %v1842
  %2630 = vmatpush1.bf16.msra.mxu0 %v1841
  %2631 = vmatprep.subr.bf16.mxu0 %v1844
  %2632 = vmatpush1.bf16.msra.mxu0 %v1843
  %2633 = vmatprep.subr.bf16.mxu0 %v1846
  %2634 = vmatpush1.bf16.msra.mxu0 %v1845
  %2635 = vmatprep.subr.bf16.mxu0 %v1848
  %2636 = vmatpush1.bf16.msra.mxu0 %v1847
  %2637 = vmatprep.subr.bf16.mxu0 %v1850
  %2638 = vmatpush1.bf16.msra.mxu0 %v1849
  %2639 = vmatprep.subr.bf16.mxu0 %v1852
  %2640 = vmatpush1.bf16.msra.mxu0 %v1851
  %2641 = vmatprep.mubr.bf16.mxu0 %v710
  %2642 = vmatmul.mubr.bf16.gmra.mrb[0].mxu0 %v709
  %v2643 = vpop.f32.mrb[0].mxu0
  %v2644 = vadd.f32 %v2543, %v2643
  %v2645 = vpop.f32.mrb[0].mxu0
  %v2646 = vadd.f32 %v2545, %v2645
  %v2647 = vpop.f32.mrb[0].mxu0
  %v2648 = vadd.f32 %v2547, %v2647
  %v2649 = vpop.f32.mrb[0].mxu0
  %v2650 = vadd.f32 %v2549, %v2649
  %2651 = vmatprep.mubr.bf16.mxu0 %v726
  %2652 = vmatmul.mubr.bf16.gmra.mrb[0].mxu0 %v725
  %v2653 = vpop.f32.mrb[0].mxu0
  %v2654 = vadd.f32 %v2553, %v2653
  %v2655 = vpop.f32.mrb[0].mxu0
  %v2656 = vadd.f32 %v2555, %v2655
  %v2657 = vpop.f32.mrb[0].mxu0
  %v2658 = vadd.f32 %v2557, %v2657
  %v2659 = vpop.f32.mrb[0].mxu0
  %v2660 = vadd.f32 %v2559, %v2659
  %2661 = vmatprep.mubr.bf16.mxu0 %v742
  %2662 = vmatmul.mubr.bf16.gmra.mrb[0].mxu0 %v741
  %v2663 = vpop.f32.mrb[0].mxu0
  %v2664 = vadd.f32 %v2563, %v2663
  %v2665 = vpop.f32.mrb[0].mxu0
  %v2666 = vadd.f32 %v2565, %v2665
  %v2667 = vpop.f32.mrb[0].mxu0
  %v2668 = vadd.f32 %v2567, %v2667
  %v2669 = vpop.f32.mrb[0].mxu0
  %v2670 = vadd.f32 %v2569, %v2669
  %2671 = vmatprep.mubr.bf16.mxu0 %v758
  %2672 = vmatmul.mubr.bf16.gmra.mrb[0].mxu0 %v757
  %v2673 = vpop.f32.mrb[0].mxu0
  %v2674 = vadd.f32 %v2573, %v2673
  %v2675 = vpop.f32.mrb[0].mxu0
  %v2676 = vadd.f32 %v2575, %v2675
  %v2677 = vpop.f32.mrb[0].mxu0
  %v2678 = vadd.f32 %v2577, %v2677
  %v2679 = vpop.f32.mrb[0].mxu0
  %v2680 = vadd.f32 %v2579, %v2679
  %2681 = vmatprep.mubr.bf16.mxu0 %v774
  %2682 = vmatmul.mubr.bf16.gmra.mrb[0].mxu0 %v773
  %v2683 = vpop.f32.mrb[0].mxu0
  %v2684 = vadd.f32 %v2583, %v2683
  %v2685 = vpop.f32.mrb[0].mxu0
  %v2686 = vadd.f32 %v2585, %v2685
  %v2687 = vpop.f32.mrb[0].mxu0
  %v2688 = vadd.f32 %v2587, %v2687
  %v2689 = vpop.f32.mrb[0].mxu0
  %v2690 = vadd.f32 %v2589, %v2689
  %2691 = vmatprep.mubr.bf16.mxu0 %v790
  %2692 = vmatmul.mubr.bf16.gmra.mrb[0].mxu0 %v789
  %v2693 = vpop.f32.mrb[0].mxu0
  %v2694 = vadd.f32 %v2593, %v2693
  %v2695 = vpop.f32.mrb[0].mxu0
  %v2696 = vadd.f32 %v2595, %v2695
  %v2697 = vpop.f32.mrb[0].mxu0
  %v2698 = vadd.f32 %v2597, %v2697
  %v2699 = vpop.f32.mrb[0].mxu0
  %v2700 = vadd.f32 %v2599, %v2699
  %2701 = vmatprep.mubr.bf16.mxu0 %v806
  %2702 = vmatmul.mubr.bf16.gmra.mrb[0].mxu0 %v805
  %v2703 = vpop.f32.mrb[0].mxu0
  %v2704 = vadd.f32 %v2603, %v2703
  %v2705 = vpop.f32.mrb[0].mxu0
  %v2706 = vadd.f32 %v2605, %v2705
  %v2707 = vpop.f32.mrb[0].mxu0
  %v2708 = vpop.f32.mrb[0].mxu0
  %2709 = vdwg.mxu0
  %2710 = vmatprep.subr.bf16.mxu0 %v1854
  %2711 = vmatpush1.bf16.msra.mxu0 %v1853
  %2712 = vmatprep.subr.bf16.mxu0 %v1856
  %2713 = vmatpush1.bf16.msra.mxu0 %v1855
  %2714 = vmatprep.subr.bf16.mxu0 %v1858
  %2715 = vmatpush1.bf16.msra.mxu0 %v1857
  %2716 = vmatprep.subr.bf16.mxu0 %v1860
  %2717 = vmatpush1.bf16.msra.mxu0 %v1859
  %2718 = vmatprep.subr.bf16.mxu0 %v1862
  %2719 = vmatpush1.bf16.msra.mxu0 %v1861
  %2720 = vmatprep.subr.bf16.mxu0 %v1864
  %2721 = vmatpush1.bf16.msra.mxu0 %v1863
  %2722 = vmatprep.subr.bf16.mxu0 %v1866
  %2723 = vmatpush1.bf16.msra.mxu0 %v1865
  %2724 = vmatprep.subr.bf16.mxu0 %v1868
  %2725 = vmatpush1.bf16.msra.mxu0 %v1867
  %2726 = vmatprep.subr.bf16.mxu0 %v1870
  %2727 = vmatpush1.bf16.msra.mxu0 %v1869
  %2728 = vmatprep.subr.bf16.mxu0 %v1872
  %2729 = vmatpush1.bf16.msra.mxu0 %v1871
  %2730 = vmatprep.subr.bf16.mxu0 %v1874
  %2731 = vmatpush1.bf16.msra.mxu0 %v1873
  %2732 = vmatprep.subr.bf16.mxu0 %v1876
  %2733 = vmatpush1.bf16.msra.mxu0 %v1875
  %2734 = vmatprep.subr.bf16.mxu0 %v1878
  %2735 = vmatpush1.bf16.msra.mxu0 %v1877
  %2736 = vmatprep.subr.bf16.mxu0 %v1880
  %2737 = vmatpush1.bf16.msra.mxu0 %v1879
  %2738 = vmatprep.subr.bf16.mxu0 %v1882
  %2739 = vmatpush1.bf16.msra.mxu0 %v1881
  %2740 = vmatprep.subr.bf16.mxu0 %v1884
  %2741 = vmatpush1.bf16.msra.mxu0 %v1883
  %2742 = vmatprep.mubr.bf16.mxu0 %v712
  %2743 = vmatmul.mubr.bf16.gmra.mrb[0].mxu0 %v711
  %v2744 = vpop.f32.mrb[0].mxu0
  %v2745 = vadd.f32 %v2644, %v2744
  %v2746 = vpop.f32.mrb[0].mxu0
  %v2747 = vadd.f32 %v2646, %v2746
  %v2748 = vpop.f32.mrb[0].mxu0
  %v2749 = vadd.f32 %v2648, %v2748
  %v2750 = vpop.f32.mrb[0].mxu0
  %v2751 = vadd.f32 %v2650, %v2750
  %2752 = vmatprep.mubr.bf16.mxu0 %v728
  %2753 = vmatmul.mubr.bf16.gmra.mrb[0].mxu0 %v727
  %v2754 = vpop.f32.mrb[0].mxu0
  %v2755 = vadd.f32 %v2654, %v2754
  %v2756 = vpop.f32.mrb[0].mxu0
  %v2757 = vadd.f32 %v2656, %v2756
  %v2758 = vpop.f32.mrb[0].mxu0
  %v2759 = vadd.f32 %v2658, %v2758
  %v2760 = vpop.f32.mrb[0].mxu0
  %v2761 = vadd.f32 %v2660, %v2760
  %2762 = vmatprep.mubr.bf16.mxu0 %v744
  %2763 = vmatmul.mubr.bf16.gmra.mrb[0].mxu0 %v743
  %v2764 = vpop.f32.mrb[0].mxu0
  %v2765 = vadd.f32 %v2664, %v2764
  %v2766 = vpop.f32.mrb[0].mxu0
  %v2767 = vadd.f32 %v2666, %v2766
  %v2768 = vpop.f32.mrb[0].mxu0
  %v2769 = vadd.f32 %v2668, %v2768
  %v2770 = vpop.f32.mrb[0].mxu0
  %v2771 = vadd.f32 %v2670, %v2770
  %2772 = vmatprep.mubr.bf16.mxu0 %v760
  %2773 = vmatmul.mubr.bf16.gmra.mrb[0].mxu0 %v759
  %v2774 = vpop.f32.mrb[0].mxu0
  %v2775 = vadd.f32 %v2674, %v2774
  %v2776 = vpop.f32.mrb[0].mxu0
  %v2777 = vadd.f32 %v2676, %v2776
  %v2778 = vpop.f32.mrb[0].mxu0
  %v2779 = vadd.f32 %v2678, %v2778
  %v2780 = vpop.f32.mrb[0].mxu0
  %v2781 = vadd.f32 %v2680, %v2780
  %2782 = vmatprep.mubr.bf16.mxu0 %v776
  %2783 = vmatmul.mubr.bf16.gmra.mrb[0].mxu0 %v775
  %v2784 = vpop.f32.mrb[0].mxu0
  %v2785 = vadd.f32 %v2684, %v2784
  %v2786 = vpop.f32.mrb[0].mxu0
  %v2787 = vadd.f32 %v2686, %v2786
  %v2788 = vpop.f32.mrb[0].mxu0
  %v2789 = vadd.f32 %v2688, %v2788
  %v2790 = vpop.f32.mrb[0].mxu0
  %v2791 = vadd.f32 %v2690, %v2790
  %2792 = vmatprep.mubr.bf16.mxu0 %v792
  %2793 = vmatmul.mubr.bf16.gmra.mrb[0].mxu0 %v791
  %v2794 = vpop.f32.mrb[0].mxu0
  %v2795 = vadd.f32 %v2694, %v2794
  %v2796 = vpop.f32.mrb[0].mxu0
  %v2797 = vadd.f32 %v2696, %v2796
  %v2798 = vpop.f32.mrb[0].mxu0
  %v2799 = vadd.f32 %v2698, %v2798
  %v2800 = vpop.f32.mrb[0].mxu0
  %v2801 = vadd.f32 %v2700, %v2800
  %2802 = vmatprep.mubr.bf16.mxu0 %v808
  %2803 = vmatmul.mubr.bf16.gmra.mrb[0].mxu0 %v807
  %v2804 = vpop.f32.mrb[0].mxu0
  %v2805 = vadd.f32 %v2704, %v2804
  %v2806 = vpop.f32.mrb[0].mxu0
  %v2807 = vadd.f32 %v2706, %v2806
  %v2808 = vpop.f32.mrb[0].mxu0
  %v2809 = vpop.f32.mrb[0].mxu0
  %2810 = vdwg.mxu0
  %2811 = vmatprep.subr.bf16.mxu0 %v1886
  %2812 = vmatpush1.bf16.msra.mxu0 %v1885
  %2813 = vmatprep.subr.bf16.mxu0 %v1888
  %2814 = vmatpush1.bf16.msra.mxu0 %v1887
  %2815 = vmatprep.subr.bf16.mxu0 %v1890
  %2816 = vmatpush1.bf16.msra.mxu0 %v1889
  %2817 = vmatprep.subr.bf16.mxu0 %v1892
  %2818 = vmatpush1.bf16.msra.mxu0 %v1891
  %2819 = vmatprep.subr.bf16.mxu0 %v1894
  %2820 = vmatpush1.bf16.msra.mxu0 %v1893
  %2821 = vmatprep.subr.bf16.mxu0 %v1896
  %2822 = vmatpush1.bf16.msra.mxu0 %v1895
  %2823 = vmatprep.subr.bf16.mxu0 %v1898
  %2824 = vmatpush1.bf16.msra.mxu0 %v1897
  %2825 = vmatprep.subr.bf16.mxu0 %v1900
  %2826 = vmatpush1.bf16.msra.mxu0 %v1899
  %2827 = vmatprep.subr.bf16.mxu0 %v1902
  %2828 = vmatpush1.bf16.msra.mxu0 %v1901
  %2829 = vmatprep.subr.bf16.mxu0 %v1904
  %2830 = vmatpush1.bf16.msra.mxu0 %v1903
  %2831 = vmatprep.subr.bf16.mxu0 %v1906
  %2832 = vmatpush1.bf16.msra.mxu0 %v1905
  %2833 = vmatprep.subr.bf16.mxu0 %v1908
  %2834 = vmatpush1.bf16.msra.mxu0 %v1907
  %2835 = vmatprep.subr.bf16.mxu0 %v1910
  %2836 = vmatpush1.bf16.msra.mxu0 %v1909
  %2837 = vmatprep.subr.bf16.mxu0 %v1912
  %2838 = vmatpush1.bf16.msra.mxu0 %v1911
  %2839 = vmatprep.subr.bf16.mxu0 %v1914
  %2840 = vmatpush1.bf16.msra.mxu0 %v1913
  %2841 = vmatprep.subr.bf16.mxu0 %v1916
  %2842 = vmatpush1.bf16.msra.mxu0 %v1915
  %2843 = vmatprep.mubr.bf16.mxu0 %v714
  %2844 = vmatmul.mubr.bf16.gmra.mrb[0].mxu0 %v713
  %v2845 = vpop.f32.mrb[0].mxu0
  %v2846 = vadd.f32 %v2745, %v2845
  %v2847 = vpop.f32.mrb[0].mxu0
  %v2848 = vadd.f32 %v2747, %v2847
  %v2849 = vpop.f32.mrb[0].mxu0
  %v2850 = vadd.f32 %v2749, %v2849
  %v2851 = vpop.f32.mrb[0].mxu0
  %v2852 = vadd.f32 %v2751, %v2851
  %2853 = vmatprep.mubr.bf16.mxu0 %v730
  %2854 = vmatmul.mubr.bf16.gmra.mrb[0].mxu0 %v729
  %v2855 = vpop.f32.mrb[0].mxu0
  %v2856 = vadd.f32 %v2755, %v2855
  %v2857 = vpop.f32.mrb[0].mxu0
  %v2858 = vadd.f32 %v2757, %v2857
  %v2859 = vpop.f32.mrb[0].mxu0
  %v2860 = vadd.f32 %v2759, %v2859
  %v2861 = vpop.f32.mrb[0].mxu0
  %v2862 = vadd.f32 %v2761, %v2861
  %2863 = vmatprep.mubr.bf16.mxu0 %v746
  %2864 = vmatmul.mubr.bf16.gmra.mrb[0].mxu0 %v745
  %v2865 = vpop.f32.mrb[0].mxu0
  %v2866 = vadd.f32 %v2765, %v2865
  %v2867 = vpop.f32.mrb[0].mxu0
  %v2868 = vadd.f32 %v2767, %v2867
  %v2869 = vpop.f32.mrb[0].mxu0
  %v2870 = vadd.f32 %v2769, %v2869
  %v2871 = vpop.f32.mrb[0].mxu0
  %v2872 = vadd.f32 %v2771, %v2871
  %2873 = vmatprep.mubr.bf16.mxu0 %v762
  %2874 = vmatmul.mubr.bf16.gmra.mrb[0].mxu0 %v761
  %v2875 = vpop.f32.mrb[0].mxu0
  %v2876 = vadd.f32 %v2775, %v2875
  %v2877 = vpop.f32.mrb[0].mxu0
  %v2878 = vadd.f32 %v2777, %v2877
  %v2879 = vpop.f32.mrb[0].mxu0
  %v2880 = vadd.f32 %v2779, %v2879
  %v2881 = vpop.f32.mrb[0].mxu0
  %v2882 = vadd.f32 %v2781, %v2881
  %2883 = vmatprep.mubr.bf16.mxu0 %v778
  %2884 = vmatmul.mubr.bf16.gmra.mrb[0].mxu0 %v777
  %v2885 = vpop.f32.mrb[0].mxu0
  %v2886 = vadd.f32 %v2785, %v2885
  %v2887 = vpop.f32.mrb[0].mxu0
  %v2888 = vadd.f32 %v2787, %v2887
  %v2889 = vpop.f32.mrb[0].mxu0
  %v2890 = vadd.f32 %v2789, %v2889
  %v2891 = vpop.f32.mrb[0].mxu0
  %v2892 = vadd.f32 %v2791, %v2891
  %2893 = vmatprep.mubr.bf16.mxu0 %v794
  %2894 = vmatmul.mubr.bf16.gmra.mrb[0].mxu0 %v793
  %v2895 = vpop.f32.mrb[0].mxu0
  %v2896 = vadd.f32 %v2795, %v2895
  %v2897 = vpop.f32.mrb[0].mxu0
  %v2898 = vadd.f32 %v2797, %v2897
  %v2899 = vpop.f32.mrb[0].mxu0
  %v2900 = vadd.f32 %v2799, %v2899
  %v2901 = vpop.f32.mrb[0].mxu0
  %v2902 = vadd.f32 %v2801, %v2901
  %2903 = vmatprep.mubr.bf16.mxu0 %v810
  %2904 = vmatmul.mubr.bf16.gmra.mrb[0].mxu0 %v809
  %v2905 = vpop.f32.mrb[0].mxu0
  %v2906 = vadd.f32 %v2805, %v2905
  %v2907 = vpop.f32.mrb[0].mxu0
  %v2908 = vadd.f32 %v2807, %v2907
  %v2909 = vpop.f32.mrb[0].mxu0
  %v2910 = vpop.f32.mrb[0].mxu0
  %2911 = vdwg.mxu0
  %2912 = vmatprep.subr.bf16.mxu0 %v1918
  %2913 = vmatpush1.bf16.msra.mxu0 %v1917
  %2914 = vmatprep.subr.bf16.mxu0 %v1920
  %2915 = vmatpush1.bf16.msra.mxu0 %v1919
  %2916 = vmatprep.subr.bf16.mxu0 %v1922
  %2917 = vmatpush1.bf16.msra.mxu0 %v1921
  %2918 = vmatprep.subr.bf16.mxu0 %v1924
  %2919 = vmatpush1.bf16.msra.mxu0 %v1923
  %2920 = vmatprep.subr.bf16.mxu0 %v1926
  %2921 = vmatpush1.bf16.msra.mxu0 %v1925
  %2922 = vmatprep.subr.bf16.mxu0 %v1928
  %2923 = vmatpush1.bf16.msra.mxu0 %v1927
  %2924 = vmatprep.subr.bf16.mxu0 %v1930
  %2925 = vmatpush1.bf16.msra.mxu0 %v1929
  %2926 = vmatprep.subr.bf16.mxu0 %v1932
  %2927 = vmatpush1.bf16.msra.mxu0 %v1931
  %2928 = vmatprep.subr.bf16.mxu0 %v1934
  %2929 = vmatpush1.bf16.msra.mxu0 %v1933
  %2930 = vmatprep.subr.bf16.mxu0 %v1936
  %2931 = vmatpush1.bf16.msra.mxu0 %v1935
  %2932 = vmatprep.subr.bf16.mxu0 %v1938
  %2933 = vmatpush1.bf16.msra.mxu0 %v1937
  %2934 = vmatprep.subr.bf16.mxu0 %v1940
  %2935 = vmatpush1.bf16.msra.mxu0 %v1939
  %2936 = vmatprep.subr.bf16.mxu0 %v1942
  %2937 = vmatpush1.bf16.msra.mxu0 %v1941
  %2938 = vmatprep.subr.bf16.mxu0 %v1944
  %2939 = vmatpush1.bf16.msra.mxu0 %v1943
  %2940 = vmatprep.subr.bf16.mxu0 %v1946
  %2941 = vmatpush1.bf16.msra.mxu0 %v1945
  %2942 = vmatprep.subr.bf16.mxu0 %v1948
  %2943 = vmatpush1.bf16.msra.mxu0 %v1947
  %2944 = vmatprep.mubr.bf16.mxu0 %v716
  %2945 = vmatmul.mubr.bf16.gmra.mrb[0].mxu0 %v715
  %v2946 = vpop.f32.mrb[0].mxu0
  %v2947 = vadd.f32 %v2846, %v2946
  %v2948 = vpop.f32.mrb[0].mxu0
  %v2949 = vadd.f32 %v2848, %v2948
  %v2950 = vpop.f32.mrb[0].mxu0
  %v2951 = vadd.f32 %v2850, %v2950
  %v2952 = vpop.f32.mrb[0].mxu0
  %v2953 = vadd.f32 %v2852, %v2952
  %2954 = vmatprep.mubr.bf16.mxu0 %v732
  %2955 = vmatmul.mubr.bf16.gmra.mrb[0].mxu0 %v731
  %v2956 = vpop.f32.mrb[0].mxu0
  %v2957 = vadd.f32 %v2856, %v2956
  %v2958 = vpop.f32.mrb[0].mxu0
  %v2959 = vadd.f32 %v2858, %v2958
  %v2960 = vpop.f32.mrb[0].mxu0
  %v2961 = vadd.f32 %v2860, %v2960
  %v2962 = vpop.f32.mrb[0].mxu0
  %v2963 = vadd.f32 %v2862, %v2962
  %2964 = vmatprep.mubr.bf16.mxu0 %v748
  %2965 = vmatmul.mubr.bf16.gmra.mrb[0].mxu0 %v747
  %v2966 = vpop.f32.mrb[0].mxu0
  %v2967 = vadd.f32 %v2866, %v2966
  %v2968 = vpop.f32.mrb[0].mxu0
  %v2969 = vadd.f32 %v2868, %v2968
  %v2970 = vpop.f32.mrb[0].mxu0
  %v2971 = vadd.f32 %v2870, %v2970
  %v2972 = vpop.f32.mrb[0].mxu0
  %v2973 = vadd.f32 %v2872, %v2972
  %2974 = vmatprep.mubr.bf16.mxu0 %v764
  %2975 = vmatmul.mubr.bf16.gmra.mrb[0].mxu0 %v763
  %v2976 = vpop.f32.mrb[0].mxu0
  %v2977 = vadd.f32 %v2876, %v2976
  %v2978 = vpop.f32.mrb[0].mxu0
  %v2979 = vadd.f32 %v2878, %v2978
  %v2980 = vpop.f32.mrb[0].mxu0
  %v2981 = vadd.f32 %v2880, %v2980
  %v2982 = vpop.f32.mrb[0].mxu0
  %v2983 = vadd.f32 %v2882, %v2982
  %2984 = vmatprep.mubr.bf16.mxu0 %v780
  %2985 = vmatmul.mubr.bf16.gmra.mrb[0].mxu0 %v779
  %v2986 = vpop.f32.mrb[0].mxu0
  %v2987 = vadd.f32 %v2886, %v2986
  %v2988 = vpop.f32.mrb[0].mxu0
  %v2989 = vadd.f32 %v2888, %v2988
  %v2990 = vpop.f32.mrb[0].mxu0
  %v2991 = vadd.f32 %v2890, %v2990
  %v2992 = vpop.f32.mrb[0].mxu0
  %v2993 = vadd.f32 %v2892, %v2992
  %2994 = vmatprep.mubr.bf16.mxu0 %v796
  %2995 = vmatmul.mubr.bf16.gmra.mrb[0].mxu0 %v795
  %v2996 = vpop.f32.mrb[0].mxu0
  %v2997 = vadd.f32 %v2896, %v2996
  %v2998 = vpop.f32.mrb[0].mxu0
  %v2999 = vadd.f32 %v2898, %v2998
  %v3000 = vpop.f32.mrb[0].mxu0
  %v3001 = vadd.f32 %v2900, %v3000
  %v3002 = vpop.f32.mrb[0].mxu0
  %v3003 = vadd.f32 %v2902, %v3002
  %3004 = vmatprep.mubr.bf16.mxu0 %v812
  %3005 = vmatmul.mubr.bf16.gmra.mrb[0].mxu0 %v811
  %v3006 = vpop.f32.mrb[0].mxu0
  %v3007 = vadd.f32 %v2906, %v3006
  %v3008 = vpop.f32.mrb[0].mxu0
  %v3009 = vadd.f32 %v2908, %v3008
  %v3010 = vpop.f32.mrb[0].mxu0
  %v3011 = vpop.f32.mrb[0].mxu0
  %3012 = vdwg.mxu0
  %3013 = vst [vmem:[%s3] sm:$0xff] %v2947
  %3014 = vst [vmem:[%s3 + $0x8] sm:$0xff] %v2949
  %3015 = vst [vmem:[%s3 + $0x10] sm:$0xff] %v2951
  %3016 = vst [vmem:[%s3 + $0x18] sm:$0xff] %v2953
  %3017 = vst [vmem:[%s3 + $0x20] sm:$0xff] %v2957
  %3018 = vst [vmem:[%s3 + $0x28] sm:$0xff] %v2959
  %3019 = vst [vmem:[%s3 + $0x30] sm:$0xff] %v2961
  %3020 = vst [vmem:[%s3 + $0x38] sm:$0xff] %v2963
  %3021 = vst [vmem:[%s3 + $0x40] sm:$0xff] %v2967
  %3022 = vst [vmem:[%s3 + $0x48] sm:$0xff] %v2969
  %3023 = vst [vmem:[%s3 + $0x50] sm:$0xff] %v2971
  %3024 = vst [vmem:[%s3 + $0x58] sm:$0xff] %v2973
  %3025 = vst [vmem:[%s3 + $0x60] sm:$0xff] %v2977
  %3026 = vst [vmem:[%s3 + $0x68] sm:$0xff] %v2979
  %3027 = vst [vmem:[%s3 + $0x70] sm:$0xff] %v2981
  %3028 = vst [vmem:[%s3 + $0x78] sm:$0xff] %v2983
  %3029 = vst [vmem:[%s3 + $0x80] sm:$0xff] %v2987
  %3030 = vst [vmem:[%s3 + $0x88] sm:$0xff] %v2989
  %3031 = vst [vmem:[%s3 + $0x90] sm:$0xff] %v2991
  %3032 = vst [vmem:[%s3 + $0x98] sm:$0xff] %v2993
  %3033 = vst [vmem:[%s3 + $0xa0] sm:$0xff] %v2997
  %3034 = vst [vmem:[%s3 + $0xa8] sm:$0xff] %v2999
  %3035 = vst [vmem:[%s3 + $0xb0] sm:$0xff] %v3001
  %3036 = vst [vmem:[%s3 + $0xb8] sm:$0xff] %v3003
  %3037 = vst [vmem:[%s3 + $0xc0] sm:$0x3] %v3007
  %3038 = vst [vmem:[%s3 + $0xc8] sm:$0x3] %v3009
  %v3039 = vadd.f32 %v2947, %v2951
  %v3040 = vadd.f32 %v3039, %v2957
  %v3041 = vadd.f32 %v3040, %v2961
  %v3042 = vadd.f32 %v3041, %v2967
  %v3043 = vadd.f32 %v3042, %v2971
  %v3044 = vadd.f32 %v3043, %v2977
  %v3045 = vadd.f32 %v3044, %v2981
  %v3046 = vadd.f32 %v3045, %v2987
  %v3047 = vadd.f32 %v3046, %v2991
  %v3048 = vadd.f32 %v3047, %v2997
  %v3049 = vadd.f32 %v3048, %v3001
  %vm3050 = vcmask 1041408
  %v3051 = vsel %vm3050, %v3007, 0.0
  %v3052 = vadd.f32 %v3049, %v3051
  %v3053 = vrot.slane %v3052, 4
  %v3054 = vadd.f32 %v3052, %v3053
  %v3055 = vrot.slane %v3054, 2
  %v3056 = vadd.f32 %v3054, %v3055
  %v3057 = vrot.slane %v3056, 1
  %v3058 = vadd.f32 %v3056, %v3057
  %v3059 = vadd.f32 %v2949, %v2953
  %v3060 = vadd.f32 %v3059, %v2959
  %v3061 = vadd.f32 %v3060, %v2963
  %v3062 = vadd.f32 %v3061, %v2969
  %v3063 = vadd.f32 %v3062, %v2973
  %v3064 = vadd.f32 %v3063, %v2979
  %v3065 = vadd.f32 %v3064, %v2983
  %v3066 = vadd.f32 %v3065, %v2989
  %v3067 = vadd.f32 %v3066, %v2993
  %v3068 = vadd.f32 %v3067, %v2999
  %v3069 = vadd.f32 %v3068, %v3003
  %v3070 = vsel %vm3050, %v3009, 0.0
  %v3071 = vadd.f32 %v3069, %v3070
  %v3072 = vrot.slane %v3071, 4
  %v3073 = vadd.f32 %v3071, %v3072
  %v3074 = vrot.slane %v3073, 2
  %v3075 = vadd.f32 %v3073, %v3074
  %v3076 = vrot.slane %v3075, 1
  %v3077 = vadd.f32 %v3075, %v3076
  %v3080 = vcombine.low %v3058, %v3077
  %v3082 = vunpack.c.l.s4 1966171168
  %v3083 = vunpack.c.0.s8 %v3082
  %v3084 = vlaneseq
  %v3085 = vshrl.u32 %v3084, 7
  %v3086 = vsub.s32 %v3083, %v3085
  %v3087 = vrot.slane %v3080, %v3086
  %v3089 = vunpack.c.l.s4 1966171168
  %v3090 = vunpack.c.0.s8 %v3089
  %v3091 = vlaneseq
  %v3092 = vshrl.u32 %v3091, 7
  %v3093 = vsub.s32 %v3090, %v3092
  %v3094 = vrot.slane %v3087, %v3093
  %v3096 = vlaneseq
  %vm3097 = vcmp.ge.s32.totalorder %v3096, 0
  %vm3098 = vcmp.lt.s32.totalorder %v3096, 256
  %vm3099 = vmand %vm3097, %vm3098
  %3100 = vst.msk [vmem:[%s4] sm:$0x3] %vm3099, %v3094
  %v3101 = vmul.f32 %v2947, %v2947
  %v3102 = vmul.f32 %v2949, %v2949
  %v3103 = vmul.f32 %v2951, %v2951
  %v3104 = vmul.f32 %v2953, %v2953
  %v3105 = vmul.f32 %v2957, %v2957
  %v3106 = vmul.f32 %v2959, %v2959
  %v3107 = vmul.f32 %v2961, %v2961
  %v3108 = vmul.f32 %v2963, %v2963
  %v3109 = vmul.f32 %v2967, %v2967
  %v3110 = vmul.f32 %v2969, %v2969
  %v3111 = vmul.f32 %v2971, %v2971
  %v3112 = vmul.f32 %v2973, %v2973
  %v3113 = vmul.f32 %v2977, %v2977
  %v3114 = vmul.f32 %v2979, %v2979
  %v3115 = vmul.f32 %v2981, %v2981
  %v3116 = vmul.f32 %v2983, %v2983
  %v3117 = vmul.f32 %v2987, %v2987
  %v3118 = vmul.f32 %v2989, %v2989
  %v3119 = vmul.f32 %v2991, %v2991
  %v3120 = vmul.f32 %v2993, %v2993
  %v3121 = vmul.f32 %v2997, %v2997
  %v3122 = vmul.f32 %v2999, %v2999
  %v3123 = vmul.f32 %v3001, %v3001
  %v3124 = vmul.f32 %v3003, %v3003
  %v3125 = vmul.f32 %v3007, %v3007
  %v3126 = vmul.f32 %v3009, %v3009
  %v3127 = vadd.f32 %v3101, %v3103
  %v3128 = vadd.f32 %v3127, %v3105
  %v3129 = vadd.f32 %v3128, %v3107
  %v3130 = vadd.f32 %v3129, %v3109
  %v3131 = vadd.f32 %v3130, %v3111
  %v3132 = vadd.f32 %v3131, %v3113
  %v3133 = vadd.f32 %v3132, %v3115
  %v3134 = vadd.f32 %v3133, %v3117
  %v3135 = vadd.f32 %v3134, %v3119
  %v3136 = vadd.f32 %v3135, %v3121
  %v3137 = vadd.f32 %v3136, %v3123
  %v3138 = vsel %vm3050, %v3125, 0.0
  %v3139 = vadd.f32 %v3137, %v3138
  %v3140 = vrot.slane %v3139, 4
  %v3141 = vadd.f32 %v3139, %v3140
  %v3142 = vrot.slane %v3141, 2
  %v3143 = vadd.f32 %v3141, %v3142
  %v3144 = vrot.slane %v3143, 1
  %v3145 = vadd.f32 %v3143, %v3144
  %v3146 = vadd.f32 %v3102, %v3104
  %v3147 = vadd.f32 %v3146, %v3106
  %v3148 = vadd.f32 %v3147, %v3108
  %v3149 = vadd.f32 %v3148, %v3110
  %v3150 = vadd.f32 %v3149, %v3112
  %v3151 = vadd.f32 %v3150, %v3114
  %v3152 = vadd.f32 %v3151, %v3116
  %v3153 = vadd.f32 %v3152, %v3118
  %v3154 = vadd.f32 %v3153, %v3120
  %v3155 = vadd.f32 %v3154, %v3122
  %v3156 = vadd.f32 %v3155, %v3124
  %v3157 = vsel %vm3050, %v3126, 0.0
  %v3158 = vadd.f32 %v3156, %v3157
  %v3159 = vrot.slane %v3158, 4
  %v3160 = vadd.f32 %v3158, %v3159
  %v3161 = vrot.slane %v3160, 2
  %v3162 = vadd.f32 %v3160, %v3161
  %v3163 = vrot.slane %v3162, 1
  %v3164 = vadd.f32 %v3162, %v3163
  %v3167 = vcombine.low %v3145, %v3164
  %v3169 = vunpack.c.l.s4 1966171168
  %v3170 = vunpack.c.0.s8 %v3169
  %v3171 = vlaneseq
  %v3172 = vshrl.u32 %v3171, 7
  %v3173 = vsub.s32 %v3170, %v3172
  %v3174 = vrot.slane %v3167, %v3173
  %v3176 = vunpack.c.l.s4 1966171168
  %v3177 = vunpack.c.0.s8 %v3176
  %v3178 = vlaneseq
  %v3179 = vshrl.u32 %v3178, 7
  %v3180 = vsub.s32 %v3177, %v3179
  %v3181 = vrot.slane %v3174, %v3180
  %3183 = vst.msk [vmem:[%s5] sm:$0x3] %vm3099, %v3181
  // Predicated region
  $region14: #{discriminator_forward.4} parent=0 // pred_check
    _
  $region15: #{discriminator_forward.4} parent=0 // pred_check_branch
    %3185 = sbr.rel (0) target = $region17
  $region16: #{discriminator_forward.4} parent=0 // pred_region
    _
  $region17: #{discriminator_forward.4} parent=0 // pred_fallthru
    _
  // Predicated region
  $region18: #{discriminator_forward.4} parent=0 // pred_check
    _
  $region19: #{discriminator_forward.4} parent=0 // pred_check_branch
    %3187 = sbr.rel (0) target = $region21
  $region20: #{discriminator_forward.4} parent=0 // pred_region
    _
  $region21: #{discriminator_forward.4} parent=0 // pred_fallthru
    _
  // Predicated region
  $region22: #{discriminator_forward.4} parent=0 // pred_check
    _
  $region23: #{discriminator_forward.4} parent=0 // pred_check_branch
    %3189 = sbr.rel (0) target = $region25
  $region24: #{discriminator_forward.4} parent=0 // pred_region
    _
  $region25: #{discriminator_forward.4} parent=0 // pred_fallthru
    _
  // Predicated region
  $region26: #{discriminator_forward.4} parent=0 // pred_check
    _
  $region27: #{discriminator_forward.4} parent=0 // pred_check_branch
    %3191 = sbr.rel (0) target = $region29
  $region28: #{discriminator_forward.4} parent=0 // pred_region
    _
  $region29: #{discriminator_forward.4} parent=0 // pred_fallthru
    _
  // Predicated region
  $region30: #{discriminator_forward.4} parent=0 // pred_check
    _
  $region31: #{discriminator_forward.4} parent=0 // pred_check_branch
    %3193 = sbr.rel (0) target = $region33
  $region32: #{discriminator_forward.4} parent=0 // pred_region
    _
  $region33: #{discriminator_forward.4} parent=0 // pred_fallthru
    _
  // Predicated region
  $region34: #{discriminator_forward.4} parent=0 // pred_check
    _
  $region35: #{discriminator_forward.4} parent=0 // pred_check_branch
    %3195 = sbr.rel (0) target = $region37
  $region36: #{discriminator_forward.4} parent=0 // pred_region
    _
  $region37: #{discriminator_forward.4} parent=0 // pred_fallthru
    _

// kernel: discriminator_forward.5
$region0: #{discriminator_forward.5}
  #allocation0 [shape = 'u32[]', space=smem, size = 0x4, offset = 0x4, fixed_abs, tag = 'smem constant byte address 0x4 - core index']
  #allocation1 [shape = 'u32[144,128]{1,0:T(1,128)}', space=vmem, size = 0x12000, scoped, tag = 'internal scratch']
  #allocation2 [shape = 'f32[1,1]{1,0:T(1,128)S(1)}', space=vmem, size = 0x200, scoped, tag = 'scoped memory for discriminator_forward.5']
  %s0 = inlined_call_operand.vmem [shape: f32[2,49,256], index: 0, kind: input, shape index: {}]
  %s1 = inlined_call_operand.vmem [shape: f32[1,256], index: 1, kind: input, shape index: {}]
  %s2 = inlined_call_operand.vmem [shape: f32[1,256], index: 2, kind: input, shape index: {}]
  %s3 = inlined_call_operand.vmem [shape: f32[49,256], index: 3, kind: input, shape index: {}]
  %s4 = inlined_call_operand.<no memory space> [shape: f32[1,1], index: 4, kind: input, shape index: {}]
  %s5 = inlined_call_operand.vmem [shape: f32[2,1,1], index: 5, kind: output, shape index: {}]
  %s6 = sld [smem:[#allocation0]]
  $region53: #{discriminator_forward.5} parent=0
    _
  %s8 = ssub.s32 1, %s6
  %s9 = scalar_select 0, %s8, %s6
  %v10 = vstv %s4
  %11 = vst [vmem:[#allocation2] sm:$0x1] %v10
  loop: start=0, step=1, limit=4
  $region2: #{discriminator_forward.5} parent=0 // loop_pre_header
    _
  $region3: #{discriminator_forward.5} parent=0 // loop_header
    %s13 = sphi 0, %s17
    %p14 = scmp.ge.s32.totalorder %s13, 4
    %s23 = sphi 0, %s25
    %s26 = sphi 0, %s23
    %s27 = sphi 0, %s26
    %s43 = sphi 0, %s27
    %s47 = sphi 0, %s47
    %s49 = sphi 0, %s47
    %s50 = sphi 0, %s49
    %s64 = sphi 0, %s50
    %s68 = sphi 0, %s68
    %s70 = sphi 0, %s68
    %s71 = sphi 0, %s70
    %s85 = sphi 0, %s71
    %s89 = sphi 0, %s89
    %s91 = sphi 0, %s89
    %s92 = sphi 0, %s91
    %s106 = sphi 0, %s92
    %s110 = sphi 0, %s110
    %s112 = sphi 0, %s110
    %s113 = sphi 0, %s112
    %s127 = sphi 0, %s113
    %s133 = sphi 0, %s135
    %s136 = sphi 0, %s133
    %s137 = sphi 0, %s136
    %s153 = sphi 0, %s137
  $region4: #{discriminator_forward.5} parent=0 // loop_header_branch
    %16 = sbr.rel (%p14) target = $region8
  $region5: #{discriminator_forward.5} parent=0 // loop_body
    %s18 = ssub.s32 %s13, 1
    %s19 = ssub.s32 %s13, 2
    %s20 = sadd.s32 %s13, 1
    %s21 = ssub.s32 %s13, %s20
    %p22 = scmp.eq.s32.totalorder %s21, 0
    %s24 = sadd.s32 %s23, 1
    %s25 = scalar_select %p22, %s23, %s24
    %p28 = pneg %p22
    %p29 = scmp.eq.s32.totalorder %s13, 1
    %p30 = por %p28, %p29
    %p31 = scmp.ne.s32.totalorder %s23, %s26
    %p32 = scmp.eq.s32.totalorder %s13, 0
    %p33 = por %p31, %p32
    %p34 = scmp.ne.s32.totalorder %s23, %s26
    %p35 = scmp.eq.s32.totalorder %s18, 1
    %p36 = por %p34, %p35
    %p37 = scmp.ne.s32.totalorder %s26, %s27
    %p38 = scmp.eq.s32.totalorder %s18, 0
    %p39 = por %p37, %p38
    %p40 = scmp.ne.s32.totalorder %s26, %s27
    %p41 = scmp.eq.s32.totalorder %s19, 1
    %p42 = por %p40, %p41
    %p44 = scmp.ne.s32.totalorder %s27, %s43
    %p45 = scmp.eq.s32.totalorder %s19, 0
    %p46 = por %p44, %p45
    %s48 = sadd.s32 %s47, 1
    %p51 = scmp.eq.s32.totalorder %s13, 1
    %p52 = scmp.ne.s32.totalorder %s47, %s49
    %p53 = scmp.eq.s32.totalorder %s13, 0
    %p54 = por %p52, %p53
    %p55 = scmp.ne.s32.totalorder %s47, %s49
    %p56 = scmp.eq.s32.totalorder %s18, 1
    %p57 = por %p55, %p56
    %p58 = scmp.ne.s32.totalorder %s49, %s50
    %p59 = scmp.eq.s32.totalorder %s18, 0
    %p60 = por %p58, %p59
    %p61 = scmp.ne.s32.totalorder %s49, %s50
    %p62 = scmp.eq.s32.totalorder %s19, 1
    %p63 = por %p61, %p62
    %p65 = scmp.ne.s32.totalorder %s50, %s64
    %p66 = scmp.eq.s32.totalorder %s19, 0
    %p67 = por %p65, %p66
    %s69 = sadd.s32 %s68, 1
    %p72 = scmp.eq.s32.totalorder %s13, 1
    %p73 = scmp.ne.s32.totalorder %s68, %s70
    %p74 = scmp.eq.s32.totalorder %s13, 0
    %p75 = por %p73, %p74
    %p76 = scmp.ne.s32.totalorder %s68, %s70
    %p77 = scmp.eq.s32.totalorder %s18, 1
    %p78 = por %p76, %p77
    %p79 = scmp.ne.s32.totalorder %s70, %s71
    %p80 = scmp.eq.s32.totalorder %s18, 0
    %p81 = por %p79, %p80
    %p82 = scmp.ne.s32.totalorder %s70, %s71
    %p83 = scmp.eq.s32.totalorder %s19, 1
    %p84 = por %p82, %p83
    %p86 = scmp.ne.s32.totalorder %s71, %s85
    %p87 = scmp.eq.s32.totalorder %s19, 0
    %p88 = por %p86, %p87
    %s90 = sadd.s32 %s89, 1
    %p93 = scmp.eq.s32.totalorder %s13, 1
    %p94 = scmp.ne.s32.totalorder %s89, %s91
    %p95 = scmp.eq.s32.totalorder %s13, 0
    %p96 = por %p94, %p95
    %p97 = scmp.ne.s32.totalorder %s89, %s91
    %p98 = scmp.eq.s32.totalorder %s18, 1
    %p99 = por %p97, %p98
    %p100 = scmp.ne.s32.totalorder %s91, %s92
    %p101 = scmp.eq.s32.totalorder %s18, 0
    %p102 = por %p100, %p101
    %p103 = scmp.ne.s32.totalorder %s91, %s92
    %p104 = scmp.eq.s32.totalorder %s19, 1
    %p105 = por %p103, %p104
    %p107 = scmp.ne.s32.totalorder %s92, %s106
    %p108 = scmp.eq.s32.totalorder %s19, 0
    %p109 = por %p107, %p108
    %s111 = sadd.s32 %s110, 1
    %p114 = scmp.eq.s32.totalorder %s13, 1
    %p115 = scmp.ne.s32.totalorder %s110, %s112
    %p116 = scmp.eq.s32.totalorder %s13, 0
    %p117 = por %p115, %p116
    %p118 = scmp.ne.s32.totalorder %s110, %s112
    %p119 = scmp.eq.s32.totalorder %s18, 1
    %p120 = por %p118, %p119
    %p121 = scmp.ne.s32.totalorder %s112, %s113
    %p122 = scmp.eq.s32.totalorder %s18, 0
    %p123 = por %p121, %p122
    %p124 = scmp.ne.s32.totalorder %s112, %s113
    %p125 = scmp.eq.s32.totalorder %s19, 1
    %p126 = por %p124, %p125
    %p128 = scmp.ne.s32.totalorder %s113, %s127
    %p129 = scmp.eq.s32.totalorder %s19, 0
    %p130 = por %p128, %p129
    %s131 = ssub.s32 %s13, %s20
    %p132 = scmp.eq.s32.totalorder %s131, 0
    %s134 = sadd.s32 %s133, 1
    %s135 = scalar_select %p132, %s133, %s134
    %p138 = pneg %p132
    %p139 = scmp.eq.s32.totalorder %s13, 1
    %p140 = por %p138, %p139
    %p141 = scmp.ne.s32.totalorder %s133, %s136
    %p142 = scmp.eq.s32.totalorder %s13, 0
    %p143 = por %p141, %p142
    %p144 = scmp.ne.s32.totalorder %s133, %s136
    %p145 = scmp.eq.s32.totalorder %s18, 1
    %p146 = por %p144, %p145
    %p147 = scmp.ne.s32.totalorder %s136, %s137
    %p148 = scmp.eq.s32.totalorder %s18, 0
    %p149 = por %p147, %p148
    %p150 = scmp.ne.s32.totalorder %s136, %s137
    %p151 = scmp.eq.s32.totalorder %s19, 1
    %p152 = por %p150, %p151
    %p154 = scmp.ne.s32.totalorder %s137, %s153
    %p155 = scmp.eq.s32.totalorder %s19, 0
    %p156 = por %p154, %p155
    %p157 = scmp.le.s32.totalorder 1, %s13
    %p158 = scmp.lt.s32.totalorder %s13, 3
    %p159 = pnand %p157, %p158
    %p160 = pneg %p159
    // Predicated region
    $region9: #{discriminator_forward.5} parent=5 // pred_check
      _
    $region10: #{discriminator_forward.5} parent=5 // pred_check_branch
      %162 = sbr.rel (%p159) target = $region12
    $region11: #{discriminator_forward.5} parent=5 // pred_region
      %s163 = ssub.s32 %s13, 1
      // Predicated region
      $region13: #{discriminator_forward.5} parent=11 // pred_check
        %p164 = pneg %p60
      $region14: #{discriminator_forward.5} parent=11 // pred_check_branch
        %166 = sbr.rel (%p164) target = $region16
      $region15: #{discriminator_forward.5} parent=11 // pred_region
        _
      $region16: #{discriminator_forward.5} parent=11 // pred_fallthru
        _
      // Predicated region
      $region17: #{discriminator_forward.5} parent=11 // pred_check
        %p167 = pneg %p81
      $region18: #{discriminator_forward.5} parent=11 // pred_check_branch
        %169 = sbr.rel (%p167) target = $region20
      $region19: #{discriminator_forward.5} parent=11 // pred_region
        _
      $region20: #{discriminator_forward.5} parent=11 // pred_fallthru
        _
      // Predicated region
      $region21: #{discriminator_forward.5} parent=11 // pred_check
        %p170 = pneg %p102
      $region22: #{discriminator_forward.5} parent=11 // pred_check_branch
        %172 = sbr.rel (%p170) target = $region24
      $region23: #{discriminator_forward.5} parent=11 // pred_region
        _
      $region24: #{discriminator_forward.5} parent=11 // pred_fallthru
        _
      // Predicated region
      $region25: #{discriminator_forward.5} parent=11 // pred_check
        %p173 = pneg %p123
      $region26: #{discriminator_forward.5} parent=11 // pred_check_branch
        %175 = sbr.rel (%p173) target = $region28
      $region27: #{discriminator_forward.5} parent=11 // pred_region
        _
      $region28: #{discriminator_forward.5} parent=11 // pred_fallthru
        _
    $region12: #{discriminator_forward.5} parent=5 // pred_fallthru
      _
    %p176 = scmp.lt.s32.totalorder %s13, 2
    // Predicated region
    $region29: #{discriminator_forward.5} parent=5 // pred_check
      %p177 = pneg %p176
    $region30: #{discriminator_forward.5} parent=5 // pred_check_branch
      %179 = sbr.rel (%p177) target = $region32
    $region31: #{discriminator_forward.5} parent=5 // pred_region
      // Predicated region
      $region33: #{discriminator_forward.5} parent=31 // pred_check
        %p180 = pneg %p33
      $region34: #{discriminator_forward.5} parent=31 // pred_check_branch
        %182 = sbr.rel (%p180) target = $region36
      $region35: #{discriminator_forward.5} parent=31 // pred_region
        %p183 = scmp.lt.s32.totalorder %s13, 1
        %s184 = scalar_select %p183, %s13, 1
        %s185 = smul.addr %s184, 14
        %s186 = smul.addr %s185, 8
        %s187 = scalar_lea.vmem %s0, %s186
      $region36: #{discriminator_forward.5} parent=31 // pred_fallthru
        _
    $region32: #{discriminator_forward.5} parent=5 // pred_fallthru
      _
    %p188 = scmp.le.s32.totalorder 1, %s13
    %p189 = scmp.lt.s32.totalorder %s13, 3
    %p190 = pnand %p188, %p189
    %p191 = pneg %p190
    // Predicated region
    $region37: #{discriminator_forward.5} parent=5 // pred_check
      _
    $region38: #{discriminator_forward.5} parent=5 // pred_check_branch
      %193 = sbr.rel (%p190) target = $region40
    $region39: #{discriminator_forward.5} parent=5 // pred_region
      %s194 = ssub.s32 %s13, 1
      %p195 = scmp.lt.s32.totalorder %s18, 1
      %s196 = scalar_select %p195, %s18, 1
      %s197 = smul.addr %s196, 14
      %s198 = smul.addr %s197, 8
      %s199 = scalar_lea.vmem %s0, %s198
      %p200 = pneg %p39
      %p201 = pneg %p36
      %p202 = pneg %p60
      %p203 = pneg %p57
      %p204 = pneg %p81
      %p205 = pneg %p78
      %p206 = pneg %p102
      %p207 = pneg %p99
      %p208 = pneg %p123
      %p209 = pneg %p120
      %p210 = pneg %p149
      %p211 = pneg %p146
      %p212 = scmp.lt.s32.totalorder %s18, 1
      %s213 = scalar_select %p212, %s18, 1
      %s214 = scalar_lea.vmem %s5, %s213
      %p215 = scmp.lt.s32.totalorder %s18, 1
      %s216 = scalar_select %p215, %s18, 1
      %s217 = smul.addr %s216, 14
      %s218 = smul.addr %s217, 8
      %s219 = scalar_lea.vmem %s0, %s218
      %p220 = scmp.lt.s32.totalorder %s18, 1
      %s221 = scalar_select %p220, %s18, 1
      %s222 = scalar_lea.vmem %s5, %s221
      %v223 = vld [vmem:[%s219] sm:$0xff]
      %v224 = vld [vmem:[%s219 + $0x8] sm:$0xff]
      %v225 = vld [vmem:[%s219 + $0x10] sm:$0xff]
      %v226 = vld [vmem:[%s219 + $0x18] sm:$0xff]
      %v227 = vld [vmem:[%s219 + $0x20] sm:$0xff]
      %v228 = vld [vmem:[%s219 + $0x28] sm:$0xff]
      %v229 = vld [vmem:[%s219 + $0x30] sm:$0xff]
      %v230 = vld [vmem:[%s219 + $0x38] sm:$0xff]
      %v231 = vld [vmem:[%s219 + $0x40] sm:$0xff]
      %v232 = vld [vmem:[%s219 + $0x48] sm:$0xff]
      %v233 = vld [vmem:[%s219 + $0x50] sm:$0xff]
      %v234 = vld [vmem:[%s219 + $0x58] sm:$0xff]
      %v235 = vld [vmem:[%s219 + $0x60] sm:$0x1]
      %v236 = vld [vmem:[%s219 + $0x68] sm:$0x1]
      %v237 = vld [vmem:[%s1] sm:$0x3]
      %v239 = vlaneseq
      %v240 = vshrl.u32 %v239, 7
      %v241 = vsub.s32 0, %v240
      %v242 = vrot.slane %v237, %v241
      %v243 = vlaneseq
      %v244 = vshrl.u32 %v243, 7
      %v245 = vsub.s32 1, %v244
      %v246 = vrot.slane %v237, %v245
      %v249 = vmul.f32 %v223, %v242
      %v250 = vmul.f32 %v224, %v246
      %v251 = vmul.f32 %v225, %v242
      %v252 = vmul.f32 %v226, %v246
      %v253 = vmul.f32 %v227, %v242
      %v254 = vmul.f32 %v228, %v246
      %v255 = vmul.f32 %v229, %v242
      %v256 = vmul.f32 %v230, %v246
      %v257 = vmul.f32 %v231, %v242
      %v258 = vmul.f32 %v232, %v246
      %v259 = vmul.f32 %v233, %v242
      %v260 = vmul.f32 %v234, %v246
      %v261 = vmul.f32 %v235, %v242
      %v262 = vmul.f32 %v236, %v246
      %v263 = vld [vmem:[%s2] sm:$0x3]
      %v265 = vlaneseq
      %v266 = vshrl.u32 %v265, 7
      %v267 = vsub.s32 0, %v266
      %v268 = vrot.slane %v263, %v267
      %v269 = vlaneseq
      %v270 = vshrl.u32 %v269, 7
      %v271 = vsub.s32 1, %v270
      %v272 = vrot.slane %v263, %v271
      %v275 = vadd.f32 %v249, %v268
      %v276 = vadd.f32 %v250, %v272
      %v277 = vadd.f32 %v251, %v268
      %v278 = vadd.f32 %v252, %v272
      %v279 = vadd.f32 %v253, %v268
      %v280 = vadd.f32 %v254, %v272
      %v281 = vadd.f32 %v255, %v268
      %v282 = vadd.f32 %v256, %v272
      %v283 = vadd.f32 %v257, %v268
      %v284 = vadd.f32 %v258, %v272
      %v285 = vadd.f32 %v259, %v268
      %v286 = vadd.f32 %v260, %v272
      %v287 = vadd.f32 %v261, %v268
      %v288 = vadd.f32 %v262, %v272
      %v289 = vmul.f32 %v275, 0.2
      %v290 = vmul.f32 %v276, 0.2
      %v291 = vmul.f32 %v277, 0.2
      %v292 = vmul.f32 %v278, 0.2
      %v293 = vmul.f32 %v279, 0.2
      %v294 = vmul.f32 %v280, 0.2
      %v295 = vmul.f32 %v281, 0.2
      %v296 = vmul.f32 %v282, 0.2
      %v297 = vmul.f32 %v283, 0.2
      %v298 = vmul.f32 %v284, 0.2
      %v299 = vmul.f32 %v285, 0.2
      %v300 = vmul.f32 %v286, 0.2
      %v301 = vmul.f32 %v287, 0.2
      %v302 = vmul.f32 %v288, 0.2
      %v303 = vmax.f32 %v275, %v289
      %v304 = vmax.f32 %v276, %v290
      %v305 = vmax.f32 %v277, %v291
      %v306 = vmax.f32 %v278, %v292
      %v307 = vmax.f32 %v279, %v293
      %v308 = vmax.f32 %v280, %v294
      %v309 = vmax.f32 %v281, %v295
      %v310 = vmax.f32 %v282, %v296
      %v311 = vmax.f32 %v283, %v297
      %v312 = vmax.f32 %v284, %v298
      %v313 = vmax.f32 %v285, %v299
      %v314 = vmax.f32 %v286, %v300
      %v315 = vmax.f32 %v287, %v301
      %v316 = vmax.f32 %v288, %v302
      %v317 = vld [vmem:[%s3] sm:$0xff]
      %v318 = vld [vmem:[%s3 + $0x8] sm:$0xff]
      %v319 = vld [vmem:[%s3 + $0x10] sm:$0xff]
      %v320 = vld [vmem:[%s3 + $0x18] sm:$0xff]
      %v321 = vld [vmem:[%s3 + $0x20] sm:$0xff]
      %v322 = vld [vmem:[%s3 + $0x28] sm:$0xff]
      %v323 = vld [vmem:[%s3 + $0x30] sm:$0xff]
      %v324 = vld [vmem:[%s3 + $0x38] sm:$0xff]
      %v325 = vld [vmem:[%s3 + $0x40] sm:$0xff]
      %v326 = vld [vmem:[%s3 + $0x48] sm:$0xff]
      %v327 = vld [vmem:[%s3 + $0x50] sm:$0xff]
      %v328 = vld [vmem:[%s3 + $0x58] sm:$0xff]
      %v329 = vld [vmem:[%s3 + $0x60] sm:$0x1]
      %v330 = vld [vmem:[%s3 + $0x68] sm:$0x1]
      %v331 = vmul.f32 %v303, %v317
      %v332 = vmul.f32 %v304, %v318
      %v333 = vmul.f32 %v305, %v319
      %v334 = vmul.f32 %v306, %v320
      %v335 = vmul.f32 %v307, %v321
      %v336 = vmul.f32 %v308, %v322
      %v337 = vmul.f32 %v309, %v323
      %v338 = vmul.f32 %v310, %v324
      %v339 = vmul.f32 %v311, %v325
      %v340 = vmul.f32 %v312, %v326
      %v341 = vmul.f32 %v313, %v327
      %v342 = vmul.f32 %v314, %v328
      %v343 = vmul.f32 %v315, %v329
      %v344 = vmul.f32 %v316, %v330
      %v345 = vadd.f32 %v331, %v333
      %v346 = vadd.f32 %v345, %v335
      %v347 = vadd.f32 %v346, %v337
      %v348 = vadd.f32 %v347, %v339
      %v349 = vadd.f32 %v348, %v341
      %vm350 = vcmask 1040384
      %v351 = vsel %vm350, %v343, 0.0
      %v352 = vadd.f32 %v349, %v351
      %v353 = vrot.slane %v352, 4
      %v354 = vadd.f32 %v352, %v353
      %v355 = vrot.slane %v354, 2
      %v356 = vadd.f32 %v354, %v355
      %v357 = vrot.slane %v356, 1
      %v358 = vadd.f32 %v356, %v357
      %v359 = vadd.f32 %v332, %v334
      %v360 = vadd.f32 %v359, %v336
      %v361 = vadd.f32 %v360, %v338
      %v362 = vadd.f32 %v361, %v340
      %v363 = vadd.f32 %v362, %v342
      %v364 = vsel %vm350, %v344, 0.0
      %v365 = vadd.f32 %v363, %v364
      %v366 = vrot.slane %v365, 4
      %v367 = vadd.f32 %v365, %v366
      %v368 = vrot.slane %v367, 2
      %v369 = vadd.f32 %v367, %v368
      %v370 = vrot.slane %v369, 1
      %v371 = vadd.f32 %v369, %v370
      %v372 = vadd.f32 %v358, %v371
      %373 = vadd.xlane.f32.xlu0 %v372
      %v374 = vpop.xlane.xlu0 %373
      %v375 = vld [vmem:[#allocation2] sm:$0x1]
      %v376 = vadd.f32 %v374, %v375
      %v377 = vsub.f32 0.0, %v376
      %v378 = vmul.f32 %v377, 1.442695
      %v379 = vpow.pop %v378
      %v380 = vadd.f32 %v379, 1.0
      %v381 = vrcp.pop %v380
      %v382 = vmul.f32 1.0, %v381
      %vm383 = vcmask 0
      %384 = vst.msk [vmem:[%s222] sm:$0x1] %vm383, %v382
      %p385 = scmp.lt.s32.totalorder %s18, 1
      %s386 = scalar_select %p385, %s18, 1
      %s387 = scalar_lea.vmem %s5, %s386
      // Predicated region
      $region41: #{discriminator_forward.5} parent=39 // pred_check
        %p388 = pneg %p146
      $region42: #{discriminator_forward.5} parent=39 // pred_check_branch
        %390 = sbr.rel (%p388) target = $region44
      $region43: #{discriminator_forward.5} parent=39 // pred_region
        _
      $region44: #{discriminator_forward.5} parent=39 // pred_fallthru
        _
    $region40: #{discriminator_forward.5} parent=5 // pred_fallthru
      _
    %p391 = scmp.le.s32.totalorder 2, %s13
    // Predicated region
    $region45: #{discriminator_forward.5} parent=5 // pred_check
      %p392 = pneg %p391
    $region46: #{discriminator_forward.5} parent=5 // pred_check_branch
      %394 = sbr.rel (%p392) target = $region48
    $region47: #{discriminator_forward.5} parent=5 // pred_region
      %s395 = ssub.s32 %s13, 2
      // Predicated region
      $region49: #{discriminator_forward.5} parent=47 // pred_check
        %p396 = pneg %p152
      $region50: #{discriminator_forward.5} parent=47 // pred_check_branch
        %398 = sbr.rel (%p396) target = $region52
      $region51: #{discriminator_forward.5} parent=47 // pred_region
        %p399 = scmp.lt.s32.totalorder %s19, 1
        %s400 = scalar_select %p399, %s19, 1
        %s401 = scalar_lea.vmem %s5, %s400
      $region52: #{discriminator_forward.5} parent=47 // pred_fallthru
        _
    $region48: #{discriminator_forward.5} parent=5 // pred_fallthru
      _
  $region6: #{discriminator_forward.5} parent=0 // loop_footer
    %s17 = sadd.s32 1, %s13
  $region7: #{discriminator_forward.5} parent=0 // loop_footer_branch
    %12 = sbr.rel target = $region3
  $region8: #{discriminator_forward.5} parent=0 // loop_exit
    _

</llo_original>
